<compile_context>
chip_gen: v7x
topology: tpu7x:2x2x1
jax: 0.10.0
libtpu: 0.0.40
codegen_flags: <defaults>
</compile_context>

<pallas_src>
import math

import jax
import jax.numpy as jnp
from jax.experimental import pallas as pl
from jax.experimental.pallas import tpu as pltpu

GRID_SIZE = 5
SPLINE_ORDER = 3
NUM_BASES = GRID_SIZE + SPLINE_ORDER                 # 8 basis functions / feature
NUM_KNOT_COLS = GRID_SIZE + 2 * SPLINE_ORDER + 1     # 12 knot columns
H = 2.0 / GRID_SIZE                                  # grid_range = [-1, 1]
# Uniform knots -> compile-time Python float constants.
KNOTS = tuple(float((j - SPLINE_ORDER) * H - 1.0) for j in range(NUM_KNOT_COLS))
OUT_PAD = 128                                        # MXU-natural width for the last (O=1) layer


def _b_spline_bases(x):
    """Cox-de Boor bases of x (B, F) -> list of NUM_BASES arrays (B, F).

    Knots are compile-time constants and the grid is uniform, so every
    denominator equals k*H and divides become constant-reciprocal multiplies
    (pure VPU work).  Degree-0 indicators use ge[j]-ge[j+1], identical to
    (x >= knot[j]) & (x < knot[j+1]) for finite x (matches KANLinear.b_splines
    including the strict '<' upper bound).
    """
    n0 = GRID_SIZE + 2 * SPLINE_ORDER                # 11 degree-0 indicator bases
    ge = [(x >= KNOTS[j]).astype(x.dtype) for j in range(n0 + 1)]
    bases = [ge[j] - ge[j + 1] for j in range(n0)]
    for k in range(1, SPLINE_ORDER + 1):
        inv = 1.0 / (k * H)                          # knots[j+k]-knots[j] == k*H
        bases = [((x - KNOTS[j]) * inv) * bases[j]
                 + ((KNOTS[j + k + 1] - x) * inv) * bases[j + 1]
                 for j in range(n0 - k)]
    return bases                                     # length NUM_BASES


def fused_kan_kernel(x_ref, coral_ref, *refs):
    """All 6 KANLinear layers + CORAL epilogue fused in one kernel.

    refs = (w_0, ..., w_{L-1}, logits_ref, logitwm_ref); w_l is the prefused
    bf16 ((NUM_BASES+1)*F_l, O_l) matrix [base_weight.T ; scaled_spline_weight].
    """
    w_refs = refs[:-2]
    logits_ref = refs[-2]
    logitwm_ref = refs[-1]

    z = x_ref[...]                                   # (B, F0) f32, stays in vregs
    for w_ref in w_refs:
        silu = 0.5 * z * (1.0 + jnp.tanh(0.5 * z))   # SiLU via tanh: single EUP push
        bases = _b_spline_bases(z)
        # Packed feature tile [SiLU(z) | B_0(z) | ... | B_7(z)] built in
        # registers -> base matmul + 8 spline matmuls collapse to ONE MXU push.
        feat = jnp.concatenate([silu] + bases, axis=-1)
        z = jnp.dot(feat.astype(jnp.bfloat16), w_ref[...],
                    preferred_element_type=jnp.float32)

    zwm = z[0:1, 0:1]                                # z[0, 0] as a (1, 1) tile
    logitwm_ref[...] = zwm
    logits_ref[...] = zwm + coral_ref[...]           # CORAL: z[0,0] + coral_bias


@jax.jit
def kan_libd_forward(x, fused_weights, coral_bias):
    """Full KAN_LIBD forward: returns (logits (C-1,), logitWM scalar, x)."""
    B = x.shape[0]
    nc1 = coral_bias.shape[0]
    coral_2d = coral_bias.reshape(1, nc1).astype(jnp.float32)

    # Advisory cost estimate (kernel is launch/latency bound at this size).
    flops = 0
    transcendentals = 0
    bytes_accessed = int(x.size) * 4 + nc1 * 4 + (nc1 + 1) * 4
    for w in fused_weights:
        kf, o = int(w.shape[0]), int(w.shape[1])
        f = kf // (NUM_BASES + 1)
        flops += 2 * B * kf * o + 60 * B * f         # fused matmul + spline/SiLU VPU work
        transcendentals += B * f                     # tanh
        bytes_accessed += int(w.size) * 2            # bf16 weights
    ce = pl.CostEstimate(flops=int(flops), transcendentals=int(transcendentals),
                         bytes_accessed=int(bytes_accessed))

    vmem = pl.BlockSpec(memory_space=pltpu.MemorySpace.VMEM)
    logits_2d, logitwm_2d = pl.pallas_call(
        fused_kan_kernel,
        out_shape=(jax.ShapeDtypeStruct((1, nc1), jnp.float32),
                   jax.ShapeDtypeStruct((1, 1), jnp.float32)),
        in_specs=[vmem] * (2 + len(fused_weights)),
        out_specs=(vmem, vmem),
        cost_estimate=ce,
    )(x, coral_2d, *fused_weights)
    # TODO(synk): if batch ever grows, add a batch grid axis (block >= 256 rows,
    # dimension_semantics=("parallel",)) so v7x's two TensorCores split it; at
    # B=8 the kernel is purely launch/latency bound and gridless is optimal.
    return logits_2d[0], logitwm_2d[0, 0], x


# -------------------- parameter setup (deterministic, synthetic) ------------
def init_kan_params(key, in_f, out_f, out_pad=None):
    # TODO(synk): the torch init runs torch.linalg.lstsq (curve2coeff) on random
    # noise; that is init-time only, so we use a deterministic uniform init with
    # the same parameter shapes instead.
    k1, k2, k3 = jax.random.split(key, 3)
    bound = 1.0 / math.sqrt(in_f)
    base_w = jax.random.uniform(k1, (out_f, in_f), jnp.float32, -bound, bound)
    spline_w = jax.random.uniform(k2, (out_f, in_f, NUM_BASES),
                                  jnp.float32, -0.1, 0.1)
    spline_scaler = jax.random.uniform(k3, (out_f, in_f),
                                       jnp.float32, -bound, bound)
    scaled = spline_w * spline_scaler[..., None]             # (O, F, K)
    base_w_t = base_w.T                                      # (F, O)
    spline_w_t = jnp.transpose(scaled, (2, 1, 0))            # (K, F, O)
    # Prefuse: rows [0:F) = base weights; row F + j*F + f = spline weight of
    # basis j / feature f -> matches the in-kernel [silu | bases_j] packing.
    w_fused = jnp.concatenate(
        [base_w_t, spline_w_t.reshape(NUM_BASES * in_f, out_f)], axis=0)
    if out_pad is not None and out_pad > out_f:
        # Zero-pad the final (O=1) layer to a 128-lane MXU-natural width.
        w_fused = jnp.pad(w_fused, ((0, 0), (0, out_pad - out_f)))
    w_fused = w_fused.astype(jnp.bfloat16)                   # bf16 MXU inputs
    return dict(base_w_t=base_w_t, spline_w_t=spline_w_t, w_fused=w_fused)


# -------------------- pure-JAX reference (for correctness check) -------------
def _b_splines_ref(x):
    grid = jnp.broadcast_to(jnp.asarray(KNOTS, jnp.float32),
                            (x.shape[1], NUM_KNOT_COLS))     # (F, 12)
    xe = x[:, :, None]
    bases = ((xe >= grid[None, :, :-1]) & (xe < grid[None, :, 1:])).astype(x.dtype)
    for k in range(1, SPLINE_ORDER + 1):
        bases = ((xe - grid[None, :, :-(k + 1)])
                 / (grid[None, :, k:-1] - grid[None, :, :-(k + 1)]) * bases[:, :, :-1]
                 + (grid[None, :, k + 1:] - xe)
                 / (grid[None, :, k + 1:] - grid[None, :, 1:-k]) * bases[:, :, 1:])
    return bases                                             # (B, F, K)


def _bf16(a):
    # Mirror the kernel's bf16 MXU operand precision (f32 accumulation both sides).
    return a.astype(jnp.bfloat16).astype(jnp.float32)


def _kan_linear_ref(x, p):
    base_out = _bf16(jax.nn.silu(x)) @ _bf16(p['base_w_t'])
    spline_out = jnp.einsum('bfk,kfo->bo', _bf16(_b_splines_ref(x)),
                            _bf16(p['spline_w_t']))
    return base_out + spline_out


def _forward_ref(x, layer_params, coral_bias):
    z = x
    for p in layer_params:                                   # no ReLU in KAN_LIBD
        z = _kan_linear_ref(z, p)
    return z[0, 0] + coral_bias, z[0, 0]


if __name__ == "__main__":
    B = 8
    in_channels = 16
    num_classes = 7                       # coral_bias has num_classes-1 = 6 entries
    hidden_dims = [32, 32, 32, 32, 32]    # KAN_LIBD uses hidden_dims[0..4] (6 layers)
    dims = [in_channels] + hidden_dims + [1]

    key = jax.random.PRNGKey(0)
    keys = jax.random.split(key, len(dims))
    layer_params = []
    for i in range(len(dims) - 1):
        is_last = (i == len(dims) - 2)
        layer_params.append(init_kan_params(keys[i], dims[i], dims[i + 1],
                                            out_pad=OUT_PAD if is_last else None))
    coral_bias = (jnp.arange(num_classes - 1, 0, -1, dtype=jnp.float32)
                  / float(num_classes - 1))
    x = jax.random.uniform(keys[-1], (B, in_channels), jnp.float32, -1.0, 1.0)

    fused_weights = [p['w_fused'] for p in layer_params]
    logits, logitWM, x_out = kan_libd_forward(x, fused_weights, coral_bias)
    jax.block_until_ready((logits, logitWM, x_out))

    ref_logits, ref_logitWM = _forward_ref(x, layer_params, coral_bias)
    assert logits.shape == (num_classes - 1,)
    assert jnp.allclose(logits, ref_logits, rtol=1e-2, atol=1e-2)
    assert jnp.allclose(logitWM, ref_logitWM, rtol=1e-2, atol=1e-2)

    print("KERNEL_OK")
</pallas_src>

<mosaic_0001>
module attributes {stable_mosaic.version = 11 : i64} {
  func.func @fused_kan_kernel(%arg0: memref<8x16xf32, #tpu.memory_space<vmem>>, %arg1: memref<1x6xf32, #tpu.memory_space<vmem>>, %arg2: memref<144x32xbf16, #tpu.memory_space<vmem>>, %arg3: memref<288x32xbf16, #tpu.memory_space<vmem>>, %arg4: memref<288x32xbf16, #tpu.memory_space<vmem>>, %arg5: memref<288x32xbf16, #tpu.memory_space<vmem>>, %arg6: memref<288x32xbf16, #tpu.memory_space<vmem>>, %arg7: memref<288x128xbf16, #tpu.memory_space<vmem>>, %arg8: memref<1x6xf32, #tpu.memory_space<vmem>>, %arg9: memref<1x1xf32, #tpu.memory_space<vmem>>) attributes {dimension_semantics = [], scalar_prefetch = 0 : i64, scratch_operands = 0 : i64, tpu.core_type = #tpu.core_type<tc>} {
    %c0 = arith.constant 0 : index
    %c0_0 = arith.constant 0 : index
    %0 = vector.load %arg0[%c0, %c0_0] : memref<8x16xf32, #tpu.memory_space<vmem>>, vector<8x16xf32>
    %cst = arith.constant 5.000000e-01 : f32
    %1 = vector.broadcast %cst : f32 to vector<8x16xf32>
    %2 = arith.mulf %1, %0 : vector<8x16xf32>
    %cst_1 = arith.constant 5.000000e-01 : f32
    %3 = vector.broadcast %cst_1 : f32 to vector<8x16xf32>
    %4 = arith.mulf %3, %0 : vector<8x16xf32>
    %5 = math.tanh %4 : vector<8x16xf32>
    %cst_2 = arith.constant 1.000000e+00 : f32
    %6 = vector.broadcast %cst_2 : f32 to vector<8x16xf32>
    %7 = arith.addf %6, %5 : vector<8x16xf32>
    %8 = arith.mulf %2, %7 : vector<8x16xf32>
    %cst_3 = arith.constant -2.200000e+00 : f32
    %9 = vector.broadcast %cst_3 : f32 to vector<8x16xf32>
    %10 = arith.cmpf oge, %0, %9 : vector<8x16xf32>
    %11 = arith.extui %10 : vector<8x16xi1> to vector<8x16xi32>
    %12 = arith.sitofp %11 : vector<8x16xi32> to vector<8x16xf32>
    %cst_4 = arith.constant -1.800000e+00 : f32
    %13 = vector.broadcast %cst_4 : f32 to vector<8x16xf32>
    %14 = arith.cmpf oge, %0, %13 : vector<8x16xf32>
    %15 = arith.extui %14 : vector<8x16xi1> to vector<8x16xi32>
    %16 = arith.sitofp %15 : vector<8x16xi32> to vector<8x16xf32>
    %cst_5 = arith.constant -1.400000e+00 : f32
    %17 = vector.broadcast %cst_5 : f32 to vector<8x16xf32>
    %18 = arith.cmpf oge, %0, %17 : vector<8x16xf32>
    %19 = arith.extui %18 : vector<8x16xi1> to vector<8x16xi32>
    %20 = arith.sitofp %19 : vector<8x16xi32> to vector<8x16xf32>
    %cst_6 = arith.constant -1.000000e+00 : f32
    %21 = vector.broadcast %cst_6 : f32 to vector<8x16xf32>
    %22 = arith.cmpf oge, %0, %21 : vector<8x16xf32>
    %23 = arith.extui %22 : vector<8x16xi1> to vector<8x16xi32>
    %24 = arith.sitofp %23 : vector<8x16xi32> to vector<8x16xf32>
    %cst_7 = arith.constant -6.000000e-01 : f32
    %25 = vector.broadcast %cst_7 : f32 to vector<8x16xf32>
    %26 = arith.cmpf oge, %0, %25 : vector<8x16xf32>
    %27 = arith.extui %26 : vector<8x16xi1> to vector<8x16xi32>
    %28 = arith.sitofp %27 : vector<8x16xi32> to vector<8x16xf32>
    %cst_8 = arith.constant -2.000000e-01 : f32
    %29 = vector.broadcast %cst_8 : f32 to vector<8x16xf32>
    %30 = arith.cmpf oge, %0, %29 : vector<8x16xf32>
    %31 = arith.extui %30 : vector<8x16xi1> to vector<8x16xi32>
    %32 = arith.sitofp %31 : vector<8x16xi32> to vector<8x16xf32>
    %cst_9 = arith.constant 2.000000e-01 : f32
    %33 = vector.broadcast %cst_9 : f32 to vector<8x16xf32>
    %34 = arith.cmpf oge, %0, %33 : vector<8x16xf32>
    %35 = arith.extui %34 : vector<8x16xi1> to vector<8x16xi32>
    %36 = arith.sitofp %35 : vector<8x16xi32> to vector<8x16xf32>
    %cst_10 = arith.constant 6.000000e-01 : f32
    %37 = vector.broadcast %cst_10 : f32 to vector<8x16xf32>
    %38 = arith.cmpf oge, %0, %37 : vector<8x16xf32>
    %39 = arith.extui %38 : vector<8x16xi1> to vector<8x16xi32>
    %40 = arith.sitofp %39 : vector<8x16xi32> to vector<8x16xf32>
    %cst_11 = arith.constant 1.000000e+00 : f32
    %41 = vector.broadcast %cst_11 : f32 to vector<8x16xf32>
    %42 = arith.cmpf oge, %0, %41 : vector<8x16xf32>
    %43 = arith.extui %42 : vector<8x16xi1> to vector<8x16xi32>
    %44 = arith.sitofp %43 : vector<8x16xi32> to vector<8x16xf32>
    %cst_12 = arith.constant 1.400000e+00 : f32
    %45 = vector.broadcast %cst_12 : f32 to vector<8x16xf32>
    %46 = arith.cmpf oge, %0, %45 : vector<8x16xf32>
    %47 = arith.extui %46 : vector<8x16xi1> to vector<8x16xi32>
    %48 = arith.sitofp %47 : vector<8x16xi32> to vector<8x16xf32>
    %cst_13 = arith.constant 1.800000e+00 : f32
    %49 = vector.broadcast %cst_13 : f32 to vector<8x16xf32>
    %50 = arith.cmpf oge, %0, %49 : vector<8x16xf32>
    %51 = arith.extui %50 : vector<8x16xi1> to vector<8x16xi32>
    %52 = arith.sitofp %51 : vector<8x16xi32> to vector<8x16xf32>
    %cst_14 = arith.constant 2.200000e+00 : f32
    %53 = vector.broadcast %cst_14 : f32 to vector<8x16xf32>
    %54 = arith.cmpf oge, %0, %53 : vector<8x16xf32>
    %55 = arith.extui %54 : vector<8x16xi1> to vector<8x16xi32>
    %56 = arith.sitofp %55 : vector<8x16xi32> to vector<8x16xf32>
    %57 = arith.subf %12, %16 : vector<8x16xf32>
    %58 = arith.subf %16, %20 : vector<8x16xf32>
    %59 = arith.subf %20, %24 : vector<8x16xf32>
    %60 = arith.subf %24, %28 : vector<8x16xf32>
    %61 = arith.subf %28, %32 : vector<8x16xf32>
    %62 = arith.subf %32, %36 : vector<8x16xf32>
    %63 = arith.subf %36, %40 : vector<8x16xf32>
    %64 = arith.subf %40, %44 : vector<8x16xf32>
    %65 = arith.subf %44, %48 : vector<8x16xf32>
    %66 = arith.subf %48, %52 : vector<8x16xf32>
    %67 = arith.subf %52, %56 : vector<8x16xf32>
    %cst_15 = arith.constant -2.200000e+00 : f32
    %68 = vector.broadcast %cst_15 : f32 to vector<8x16xf32>
    %69 = arith.subf %0, %68 : vector<8x16xf32>
    %cst_16 = arith.constant 2.500000e+00 : f32
    %70 = vector.broadcast %cst_16 : f32 to vector<8x16xf32>
    %71 = arith.mulf %69, %70 : vector<8x16xf32>
    %72 = arith.mulf %71, %57 : vector<8x16xf32>
    %cst_17 = arith.constant -1.400000e+00 : f32
    %73 = vector.broadcast %cst_17 : f32 to vector<8x16xf32>
    %74 = arith.subf %73, %0 : vector<8x16xf32>
    %cst_18 = arith.constant 2.500000e+00 : f32
    %75 = vector.broadcast %cst_18 : f32 to vector<8x16xf32>
    %76 = arith.mulf %74, %75 : vector<8x16xf32>
    %77 = arith.mulf %76, %58 : vector<8x16xf32>
    %78 = arith.addf %72, %77 : vector<8x16xf32>
    %cst_19 = arith.constant -1.800000e+00 : f32
    %79 = vector.broadcast %cst_19 : f32 to vector<8x16xf32>
    %80 = arith.subf %0, %79 : vector<8x16xf32>
    %cst_20 = arith.constant 2.500000e+00 : f32
    %81 = vector.broadcast %cst_20 : f32 to vector<8x16xf32>
    %82 = arith.mulf %80, %81 : vector<8x16xf32>
    %83 = arith.mulf %82, %58 : vector<8x16xf32>
    %cst_21 = arith.constant -1.000000e+00 : f32
    %84 = vector.broadcast %cst_21 : f32 to vector<8x16xf32>
    %85 = arith.subf %84, %0 : vector<8x16xf32>
    %cst_22 = arith.constant 2.500000e+00 : f32
    %86 = vector.broadcast %cst_22 : f32 to vector<8x16xf32>
    %87 = arith.mulf %85, %86 : vector<8x16xf32>
    %88 = arith.mulf %87, %59 : vector<8x16xf32>
    %89 = arith.addf %83, %88 : vector<8x16xf32>
    %cst_23 = arith.constant -1.400000e+00 : f32
    %90 = vector.broadcast %cst_23 : f32 to vector<8x16xf32>
    %91 = arith.subf %0, %90 : vector<8x16xf32>
    %cst_24 = arith.constant 2.500000e+00 : f32
    %92 = vector.broadcast %cst_24 : f32 to vector<8x16xf32>
    %93 = arith.mulf %91, %92 : vector<8x16xf32>
    %94 = arith.mulf %93, %59 : vector<8x16xf32>
    %cst_25 = arith.constant -6.000000e-01 : f32
    %95 = vector.broadcast %cst_25 : f32 to vector<8x16xf32>
    %96 = arith.subf %95, %0 : vector<8x16xf32>
    %cst_26 = arith.constant 2.500000e+00 : f32
    %97 = vector.broadcast %cst_26 : f32 to vector<8x16xf32>
    %98 = arith.mulf %96, %97 : vector<8x16xf32>
    %99 = arith.mulf %98, %60 : vector<8x16xf32>
    %100 = arith.addf %94, %99 : vector<8x16xf32>
    %cst_27 = arith.constant -1.000000e+00 : f32
    %101 = vector.broadcast %cst_27 : f32 to vector<8x16xf32>
    %102 = arith.subf %0, %101 : vector<8x16xf32>
    %cst_28 = arith.constant 2.500000e+00 : f32
    %103 = vector.broadcast %cst_28 : f32 to vector<8x16xf32>
    %104 = arith.mulf %102, %103 : vector<8x16xf32>
    %105 = arith.mulf %104, %60 : vector<8x16xf32>
    %cst_29 = arith.constant -2.000000e-01 : f32
    %106 = vector.broadcast %cst_29 : f32 to vector<8x16xf32>
    %107 = arith.subf %106, %0 : vector<8x16xf32>
    %cst_30 = arith.constant 2.500000e+00 : f32
    %108 = vector.broadcast %cst_30 : f32 to vector<8x16xf32>
    %109 = arith.mulf %107, %108 : vector<8x16xf32>
    %110 = arith.mulf %109, %61 : vector<8x16xf32>
    %111 = arith.addf %105, %110 : vector<8x16xf32>
    %cst_31 = arith.constant -6.000000e-01 : f32
    %112 = vector.broadcast %cst_31 : f32 to vector<8x16xf32>
    %113 = arith.subf %0, %112 : vector<8x16xf32>
    %cst_32 = arith.constant 2.500000e+00 : f32
    %114 = vector.broadcast %cst_32 : f32 to vector<8x16xf32>
    %115 = arith.mulf %113, %114 : vector<8x16xf32>
    %116 = arith.mulf %115, %61 : vector<8x16xf32>
    %cst_33 = arith.constant 2.000000e-01 : f32
    %117 = vector.broadcast %cst_33 : f32 to vector<8x16xf32>
    %118 = arith.subf %117, %0 : vector<8x16xf32>
    %cst_34 = arith.constant 2.500000e+00 : f32
    %119 = vector.broadcast %cst_34 : f32 to vector<8x16xf32>
    %120 = arith.mulf %118, %119 : vector<8x16xf32>
    %121 = arith.mulf %120, %62 : vector<8x16xf32>
    %122 = arith.addf %116, %121 : vector<8x16xf32>
    %cst_35 = arith.constant -2.000000e-01 : f32
    %123 = vector.broadcast %cst_35 : f32 to vector<8x16xf32>
    %124 = arith.subf %0, %123 : vector<8x16xf32>
    %cst_36 = arith.constant 2.500000e+00 : f32
    %125 = vector.broadcast %cst_36 : f32 to vector<8x16xf32>
    %126 = arith.mulf %124, %125 : vector<8x16xf32>
    %127 = arith.mulf %126, %62 : vector<8x16xf32>
    %cst_37 = arith.constant 6.000000e-01 : f32
    %128 = vector.broadcast %cst_37 : f32 to vector<8x16xf32>
    %129 = arith.subf %128, %0 : vector<8x16xf32>
    %cst_38 = arith.constant 2.500000e+00 : f32
    %130 = vector.broadcast %cst_38 : f32 to vector<8x16xf32>
    %131 = arith.mulf %129, %130 : vector<8x16xf32>
    %132 = arith.mulf %131, %63 : vector<8x16xf32>
    %133 = arith.addf %127, %132 : vector<8x16xf32>
    %cst_39 = arith.constant 2.000000e-01 : f32
    %134 = vector.broadcast %cst_39 : f32 to vector<8x16xf32>
    %135 = arith.subf %0, %134 : vector<8x16xf32>
    %cst_40 = arith.constant 2.500000e+00 : f32
    %136 = vector.broadcast %cst_40 : f32 to vector<8x16xf32>
    %137 = arith.mulf %135, %136 : vector<8x16xf32>
    %138 = arith.mulf %137, %63 : vector<8x16xf32>
    %cst_41 = arith.constant 1.000000e+00 : f32
    %139 = vector.broadcast %cst_41 : f32 to vector<8x16xf32>
    %140 = arith.subf %139, %0 : vector<8x16xf32>
    %cst_42 = arith.constant 2.500000e+00 : f32
    %141 = vector.broadcast %cst_42 : f32 to vector<8x16xf32>
    %142 = arith.mulf %140, %141 : vector<8x16xf32>
    %143 = arith.mulf %142, %64 : vector<8x16xf32>
    %144 = arith.addf %138, %143 : vector<8x16xf32>
    %cst_43 = arith.constant 6.000000e-01 : f32
    %145 = vector.broadcast %cst_43 : f32 to vector<8x16xf32>
    %146 = arith.subf %0, %145 : vector<8x16xf32>
    %cst_44 = arith.constant 2.500000e+00 : f32
    %147 = vector.broadcast %cst_44 : f32 to vector<8x16xf32>
    %148 = arith.mulf %146, %147 : vector<8x16xf32>
    %149 = arith.mulf %148, %64 : vector<8x16xf32>
    %cst_45 = arith.constant 1.400000e+00 : f32
    %150 = vector.broadcast %cst_45 : f32 to vector<8x16xf32>
    %151 = arith.subf %150, %0 : vector<8x16xf32>
    %cst_46 = arith.constant 2.500000e+00 : f32
    %152 = vector.broadcast %cst_46 : f32 to vector<8x16xf32>
    %153 = arith.mulf %151, %152 : vector<8x16xf32>
    %154 = arith.mulf %153, %65 : vector<8x16xf32>
    %155 = arith.addf %149, %154 : vector<8x16xf32>
    %cst_47 = arith.constant 1.000000e+00 : f32
    %156 = vector.broadcast %cst_47 : f32 to vector<8x16xf32>
    %157 = arith.subf %0, %156 : vector<8x16xf32>
    %cst_48 = arith.constant 2.500000e+00 : f32
    %158 = vector.broadcast %cst_48 : f32 to vector<8x16xf32>
    %159 = arith.mulf %157, %158 : vector<8x16xf32>
    %160 = arith.mulf %159, %65 : vector<8x16xf32>
    %cst_49 = arith.constant 1.800000e+00 : f32
    %161 = vector.broadcast %cst_49 : f32 to vector<8x16xf32>
    %162 = arith.subf %161, %0 : vector<8x16xf32>
    %cst_50 = arith.constant 2.500000e+00 : f32
    %163 = vector.broadcast %cst_50 : f32 to vector<8x16xf32>
    %164 = arith.mulf %162, %163 : vector<8x16xf32>
    %165 = arith.mulf %164, %66 : vector<8x16xf32>
    %166 = arith.addf %160, %165 : vector<8x16xf32>
    %cst_51 = arith.constant 1.400000e+00 : f32
    %167 = vector.broadcast %cst_51 : f32 to vector<8x16xf32>
    %168 = arith.subf %0, %167 : vector<8x16xf32>
    %cst_52 = arith.constant 2.500000e+00 : f32
    %169 = vector.broadcast %cst_52 : f32 to vector<8x16xf32>
    %170 = arith.mulf %168, %169 : vector<8x16xf32>
    %171 = arith.mulf %170, %66 : vector<8x16xf32>
    %cst_53 = arith.constant 2.200000e+00 : f32
    %172 = vector.broadcast %cst_53 : f32 to vector<8x16xf32>
    %173 = arith.subf %172, %0 : vector<8x16xf32>
    %cst_54 = arith.constant 2.500000e+00 : f32
    %174 = vector.broadcast %cst_54 : f32 to vector<8x16xf32>
    %175 = arith.mulf %173, %174 : vector<8x16xf32>
    %176 = arith.mulf %175, %67 : vector<8x16xf32>
    %177 = arith.addf %171, %176 : vector<8x16xf32>
    %cst_55 = arith.constant -2.200000e+00 : f32
    %178 = vector.broadcast %cst_55 : f32 to vector<8x16xf32>
    %179 = arith.subf %0, %178 : vector<8x16xf32>
    %cst_56 = arith.constant 1.250000e+00 : f32
    %180 = vector.broadcast %cst_56 : f32 to vector<8x16xf32>
    %181 = arith.mulf %179, %180 : vector<8x16xf32>
    %182 = arith.mulf %181, %78 : vector<8x16xf32>
    %cst_57 = arith.constant -1.000000e+00 : f32
    %183 = vector.broadcast %cst_57 : f32 to vector<8x16xf32>
    %184 = arith.subf %183, %0 : vector<8x16xf32>
    %cst_58 = arith.constant 1.250000e+00 : f32
    %185 = vector.broadcast %cst_58 : f32 to vector<8x16xf32>
    %186 = arith.mulf %184, %185 : vector<8x16xf32>
    %187 = arith.mulf %186, %89 : vector<8x16xf32>
    %188 = arith.addf %182, %187 : vector<8x16xf32>
    %cst_59 = arith.constant -1.800000e+00 : f32
    %189 = vector.broadcast %cst_59 : f32 to vector<8x16xf32>
    %190 = arith.subf %0, %189 : vector<8x16xf32>
    %cst_60 = arith.constant 1.250000e+00 : f32
    %191 = vector.broadcast %cst_60 : f32 to vector<8x16xf32>
    %192 = arith.mulf %190, %191 : vector<8x16xf32>
    %193 = arith.mulf %192, %89 : vector<8x16xf32>
    %cst_61 = arith.constant -6.000000e-01 : f32
    %194 = vector.broadcast %cst_61 : f32 to vector<8x16xf32>
    %195 = arith.subf %194, %0 : vector<8x16xf32>
    %cst_62 = arith.constant 1.250000e+00 : f32
    %196 = vector.broadcast %cst_62 : f32 to vector<8x16xf32>
    %197 = arith.mulf %195, %196 : vector<8x16xf32>
    %198 = arith.mulf %197, %100 : vector<8x16xf32>
    %199 = arith.addf %193, %198 : vector<8x16xf32>
    %cst_63 = arith.constant -1.400000e+00 : f32
    %200 = vector.broadcast %cst_63 : f32 to vector<8x16xf32>
    %201 = arith.subf %0, %200 : vector<8x16xf32>
    %cst_64 = arith.constant 1.250000e+00 : f32
    %202 = vector.broadcast %cst_64 : f32 to vector<8x16xf32>
    %203 = arith.mulf %201, %202 : vector<8x16xf32>
    %204 = arith.mulf %203, %100 : vector<8x16xf32>
    %cst_65 = arith.constant -2.000000e-01 : f32
    %205 = vector.broadcast %cst_65 : f32 to vector<8x16xf32>
    %206 = arith.subf %205, %0 : vector<8x16xf32>
    %cst_66 = arith.constant 1.250000e+00 : f32
    %207 = vector.broadcast %cst_66 : f32 to vector<8x16xf32>
    %208 = arith.mulf %206, %207 : vector<8x16xf32>
    %209 = arith.mulf %208, %111 : vector<8x16xf32>
    %210 = arith.addf %204, %209 : vector<8x16xf32>
    %cst_67 = arith.constant -1.000000e+00 : f32
    %211 = vector.broadcast %cst_67 : f32 to vector<8x16xf32>
    %212 = arith.subf %0, %211 : vector<8x16xf32>
    %cst_68 = arith.constant 1.250000e+00 : f32
    %213 = vector.broadcast %cst_68 : f32 to vector<8x16xf32>
    %214 = arith.mulf %212, %213 : vector<8x16xf32>
    %215 = arith.mulf %214, %111 : vector<8x16xf32>
    %cst_69 = arith.constant 2.000000e-01 : f32
    %216 = vector.broadcast %cst_69 : f32 to vector<8x16xf32>
    %217 = arith.subf %216, %0 : vector<8x16xf32>
    %cst_70 = arith.constant 1.250000e+00 : f32
    %218 = vector.broadcast %cst_70 : f32 to vector<8x16xf32>
    %219 = arith.mulf %217, %218 : vector<8x16xf32>
    %220 = arith.mulf %219, %122 : vector<8x16xf32>
    %221 = arith.addf %215, %220 : vector<8x16xf32>
    %cst_71 = arith.constant -6.000000e-01 : f32
    %222 = vector.broadcast %cst_71 : f32 to vector<8x16xf32>
    %223 = arith.subf %0, %222 : vector<8x16xf32>
    %cst_72 = arith.constant 1.250000e+00 : f32
    %224 = vector.broadcast %cst_72 : f32 to vector<8x16xf32>
    %225 = arith.mulf %223, %224 : vector<8x16xf32>
    %226 = arith.mulf %225, %122 : vector<8x16xf32>
    %cst_73 = arith.constant 6.000000e-01 : f32
    %227 = vector.broadcast %cst_73 : f32 to vector<8x16xf32>
    %228 = arith.subf %227, %0 : vector<8x16xf32>
    %cst_74 = arith.constant 1.250000e+00 : f32
    %229 = vector.broadcast %cst_74 : f32 to vector<8x16xf32>
    %230 = arith.mulf %228, %229 : vector<8x16xf32>
    %231 = arith.mulf %230, %133 : vector<8x16xf32>
    %232 = arith.addf %226, %231 : vector<8x16xf32>
    %cst_75 = arith.constant -2.000000e-01 : f32
    %233 = vector.broadcast %cst_75 : f32 to vector<8x16xf32>
    %234 = arith.subf %0, %233 : vector<8x16xf32>
    %cst_76 = arith.constant 1.250000e+00 : f32
    %235 = vector.broadcast %cst_76 : f32 to vector<8x16xf32>
    %236 = arith.mulf %234, %235 : vector<8x16xf32>
    %237 = arith.mulf %236, %133 : vector<8x16xf32>
    %cst_77 = arith.constant 1.000000e+00 : f32
    %238 = vector.broadcast %cst_77 : f32 to vector<8x16xf32>
    %239 = arith.subf %238, %0 : vector<8x16xf32>
    %cst_78 = arith.constant 1.250000e+00 : f32
    %240 = vector.broadcast %cst_78 : f32 to vector<8x16xf32>
    %241 = arith.mulf %239, %240 : vector<8x16xf32>
    %242 = arith.mulf %241, %144 : vector<8x16xf32>
    %243 = arith.addf %237, %242 : vector<8x16xf32>
    %cst_79 = arith.constant 2.000000e-01 : f32
    %244 = vector.broadcast %cst_79 : f32 to vector<8x16xf32>
    %245 = arith.subf %0, %244 : vector<8x16xf32>
    %cst_80 = arith.constant 1.250000e+00 : f32
    %246 = vector.broadcast %cst_80 : f32 to vector<8x16xf32>
    %247 = arith.mulf %245, %246 : vector<8x16xf32>
    %248 = arith.mulf %247, %144 : vector<8x16xf32>
    %cst_81 = arith.constant 1.400000e+00 : f32
    %249 = vector.broadcast %cst_81 : f32 to vector<8x16xf32>
    %250 = arith.subf %249, %0 : vector<8x16xf32>
    %cst_82 = arith.constant 1.250000e+00 : f32
    %251 = vector.broadcast %cst_82 : f32 to vector<8x16xf32>
    %252 = arith.mulf %250, %251 : vector<8x16xf32>
    %253 = arith.mulf %252, %155 : vector<8x16xf32>
    %254 = arith.addf %248, %253 : vector<8x16xf32>
    %cst_83 = arith.constant 6.000000e-01 : f32
    %255 = vector.broadcast %cst_83 : f32 to vector<8x16xf32>
    %256 = arith.subf %0, %255 : vector<8x16xf32>
    %cst_84 = arith.constant 1.250000e+00 : f32
    %257 = vector.broadcast %cst_84 : f32 to vector<8x16xf32>
    %258 = arith.mulf %256, %257 : vector<8x16xf32>
    %259 = arith.mulf %258, %155 : vector<8x16xf32>
    %cst_85 = arith.constant 1.800000e+00 : f32
    %260 = vector.broadcast %cst_85 : f32 to vector<8x16xf32>
    %261 = arith.subf %260, %0 : vector<8x16xf32>
    %cst_86 = arith.constant 1.250000e+00 : f32
    %262 = vector.broadcast %cst_86 : f32 to vector<8x16xf32>
    %263 = arith.mulf %261, %262 : vector<8x16xf32>
    %264 = arith.mulf %263, %166 : vector<8x16xf32>
    %265 = arith.addf %259, %264 : vector<8x16xf32>
    %cst_87 = arith.constant 1.000000e+00 : f32
    %266 = vector.broadcast %cst_87 : f32 to vector<8x16xf32>
    %267 = arith.subf %0, %266 : vector<8x16xf32>
    %cst_88 = arith.constant 1.250000e+00 : f32
    %268 = vector.broadcast %cst_88 : f32 to vector<8x16xf32>
    %269 = arith.mulf %267, %268 : vector<8x16xf32>
    %270 = arith.mulf %269, %166 : vector<8x16xf32>
    %cst_89 = arith.constant 2.200000e+00 : f32
    %271 = vector.broadcast %cst_89 : f32 to vector<8x16xf32>
    %272 = arith.subf %271, %0 : vector<8x16xf32>
    %cst_90 = arith.constant 1.250000e+00 : f32
    %273 = vector.broadcast %cst_90 : f32 to vector<8x16xf32>
    %274 = arith.mulf %272, %273 : vector<8x16xf32>
    %275 = arith.mulf %274, %177 : vector<8x16xf32>
    %276 = arith.addf %270, %275 : vector<8x16xf32>
    %cst_91 = arith.constant -2.200000e+00 : f32
    %277 = vector.broadcast %cst_91 : f32 to vector<8x16xf32>
    %278 = arith.subf %0, %277 : vector<8x16xf32>
    %cst_92 = arith.constant 0.833333313 : f32
    %279 = vector.broadcast %cst_92 : f32 to vector<8x16xf32>
    %280 = arith.mulf %278, %279 : vector<8x16xf32>
    %281 = arith.mulf %280, %188 : vector<8x16xf32>
    %cst_93 = arith.constant -6.000000e-01 : f32
    %282 = vector.broadcast %cst_93 : f32 to vector<8x16xf32>
    %283 = arith.subf %282, %0 : vector<8x16xf32>
    %cst_94 = arith.constant 0.833333313 : f32
    %284 = vector.broadcast %cst_94 : f32 to vector<8x16xf32>
    %285 = arith.mulf %283, %284 : vector<8x16xf32>
    %286 = arith.mulf %285, %199 : vector<8x16xf32>
    %287 = arith.addf %281, %286 : vector<8x16xf32>
    %cst_95 = arith.constant -1.800000e+00 : f32
    %288 = vector.broadcast %cst_95 : f32 to vector<8x16xf32>
    %289 = arith.subf %0, %288 : vector<8x16xf32>
    %cst_96 = arith.constant 0.833333313 : f32
    %290 = vector.broadcast %cst_96 : f32 to vector<8x16xf32>
    %291 = arith.mulf %289, %290 : vector<8x16xf32>
    %292 = arith.mulf %291, %199 : vector<8x16xf32>
    %cst_97 = arith.constant -2.000000e-01 : f32
    %293 = vector.broadcast %cst_97 : f32 to vector<8x16xf32>
    %294 = arith.subf %293, %0 : vector<8x16xf32>
    %cst_98 = arith.constant 0.833333313 : f32
    %295 = vector.broadcast %cst_98 : f32 to vector<8x16xf32>
    %296 = arith.mulf %294, %295 : vector<8x16xf32>
    %297 = arith.mulf %296, %210 : vector<8x16xf32>
    %298 = arith.addf %292, %297 : vector<8x16xf32>
    %cst_99 = arith.constant -1.400000e+00 : f32
    %299 = vector.broadcast %cst_99 : f32 to vector<8x16xf32>
    %300 = arith.subf %0, %299 : vector<8x16xf32>
    %cst_100 = arith.constant 0.833333313 : f32
    %301 = vector.broadcast %cst_100 : f32 to vector<8x16xf32>
    %302 = arith.mulf %300, %301 : vector<8x16xf32>
    %303 = arith.mulf %302, %210 : vector<8x16xf32>
    %cst_101 = arith.constant 2.000000e-01 : f32
    %304 = vector.broadcast %cst_101 : f32 to vector<8x16xf32>
    %305 = arith.subf %304, %0 : vector<8x16xf32>
    %cst_102 = arith.constant 0.833333313 : f32
    %306 = vector.broadcast %cst_102 : f32 to vector<8x16xf32>
    %307 = arith.mulf %305, %306 : vector<8x16xf32>
    %308 = arith.mulf %307, %221 : vector<8x16xf32>
    %309 = arith.addf %303, %308 : vector<8x16xf32>
    %cst_103 = arith.constant -1.000000e+00 : f32
    %310 = vector.broadcast %cst_103 : f32 to vector<8x16xf32>
    %311 = arith.subf %0, %310 : vector<8x16xf32>
    %cst_104 = arith.constant 0.833333313 : f32
    %312 = vector.broadcast %cst_104 : f32 to vector<8x16xf32>
    %313 = arith.mulf %311, %312 : vector<8x16xf32>
    %314 = arith.mulf %313, %221 : vector<8x16xf32>
    %cst_105 = arith.constant 6.000000e-01 : f32
    %315 = vector.broadcast %cst_105 : f32 to vector<8x16xf32>
    %316 = arith.subf %315, %0 : vector<8x16xf32>
    %cst_106 = arith.constant 0.833333313 : f32
    %317 = vector.broadcast %cst_106 : f32 to vector<8x16xf32>
    %318 = arith.mulf %316, %317 : vector<8x16xf32>
    %319 = arith.mulf %318, %232 : vector<8x16xf32>
    %320 = arith.addf %314, %319 : vector<8x16xf32>
    %cst_107 = arith.constant -6.000000e-01 : f32
    %321 = vector.broadcast %cst_107 : f32 to vector<8x16xf32>
    %322 = arith.subf %0, %321 : vector<8x16xf32>
    %cst_108 = arith.constant 0.833333313 : f32
    %323 = vector.broadcast %cst_108 : f32 to vector<8x16xf32>
    %324 = arith.mulf %322, %323 : vector<8x16xf32>
    %325 = arith.mulf %324, %232 : vector<8x16xf32>
    %cst_109 = arith.constant 1.000000e+00 : f32
    %326 = vector.broadcast %cst_109 : f32 to vector<8x16xf32>
    %327 = arith.subf %326, %0 : vector<8x16xf32>
    %cst_110 = arith.constant 0.833333313 : f32
    %328 = vector.broadcast %cst_110 : f32 to vector<8x16xf32>
    %329 = arith.mulf %327, %328 : vector<8x16xf32>
    %330 = arith.mulf %329, %243 : vector<8x16xf32>
    %331 = arith.addf %325, %330 : vector<8x16xf32>
    %cst_111 = arith.constant -2.000000e-01 : f32
    %332 = vector.broadcast %cst_111 : f32 to vector<8x16xf32>
    %333 = arith.subf %0, %332 : vector<8x16xf32>
    %cst_112 = arith.constant 0.833333313 : f32
    %334 = vector.broadcast %cst_112 : f32 to vector<8x16xf32>
    %335 = arith.mulf %333, %334 : vector<8x16xf32>
    %336 = arith.mulf %335, %243 : vector<8x16xf32>
    %cst_113 = arith.constant 1.400000e+00 : f32
    %337 = vector.broadcast %cst_113 : f32 to vector<8x16xf32>
    %338 = arith.subf %337, %0 : vector<8x16xf32>
    %cst_114 = arith.constant 0.833333313 : f32
    %339 = vector.broadcast %cst_114 : f32 to vector<8x16xf32>
    %340 = arith.mulf %338, %339 : vector<8x16xf32>
    %341 = arith.mulf %340, %254 : vector<8x16xf32>
    %342 = arith.addf %336, %341 : vector<8x16xf32>
    %cst_115 = arith.constant 2.000000e-01 : f32
    %343 = vector.broadcast %cst_115 : f32 to vector<8x16xf32>
    %344 = arith.subf %0, %343 : vector<8x16xf32>
    %cst_116 = arith.constant 0.833333313 : f32
    %345 = vector.broadcast %cst_116 : f32 to vector<8x16xf32>
    %346 = arith.mulf %344, %345 : vector<8x16xf32>
    %347 = arith.mulf %346, %254 : vector<8x16xf32>
    %cst_117 = arith.constant 1.800000e+00 : f32
    %348 = vector.broadcast %cst_117 : f32 to vector<8x16xf32>
    %349 = arith.subf %348, %0 : vector<8x16xf32>
    %cst_118 = arith.constant 0.833333313 : f32
    %350 = vector.broadcast %cst_118 : f32 to vector<8x16xf32>
    %351 = arith.mulf %349, %350 : vector<8x16xf32>
    %352 = arith.mulf %351, %265 : vector<8x16xf32>
    %353 = arith.addf %347, %352 : vector<8x16xf32>
    %cst_119 = arith.constant 6.000000e-01 : f32
    %354 = vector.broadcast %cst_119 : f32 to vector<8x16xf32>
    %355 = arith.subf %0, %354 : vector<8x16xf32>
    %cst_120 = arith.constant 0.833333313 : f32
    %356 = vector.broadcast %cst_120 : f32 to vector<8x16xf32>
    %357 = arith.mulf %355, %356 : vector<8x16xf32>
    %358 = arith.mulf %357, %265 : vector<8x16xf32>
    %cst_121 = arith.constant 2.200000e+00 : f32
    %359 = vector.broadcast %cst_121 : f32 to vector<8x16xf32>
    %360 = arith.subf %359, %0 : vector<8x16xf32>
    %cst_122 = arith.constant 0.833333313 : f32
    %361 = vector.broadcast %cst_122 : f32 to vector<8x16xf32>
    %362 = arith.mulf %360, %361 : vector<8x16xf32>
    %363 = arith.mulf %362, %276 : vector<8x16xf32>
    %364 = arith.addf %358, %363 : vector<8x16xf32>
    %365 = tpu.concatenate %8, %287, %298, %309, %320, %331, %342, %353, %364 in 1 : vector<8x16xf32>, vector<8x16xf32>, vector<8x16xf32>, vector<8x16xf32>, vector<8x16xf32>, vector<8x16xf32>, vector<8x16xf32>, vector<8x16xf32>, vector<8x16xf32> -> vector<8x144xf32>
    %366 = arith.truncf %365 : vector<8x144xf32> to vector<8x144xbf16>
    %c0_123 = arith.constant 0 : index
    %c0_124 = arith.constant 0 : index
    %367 = vector.load %arg2[%c0_123, %c0_124] : memref<144x32xbf16, #tpu.memory_space<vmem>>, vector<144x32xbf16>
    %cst_125 = arith.constant dense<0.000000e+00> : vector<8x32xf32>
    %368 = tpu.matmul %366, %367, %cst_125 {dimension_numbers = #tpu.dot_dimension_numbers<[1], [0], [0], [1], [0, 0, 1, 1], [], []>} : vector<8x144xbf16>, vector<144x32xbf16>, vector<8x32xf32> -> vector<8x32xf32>
    %cst_126 = arith.constant 5.000000e-01 : f32
    %369 = vector.broadcast %cst_126 : f32 to vector<8x32xf32>
    %370 = arith.mulf %369, %368 : vector<8x32xf32>
    %cst_127 = arith.constant 5.000000e-01 : f32
    %371 = vector.broadcast %cst_127 : f32 to vector<8x32xf32>
    %372 = arith.mulf %371, %368 : vector<8x32xf32>
    %373 = math.tanh %372 : vector<8x32xf32>
    %cst_128 = arith.constant 1.000000e+00 : f32
    %374 = vector.broadcast %cst_128 : f32 to vector<8x32xf32>
    %375 = arith.addf %374, %373 : vector<8x32xf32>
    %376 = arith.mulf %370, %375 : vector<8x32xf32>
    %cst_129 = arith.constant -2.200000e+00 : f32
    %377 = vector.broadcast %cst_129 : f32 to vector<8x32xf32>
    %378 = arith.cmpf oge, %368, %377 : vector<8x32xf32>
    %379 = arith.extui %378 : vector<8x32xi1> to vector<8x32xi32>
    %380 = arith.sitofp %379 : vector<8x32xi32> to vector<8x32xf32>
    %cst_130 = arith.constant -1.800000e+00 : f32
    %381 = vector.broadcast %cst_130 : f32 to vector<8x32xf32>
    %382 = arith.cmpf oge, %368, %381 : vector<8x32xf32>
    %383 = arith.extui %382 : vector<8x32xi1> to vector<8x32xi32>
    %384 = arith.sitofp %383 : vector<8x32xi32> to vector<8x32xf32>
    %cst_131 = arith.constant -1.400000e+00 : f32
    %385 = vector.broadcast %cst_131 : f32 to vector<8x32xf32>
    %386 = arith.cmpf oge, %368, %385 : vector<8x32xf32>
    %387 = arith.extui %386 : vector<8x32xi1> to vector<8x32xi32>
    %388 = arith.sitofp %387 : vector<8x32xi32> to vector<8x32xf32>
    %cst_132 = arith.constant -1.000000e+00 : f32
    %389 = vector.broadcast %cst_132 : f32 to vector<8x32xf32>
    %390 = arith.cmpf oge, %368, %389 : vector<8x32xf32>
    %391 = arith.extui %390 : vector<8x32xi1> to vector<8x32xi32>
    %392 = arith.sitofp %391 : vector<8x32xi32> to vector<8x32xf32>
    %cst_133 = arith.constant -6.000000e-01 : f32
    %393 = vector.broadcast %cst_133 : f32 to vector<8x32xf32>
    %394 = arith.cmpf oge, %368, %393 : vector<8x32xf32>
    %395 = arith.extui %394 : vector<8x32xi1> to vector<8x32xi32>
    %396 = arith.sitofp %395 : vector<8x32xi32> to vector<8x32xf32>
    %cst_134 = arith.constant -2.000000e-01 : f32
    %397 = vector.broadcast %cst_134 : f32 to vector<8x32xf32>
    %398 = arith.cmpf oge, %368, %397 : vector<8x32xf32>
    %399 = arith.extui %398 : vector<8x32xi1> to vector<8x32xi32>
    %400 = arith.sitofp %399 : vector<8x32xi32> to vector<8x32xf32>
    %cst_135 = arith.constant 2.000000e-01 : f32
    %401 = vector.broadcast %cst_135 : f32 to vector<8x32xf32>
    %402 = arith.cmpf oge, %368, %401 : vector<8x32xf32>
    %403 = arith.extui %402 : vector<8x32xi1> to vector<8x32xi32>
    %404 = arith.sitofp %403 : vector<8x32xi32> to vector<8x32xf32>
    %cst_136 = arith.constant 6.000000e-01 : f32
    %405 = vector.broadcast %cst_136 : f32 to vector<8x32xf32>
    %406 = arith.cmpf oge, %368, %405 : vector<8x32xf32>
    %407 = arith.extui %406 : vector<8x32xi1> to vector<8x32xi32>
    %408 = arith.sitofp %407 : vector<8x32xi32> to vector<8x32xf32>
    %cst_137 = arith.constant 1.000000e+00 : f32
    %409 = vector.broadcast %cst_137 : f32 to vector<8x32xf32>
    %410 = arith.cmpf oge, %368, %409 : vector<8x32xf32>
    %411 = arith.extui %410 : vector<8x32xi1> to vector<8x32xi32>
    %412 = arith.sitofp %411 : vector<8x32xi32> to vector<8x32xf32>
    %cst_138 = arith.constant 1.400000e+00 : f32
    %413 = vector.broadcast %cst_138 : f32 to vector<8x32xf32>
    %414 = arith.cmpf oge, %368, %413 : vector<8x32xf32>
    %415 = arith.extui %414 : vector<8x32xi1> to vector<8x32xi32>
    %416 = arith.sitofp %415 : vector<8x32xi32> to vector<8x32xf32>
    %cst_139 = arith.constant 1.800000e+00 : f32
    %417 = vector.broadcast %cst_139 : f32 to vector<8x32xf32>
    %418 = arith.cmpf oge, %368, %417 : vector<8x32xf32>
    %419 = arith.extui %418 : vector<8x32xi1> to vector<8x32xi32>
    %420 = arith.sitofp %419 : vector<8x32xi32> to vector<8x32xf32>
    %cst_140 = arith.constant 2.200000e+00 : f32
    %421 = vector.broadcast %cst_140 : f32 to vector<8x32xf32>
    %422 = arith.cmpf oge, %368, %421 : vector<8x32xf32>
    %423 = arith.extui %422 : vector<8x32xi1> to vector<8x32xi32>
    %424 = arith.sitofp %423 : vector<8x32xi32> to vector<8x32xf32>
    %425 = arith.subf %380, %384 : vector<8x32xf32>
    %426 = arith.subf %384, %388 : vector<8x32xf32>
    %427 = arith.subf %388, %392 : vector<8x32xf32>
    %428 = arith.subf %392, %396 : vector<8x32xf32>
    %429 = arith.subf %396, %400 : vector<8x32xf32>
    %430 = arith.subf %400, %404 : vector<8x32xf32>
    %431 = arith.subf %404, %408 : vector<8x32xf32>
    %432 = arith.subf %408, %412 : vector<8x32xf32>
    %433 = arith.subf %412, %416 : vector<8x32xf32>
    %434 = arith.subf %416, %420 : vector<8x32xf32>
    %435 = arith.subf %420, %424 : vector<8x32xf32>
    %cst_141 = arith.constant -2.200000e+00 : f32
    %436 = vector.broadcast %cst_141 : f32 to vector<8x32xf32>
    %437 = arith.subf %368, %436 : vector<8x32xf32>
    %cst_142 = arith.constant 2.500000e+00 : f32
    %438 = vector.broadcast %cst_142 : f32 to vector<8x32xf32>
    %439 = arith.mulf %437, %438 : vector<8x32xf32>
    %440 = arith.mulf %439, %425 : vector<8x32xf32>
    %cst_143 = arith.constant -1.400000e+00 : f32
    %441 = vector.broadcast %cst_143 : f32 to vector<8x32xf32>
    %442 = arith.subf %441, %368 : vector<8x32xf32>
    %cst_144 = arith.constant 2.500000e+00 : f32
    %443 = vector.broadcast %cst_144 : f32 to vector<8x32xf32>
    %444 = arith.mulf %442, %443 : vector<8x32xf32>
    %445 = arith.mulf %444, %426 : vector<8x32xf32>
    %446 = arith.addf %440, %445 : vector<8x32xf32>
    %cst_145 = arith.constant -1.800000e+00 : f32
    %447 = vector.broadcast %cst_145 : f32 to vector<8x32xf32>
    %448 = arith.subf %368, %447 : vector<8x32xf32>
    %cst_146 = arith.constant 2.500000e+00 : f32
    %449 = vector.broadcast %cst_146 : f32 to vector<8x32xf32>
    %450 = arith.mulf %448, %449 : vector<8x32xf32>
    %451 = arith.mulf %450, %426 : vector<8x32xf32>
    %cst_147 = arith.constant -1.000000e+00 : f32
    %452 = vector.broadcast %cst_147 : f32 to vector<8x32xf32>
    %453 = arith.subf %452, %368 : vector<8x32xf32>
    %cst_148 = arith.constant 2.500000e+00 : f32
    %454 = vector.broadcast %cst_148 : f32 to vector<8x32xf32>
    %455 = arith.mulf %453, %454 : vector<8x32xf32>
    %456 = arith.mulf %455, %427 : vector<8x32xf32>
    %457 = arith.addf %451, %456 : vector<8x32xf32>
    %cst_149 = arith.constant -1.400000e+00 : f32
    %458 = vector.broadcast %cst_149 : f32 to vector<8x32xf32>
    %459 = arith.subf %368, %458 : vector<8x32xf32>
    %cst_150 = arith.constant 2.500000e+00 : f32
    %460 = vector.broadcast %cst_150 : f32 to vector<8x32xf32>
    %461 = arith.mulf %459, %460 : vector<8x32xf32>
    %462 = arith.mulf %461, %427 : vector<8x32xf32>
    %cst_151 = arith.constant -6.000000e-01 : f32
    %463 = vector.broadcast %cst_151 : f32 to vector<8x32xf32>
    %464 = arith.subf %463, %368 : vector<8x32xf32>
    %cst_152 = arith.constant 2.500000e+00 : f32
    %465 = vector.broadcast %cst_152 : f32 to vector<8x32xf32>
    %466 = arith.mulf %464, %465 : vector<8x32xf32>
    %467 = arith.mulf %466, %428 : vector<8x32xf32>
    %468 = arith.addf %462, %467 : vector<8x32xf32>
    %cst_153 = arith.constant -1.000000e+00 : f32
    %469 = vector.broadcast %cst_153 : f32 to vector<8x32xf32>
    %470 = arith.subf %368, %469 : vector<8x32xf32>
    %cst_154 = arith.constant 2.500000e+00 : f32
    %471 = vector.broadcast %cst_154 : f32 to vector<8x32xf32>
    %472 = arith.mulf %470, %471 : vector<8x32xf32>
    %473 = arith.mulf %472, %428 : vector<8x32xf32>
    %cst_155 = arith.constant -2.000000e-01 : f32
    %474 = vector.broadcast %cst_155 : f32 to vector<8x32xf32>
    %475 = arith.subf %474, %368 : vector<8x32xf32>
    %cst_156 = arith.constant 2.500000e+00 : f32
    %476 = vector.broadcast %cst_156 : f32 to vector<8x32xf32>
    %477 = arith.mulf %475, %476 : vector<8x32xf32>
    %478 = arith.mulf %477, %429 : vector<8x32xf32>
    %479 = arith.addf %473, %478 : vector<8x32xf32>
    %cst_157 = arith.constant -6.000000e-01 : f32
    %480 = vector.broadcast %cst_157 : f32 to vector<8x32xf32>
    %481 = arith.subf %368, %480 : vector<8x32xf32>
    %cst_158 = arith.constant 2.500000e+00 : f32
    %482 = vector.broadcast %cst_158 : f32 to vector<8x32xf32>
    %483 = arith.mulf %481, %482 : vector<8x32xf32>
    %484 = arith.mulf %483, %429 : vector<8x32xf32>
    %cst_159 = arith.constant 2.000000e-01 : f32
    %485 = vector.broadcast %cst_159 : f32 to vector<8x32xf32>
    %486 = arith.subf %485, %368 : vector<8x32xf32>
    %cst_160 = arith.constant 2.500000e+00 : f32
    %487 = vector.broadcast %cst_160 : f32 to vector<8x32xf32>
    %488 = arith.mulf %486, %487 : vector<8x32xf32>
    %489 = arith.mulf %488, %430 : vector<8x32xf32>
    %490 = arith.addf %484, %489 : vector<8x32xf32>
    %cst_161 = arith.constant -2.000000e-01 : f32
    %491 = vector.broadcast %cst_161 : f32 to vector<8x32xf32>
    %492 = arith.subf %368, %491 : vector<8x32xf32>
    %cst_162 = arith.constant 2.500000e+00 : f32
    %493 = vector.broadcast %cst_162 : f32 to vector<8x32xf32>
    %494 = arith.mulf %492, %493 : vector<8x32xf32>
    %495 = arith.mulf %494, %430 : vector<8x32xf32>
    %cst_163 = arith.constant 6.000000e-01 : f32
    %496 = vector.broadcast %cst_163 : f32 to vector<8x32xf32>
    %497 = arith.subf %496, %368 : vector<8x32xf32>
    %cst_164 = arith.constant 2.500000e+00 : f32
    %498 = vector.broadcast %cst_164 : f32 to vector<8x32xf32>
    %499 = arith.mulf %497, %498 : vector<8x32xf32>
    %500 = arith.mulf %499, %431 : vector<8x32xf32>
    %501 = arith.addf %495, %500 : vector<8x32xf32>
    %cst_165 = arith.constant 2.000000e-01 : f32
    %502 = vector.broadcast %cst_165 : f32 to vector<8x32xf32>
    %503 = arith.subf %368, %502 : vector<8x32xf32>
    %cst_166 = arith.constant 2.500000e+00 : f32
    %504 = vector.broadcast %cst_166 : f32 to vector<8x32xf32>
    %505 = arith.mulf %503, %504 : vector<8x32xf32>
    %506 = arith.mulf %505, %431 : vector<8x32xf32>
    %cst_167 = arith.constant 1.000000e+00 : f32
    %507 = vector.broadcast %cst_167 : f32 to vector<8x32xf32>
    %508 = arith.subf %507, %368 : vector<8x32xf32>
    %cst_168 = arith.constant 2.500000e+00 : f32
    %509 = vector.broadcast %cst_168 : f32 to vector<8x32xf32>
    %510 = arith.mulf %508, %509 : vector<8x32xf32>
    %511 = arith.mulf %510, %432 : vector<8x32xf32>
    %512 = arith.addf %506, %511 : vector<8x32xf32>
    %cst_169 = arith.constant 6.000000e-01 : f32
    %513 = vector.broadcast %cst_169 : f32 to vector<8x32xf32>
    %514 = arith.subf %368, %513 : vector<8x32xf32>
    %cst_170 = arith.constant 2.500000e+00 : f32
    %515 = vector.broadcast %cst_170 : f32 to vector<8x32xf32>
    %516 = arith.mulf %514, %515 : vector<8x32xf32>
    %517 = arith.mulf %516, %432 : vector<8x32xf32>
    %cst_171 = arith.constant 1.400000e+00 : f32
    %518 = vector.broadcast %cst_171 : f32 to vector<8x32xf32>
    %519 = arith.subf %518, %368 : vector<8x32xf32>
    %cst_172 = arith.constant 2.500000e+00 : f32
    %520 = vector.broadcast %cst_172 : f32 to vector<8x32xf32>
    %521 = arith.mulf %519, %520 : vector<8x32xf32>
    %522 = arith.mulf %521, %433 : vector<8x32xf32>
    %523 = arith.addf %517, %522 : vector<8x32xf32>
    %cst_173 = arith.constant 1.000000e+00 : f32
    %524 = vector.broadcast %cst_173 : f32 to vector<8x32xf32>
    %525 = arith.subf %368, %524 : vector<8x32xf32>
    %cst_174 = arith.constant 2.500000e+00 : f32
    %526 = vector.broadcast %cst_174 : f32 to vector<8x32xf32>
    %527 = arith.mulf %525, %526 : vector<8x32xf32>
    %528 = arith.mulf %527, %433 : vector<8x32xf32>
    %cst_175 = arith.constant 1.800000e+00 : f32
    %529 = vector.broadcast %cst_175 : f32 to vector<8x32xf32>
    %530 = arith.subf %529, %368 : vector<8x32xf32>
    %cst_176 = arith.constant 2.500000e+00 : f32
    %531 = vector.broadcast %cst_176 : f32 to vector<8x32xf32>
    %532 = arith.mulf %530, %531 : vector<8x32xf32>
    %533 = arith.mulf %532, %434 : vector<8x32xf32>
    %534 = arith.addf %528, %533 : vector<8x32xf32>
    %cst_177 = arith.constant 1.400000e+00 : f32
    %535 = vector.broadcast %cst_177 : f32 to vector<8x32xf32>
    %536 = arith.subf %368, %535 : vector<8x32xf32>
    %cst_178 = arith.constant 2.500000e+00 : f32
    %537 = vector.broadcast %cst_178 : f32 to vector<8x32xf32>
    %538 = arith.mulf %536, %537 : vector<8x32xf32>
    %539 = arith.mulf %538, %434 : vector<8x32xf32>
    %cst_179 = arith.constant 2.200000e+00 : f32
    %540 = vector.broadcast %cst_179 : f32 to vector<8x32xf32>
    %541 = arith.subf %540, %368 : vector<8x32xf32>
    %cst_180 = arith.constant 2.500000e+00 : f32
    %542 = vector.broadcast %cst_180 : f32 to vector<8x32xf32>
    %543 = arith.mulf %541, %542 : vector<8x32xf32>
    %544 = arith.mulf %543, %435 : vector<8x32xf32>
    %545 = arith.addf %539, %544 : vector<8x32xf32>
    %cst_181 = arith.constant -2.200000e+00 : f32
    %546 = vector.broadcast %cst_181 : f32 to vector<8x32xf32>
    %547 = arith.subf %368, %546 : vector<8x32xf32>
    %cst_182 = arith.constant 1.250000e+00 : f32
    %548 = vector.broadcast %cst_182 : f32 to vector<8x32xf32>
    %549 = arith.mulf %547, %548 : vector<8x32xf32>
    %550 = arith.mulf %549, %446 : vector<8x32xf32>
    %cst_183 = arith.constant -1.000000e+00 : f32
    %551 = vector.broadcast %cst_183 : f32 to vector<8x32xf32>
    %552 = arith.subf %551, %368 : vector<8x32xf32>
    %cst_184 = arith.constant 1.250000e+00 : f32
    %553 = vector.broadcast %cst_184 : f32 to vector<8x32xf32>
    %554 = arith.mulf %552, %553 : vector<8x32xf32>
    %555 = arith.mulf %554, %457 : vector<8x32xf32>
    %556 = arith.addf %550, %555 : vector<8x32xf32>
    %cst_185 = arith.constant -1.800000e+00 : f32
    %557 = vector.broadcast %cst_185 : f32 to vector<8x32xf32>
    %558 = arith.subf %368, %557 : vector<8x32xf32>
    %cst_186 = arith.constant 1.250000e+00 : f32
    %559 = vector.broadcast %cst_186 : f32 to vector<8x32xf32>
    %560 = arith.mulf %558, %559 : vector<8x32xf32>
    %561 = arith.mulf %560, %457 : vector<8x32xf32>
    %cst_187 = arith.constant -6.000000e-01 : f32
    %562 = vector.broadcast %cst_187 : f32 to vector<8x32xf32>
    %563 = arith.subf %562, %368 : vector<8x32xf32>
    %cst_188 = arith.constant 1.250000e+00 : f32
    %564 = vector.broadcast %cst_188 : f32 to vector<8x32xf32>
    %565 = arith.mulf %563, %564 : vector<8x32xf32>
    %566 = arith.mulf %565, %468 : vector<8x32xf32>
    %567 = arith.addf %561, %566 : vector<8x32xf32>
    %cst_189 = arith.constant -1.400000e+00 : f32
    %568 = vector.broadcast %cst_189 : f32 to vector<8x32xf32>
    %569 = arith.subf %368, %568 : vector<8x32xf32>
    %cst_190 = arith.constant 1.250000e+00 : f32
    %570 = vector.broadcast %cst_190 : f32 to vector<8x32xf32>
    %571 = arith.mulf %569, %570 : vector<8x32xf32>
    %572 = arith.mulf %571, %468 : vector<8x32xf32>
    %cst_191 = arith.constant -2.000000e-01 : f32
    %573 = vector.broadcast %cst_191 : f32 to vector<8x32xf32>
    %574 = arith.subf %573, %368 : vector<8x32xf32>
    %cst_192 = arith.constant 1.250000e+00 : f32
    %575 = vector.broadcast %cst_192 : f32 to vector<8x32xf32>
    %576 = arith.mulf %574, %575 : vector<8x32xf32>
    %577 = arith.mulf %576, %479 : vector<8x32xf32>
    %578 = arith.addf %572, %577 : vector<8x32xf32>
    %cst_193 = arith.constant -1.000000e+00 : f32
    %579 = vector.broadcast %cst_193 : f32 to vector<8x32xf32>
    %580 = arith.subf %368, %579 : vector<8x32xf32>
    %cst_194 = arith.constant 1.250000e+00 : f32
    %581 = vector.broadcast %cst_194 : f32 to vector<8x32xf32>
    %582 = arith.mulf %580, %581 : vector<8x32xf32>
    %583 = arith.mulf %582, %479 : vector<8x32xf32>
    %cst_195 = arith.constant 2.000000e-01 : f32
    %584 = vector.broadcast %cst_195 : f32 to vector<8x32xf32>
    %585 = arith.subf %584, %368 : vector<8x32xf32>
    %cst_196 = arith.constant 1.250000e+00 : f32
    %586 = vector.broadcast %cst_196 : f32 to vector<8x32xf32>
    %587 = arith.mulf %585, %586 : vector<8x32xf32>
    %588 = arith.mulf %587, %490 : vector<8x32xf32>
    %589 = arith.addf %583, %588 : vector<8x32xf32>
    %cst_197 = arith.constant -6.000000e-01 : f32
    %590 = vector.broadcast %cst_197 : f32 to vector<8x32xf32>
    %591 = arith.subf %368, %590 : vector<8x32xf32>
    %cst_198 = arith.constant 1.250000e+00 : f32
    %592 = vector.broadcast %cst_198 : f32 to vector<8x32xf32>
    %593 = arith.mulf %591, %592 : vector<8x32xf32>
    %594 = arith.mulf %593, %490 : vector<8x32xf32>
    %cst_199 = arith.constant 6.000000e-01 : f32
    %595 = vector.broadcast %cst_199 : f32 to vector<8x32xf32>
    %596 = arith.subf %595, %368 : vector<8x32xf32>
    %cst_200 = arith.constant 1.250000e+00 : f32
    %597 = vector.broadcast %cst_200 : f32 to vector<8x32xf32>
    %598 = arith.mulf %596, %597 : vector<8x32xf32>
    %599 = arith.mulf %598, %501 : vector<8x32xf32>
    %600 = arith.addf %594, %599 : vector<8x32xf32>
    %cst_201 = arith.constant -2.000000e-01 : f32
    %601 = vector.broadcast %cst_201 : f32 to vector<8x32xf32>
    %602 = arith.subf %368, %601 : vector<8x32xf32>
    %cst_202 = arith.constant 1.250000e+00 : f32
    %603 = vector.broadcast %cst_202 : f32 to vector<8x32xf32>
    %604 = arith.mulf %602, %603 : vector<8x32xf32>
    %605 = arith.mulf %604, %501 : vector<8x32xf32>
    %cst_203 = arith.constant 1.000000e+00 : f32
    %606 = vector.broadcast %cst_203 : f32 to vector<8x32xf32>
    %607 = arith.subf %606, %368 : vector<8x32xf32>
    %cst_204 = arith.constant 1.250000e+00 : f32
    %608 = vector.broadcast %cst_204 : f32 to vector<8x32xf32>
    %609 = arith.mulf %607, %608 : vector<8x32xf32>
    %610 = arith.mulf %609, %512 : vector<8x32xf32>
    %611 = arith.addf %605, %610 : vector<8x32xf32>
    %cst_205 = arith.constant 2.000000e-01 : f32
    %612 = vector.broadcast %cst_205 : f32 to vector<8x32xf32>
    %613 = arith.subf %368, %612 : vector<8x32xf32>
    %cst_206 = arith.constant 1.250000e+00 : f32
    %614 = vector.broadcast %cst_206 : f32 to vector<8x32xf32>
    %615 = arith.mulf %613, %614 : vector<8x32xf32>
    %616 = arith.mulf %615, %512 : vector<8x32xf32>
    %cst_207 = arith.constant 1.400000e+00 : f32
    %617 = vector.broadcast %cst_207 : f32 to vector<8x32xf32>
    %618 = arith.subf %617, %368 : vector<8x32xf32>
    %cst_208 = arith.constant 1.250000e+00 : f32
    %619 = vector.broadcast %cst_208 : f32 to vector<8x32xf32>
    %620 = arith.mulf %618, %619 : vector<8x32xf32>
    %621 = arith.mulf %620, %523 : vector<8x32xf32>
    %622 = arith.addf %616, %621 : vector<8x32xf32>
    %cst_209 = arith.constant 6.000000e-01 : f32
    %623 = vector.broadcast %cst_209 : f32 to vector<8x32xf32>
    %624 = arith.subf %368, %623 : vector<8x32xf32>
    %cst_210 = arith.constant 1.250000e+00 : f32
    %625 = vector.broadcast %cst_210 : f32 to vector<8x32xf32>
    %626 = arith.mulf %624, %625 : vector<8x32xf32>
    %627 = arith.mulf %626, %523 : vector<8x32xf32>
    %cst_211 = arith.constant 1.800000e+00 : f32
    %628 = vector.broadcast %cst_211 : f32 to vector<8x32xf32>
    %629 = arith.subf %628, %368 : vector<8x32xf32>
    %cst_212 = arith.constant 1.250000e+00 : f32
    %630 = vector.broadcast %cst_212 : f32 to vector<8x32xf32>
    %631 = arith.mulf %629, %630 : vector<8x32xf32>
    %632 = arith.mulf %631, %534 : vector<8x32xf32>
    %633 = arith.addf %627, %632 : vector<8x32xf32>
    %cst_213 = arith.constant 1.000000e+00 : f32
    %634 = vector.broadcast %cst_213 : f32 to vector<8x32xf32>
    %635 = arith.subf %368, %634 : vector<8x32xf32>
    %cst_214 = arith.constant 1.250000e+00 : f32
    %636 = vector.broadcast %cst_214 : f32 to vector<8x32xf32>
    %637 = arith.mulf %635, %636 : vector<8x32xf32>
    %638 = arith.mulf %637, %534 : vector<8x32xf32>
    %cst_215 = arith.constant 2.200000e+00 : f32
    %639 = vector.broadcast %cst_215 : f32 to vector<8x32xf32>
    %640 = arith.subf %639, %368 : vector<8x32xf32>
    %cst_216 = arith.constant 1.250000e+00 : f32
    %641 = vector.broadcast %cst_216 : f32 to vector<8x32xf32>
    %642 = arith.mulf %640, %641 : vector<8x32xf32>
    %643 = arith.mulf %642, %545 : vector<8x32xf32>
    %644 = arith.addf %638, %643 : vector<8x32xf32>
    %cst_217 = arith.constant -2.200000e+00 : f32
    %645 = vector.broadcast %cst_217 : f32 to vector<8x32xf32>
    %646 = arith.subf %368, %645 : vector<8x32xf32>
    %cst_218 = arith.constant 0.833333313 : f32
    %647 = vector.broadcast %cst_218 : f32 to vector<8x32xf32>
    %648 = arith.mulf %646, %647 : vector<8x32xf32>
    %649 = arith.mulf %648, %556 : vector<8x32xf32>
    %cst_219 = arith.constant -6.000000e-01 : f32
    %650 = vector.broadcast %cst_219 : f32 to vector<8x32xf32>
    %651 = arith.subf %650, %368 : vector<8x32xf32>
    %cst_220 = arith.constant 0.833333313 : f32
    %652 = vector.broadcast %cst_220 : f32 to vector<8x32xf32>
    %653 = arith.mulf %651, %652 : vector<8x32xf32>
    %654 = arith.mulf %653, %567 : vector<8x32xf32>
    %655 = arith.addf %649, %654 : vector<8x32xf32>
    %cst_221 = arith.constant -1.800000e+00 : f32
    %656 = vector.broadcast %cst_221 : f32 to vector<8x32xf32>
    %657 = arith.subf %368, %656 : vector<8x32xf32>
    %cst_222 = arith.constant 0.833333313 : f32
    %658 = vector.broadcast %cst_222 : f32 to vector<8x32xf32>
    %659 = arith.mulf %657, %658 : vector<8x32xf32>
    %660 = arith.mulf %659, %567 : vector<8x32xf32>
    %cst_223 = arith.constant -2.000000e-01 : f32
    %661 = vector.broadcast %cst_223 : f32 to vector<8x32xf32>
    %662 = arith.subf %661, %368 : vector<8x32xf32>
    %cst_224 = arith.constant 0.833333313 : f32
    %663 = vector.broadcast %cst_224 : f32 to vector<8x32xf32>
    %664 = arith.mulf %662, %663 : vector<8x32xf32>
    %665 = arith.mulf %664, %578 : vector<8x32xf32>
    %666 = arith.addf %660, %665 : vector<8x32xf32>
    %cst_225 = arith.constant -1.400000e+00 : f32
    %667 = vector.broadcast %cst_225 : f32 to vector<8x32xf32>
    %668 = arith.subf %368, %667 : vector<8x32xf32>
    %cst_226 = arith.constant 0.833333313 : f32
    %669 = vector.broadcast %cst_226 : f32 to vector<8x32xf32>
    %670 = arith.mulf %668, %669 : vector<8x32xf32>
    %671 = arith.mulf %670, %578 : vector<8x32xf32>
    %cst_227 = arith.constant 2.000000e-01 : f32
    %672 = vector.broadcast %cst_227 : f32 to vector<8x32xf32>
    %673 = arith.subf %672, %368 : vector<8x32xf32>
    %cst_228 = arith.constant 0.833333313 : f32
    %674 = vector.broadcast %cst_228 : f32 to vector<8x32xf32>
    %675 = arith.mulf %673, %674 : vector<8x32xf32>
    %676 = arith.mulf %675, %589 : vector<8x32xf32>
    %677 = arith.addf %671, %676 : vector<8x32xf32>
    %cst_229 = arith.constant -1.000000e+00 : f32
    %678 = vector.broadcast %cst_229 : f32 to vector<8x32xf32>
    %679 = arith.subf %368, %678 : vector<8x32xf32>
    %cst_230 = arith.constant 0.833333313 : f32
    %680 = vector.broadcast %cst_230 : f32 to vector<8x32xf32>
    %681 = arith.mulf %679, %680 : vector<8x32xf32>
    %682 = arith.mulf %681, %589 : vector<8x32xf32>
    %cst_231 = arith.constant 6.000000e-01 : f32
    %683 = vector.broadcast %cst_231 : f32 to vector<8x32xf32>
    %684 = arith.subf %683, %368 : vector<8x32xf32>
    %cst_232 = arith.constant 0.833333313 : f32
    %685 = vector.broadcast %cst_232 : f32 to vector<8x32xf32>
    %686 = arith.mulf %684, %685 : vector<8x32xf32>
    %687 = arith.mulf %686, %600 : vector<8x32xf32>
    %688 = arith.addf %682, %687 : vector<8x32xf32>
    %cst_233 = arith.constant -6.000000e-01 : f32
    %689 = vector.broadcast %cst_233 : f32 to vector<8x32xf32>
    %690 = arith.subf %368, %689 : vector<8x32xf32>
    %cst_234 = arith.constant 0.833333313 : f32
    %691 = vector.broadcast %cst_234 : f32 to vector<8x32xf32>
    %692 = arith.mulf %690, %691 : vector<8x32xf32>
    %693 = arith.mulf %692, %600 : vector<8x32xf32>
    %cst_235 = arith.constant 1.000000e+00 : f32
    %694 = vector.broadcast %cst_235 : f32 to vector<8x32xf32>
    %695 = arith.subf %694, %368 : vector<8x32xf32>
    %cst_236 = arith.constant 0.833333313 : f32
    %696 = vector.broadcast %cst_236 : f32 to vector<8x32xf32>
    %697 = arith.mulf %695, %696 : vector<8x32xf32>
    %698 = arith.mulf %697, %611 : vector<8x32xf32>
    %699 = arith.addf %693, %698 : vector<8x32xf32>
    %cst_237 = arith.constant -2.000000e-01 : f32
    %700 = vector.broadcast %cst_237 : f32 to vector<8x32xf32>
    %701 = arith.subf %368, %700 : vector<8x32xf32>
    %cst_238 = arith.constant 0.833333313 : f32
    %702 = vector.broadcast %cst_238 : f32 to vector<8x32xf32>
    %703 = arith.mulf %701, %702 : vector<8x32xf32>
    %704 = arith.mulf %703, %611 : vector<8x32xf32>
    %cst_239 = arith.constant 1.400000e+00 : f32
    %705 = vector.broadcast %cst_239 : f32 to vector<8x32xf32>
    %706 = arith.subf %705, %368 : vector<8x32xf32>
    %cst_240 = arith.constant 0.833333313 : f32
    %707 = vector.broadcast %cst_240 : f32 to vector<8x32xf32>
    %708 = arith.mulf %706, %707 : vector<8x32xf32>
    %709 = arith.mulf %708, %622 : vector<8x32xf32>
    %710 = arith.addf %704, %709 : vector<8x32xf32>
    %cst_241 = arith.constant 2.000000e-01 : f32
    %711 = vector.broadcast %cst_241 : f32 to vector<8x32xf32>
    %712 = arith.subf %368, %711 : vector<8x32xf32>
    %cst_242 = arith.constant 0.833333313 : f32
    %713 = vector.broadcast %cst_242 : f32 to vector<8x32xf32>
    %714 = arith.mulf %712, %713 : vector<8x32xf32>
    %715 = arith.mulf %714, %622 : vector<8x32xf32>
    %cst_243 = arith.constant 1.800000e+00 : f32
    %716 = vector.broadcast %cst_243 : f32 to vector<8x32xf32>
    %717 = arith.subf %716, %368 : vector<8x32xf32>
    %cst_244 = arith.constant 0.833333313 : f32
    %718 = vector.broadcast %cst_244 : f32 to vector<8x32xf32>
    %719 = arith.mulf %717, %718 : vector<8x32xf32>
    %720 = arith.mulf %719, %633 : vector<8x32xf32>
    %721 = arith.addf %715, %720 : vector<8x32xf32>
    %cst_245 = arith.constant 6.000000e-01 : f32
    %722 = vector.broadcast %cst_245 : f32 to vector<8x32xf32>
    %723 = arith.subf %368, %722 : vector<8x32xf32>
    %cst_246 = arith.constant 0.833333313 : f32
    %724 = vector.broadcast %cst_246 : f32 to vector<8x32xf32>
    %725 = arith.mulf %723, %724 : vector<8x32xf32>
    %726 = arith.mulf %725, %633 : vector<8x32xf32>
    %cst_247 = arith.constant 2.200000e+00 : f32
    %727 = vector.broadcast %cst_247 : f32 to vector<8x32xf32>
    %728 = arith.subf %727, %368 : vector<8x32xf32>
    %cst_248 = arith.constant 0.833333313 : f32
    %729 = vector.broadcast %cst_248 : f32 to vector<8x32xf32>
    %730 = arith.mulf %728, %729 : vector<8x32xf32>
    %731 = arith.mulf %730, %644 : vector<8x32xf32>
    %732 = arith.addf %726, %731 : vector<8x32xf32>
    %733 = tpu.concatenate %376, %655, %666, %677, %688, %699, %710, %721, %732 in 1 : vector<8x32xf32>, vector<8x32xf32>, vector<8x32xf32>, vector<8x32xf32>, vector<8x32xf32>, vector<8x32xf32>, vector<8x32xf32>, vector<8x32xf32>, vector<8x32xf32> -> vector<8x288xf32>
    %734 = arith.truncf %733 : vector<8x288xf32> to vector<8x288xbf16>
    %c0_249 = arith.constant 0 : index
    %c0_250 = arith.constant 0 : index
    %735 = vector.load %arg3[%c0_249, %c0_250] : memref<288x32xbf16, #tpu.memory_space<vmem>>, vector<288x32xbf16>
    %cst_251 = arith.constant dense<0.000000e+00> : vector<8x32xf32>
    %736 = tpu.matmul %734, %735, %cst_251 {dimension_numbers = #tpu.dot_dimension_numbers<[1], [0], [0], [1], [0, 0, 1, 1], [], []>} : vector<8x288xbf16>, vector<288x32xbf16>, vector<8x32xf32> -> vector<8x32xf32>
    %cst_252 = arith.constant 5.000000e-01 : f32
    %737 = vector.broadcast %cst_252 : f32 to vector<8x32xf32>
    %738 = arith.mulf %737, %736 : vector<8x32xf32>
    %cst_253 = arith.constant 5.000000e-01 : f32
    %739 = vector.broadcast %cst_253 : f32 to vector<8x32xf32>
    %740 = arith.mulf %739, %736 : vector<8x32xf32>
    %741 = math.tanh %740 : vector<8x32xf32>
    %cst_254 = arith.constant 1.000000e+00 : f32
    %742 = vector.broadcast %cst_254 : f32 to vector<8x32xf32>
    %743 = arith.addf %742, %741 : vector<8x32xf32>
    %744 = arith.mulf %738, %743 : vector<8x32xf32>
    %cst_255 = arith.constant -2.200000e+00 : f32
    %745 = vector.broadcast %cst_255 : f32 to vector<8x32xf32>
    %746 = arith.cmpf oge, %736, %745 : vector<8x32xf32>
    %747 = arith.extui %746 : vector<8x32xi1> to vector<8x32xi32>
    %748 = arith.sitofp %747 : vector<8x32xi32> to vector<8x32xf32>
    %cst_256 = arith.constant -1.800000e+00 : f32
    %749 = vector.broadcast %cst_256 : f32 to vector<8x32xf32>
    %750 = arith.cmpf oge, %736, %749 : vector<8x32xf32>
    %751 = arith.extui %750 : vector<8x32xi1> to vector<8x32xi32>
    %752 = arith.sitofp %751 : vector<8x32xi32> to vector<8x32xf32>
    %cst_257 = arith.constant -1.400000e+00 : f32
    %753 = vector.broadcast %cst_257 : f32 to vector<8x32xf32>
    %754 = arith.cmpf oge, %736, %753 : vector<8x32xf32>
    %755 = arith.extui %754 : vector<8x32xi1> to vector<8x32xi32>
    %756 = arith.sitofp %755 : vector<8x32xi32> to vector<8x32xf32>
    %cst_258 = arith.constant -1.000000e+00 : f32
    %757 = vector.broadcast %cst_258 : f32 to vector<8x32xf32>
    %758 = arith.cmpf oge, %736, %757 : vector<8x32xf32>
    %759 = arith.extui %758 : vector<8x32xi1> to vector<8x32xi32>
    %760 = arith.sitofp %759 : vector<8x32xi32> to vector<8x32xf32>
    %cst_259 = arith.constant -6.000000e-01 : f32
    %761 = vector.broadcast %cst_259 : f32 to vector<8x32xf32>
    %762 = arith.cmpf oge, %736, %761 : vector<8x32xf32>
    %763 = arith.extui %762 : vector<8x32xi1> to vector<8x32xi32>
    %764 = arith.sitofp %763 : vector<8x32xi32> to vector<8x32xf32>
    %cst_260 = arith.constant -2.000000e-01 : f32
    %765 = vector.broadcast %cst_260 : f32 to vector<8x32xf32>
    %766 = arith.cmpf oge, %736, %765 : vector<8x32xf32>
    %767 = arith.extui %766 : vector<8x32xi1> to vector<8x32xi32>
    %768 = arith.sitofp %767 : vector<8x32xi32> to vector<8x32xf32>
    %cst_261 = arith.constant 2.000000e-01 : f32
    %769 = vector.broadcast %cst_261 : f32 to vector<8x32xf32>
    %770 = arith.cmpf oge, %736, %769 : vector<8x32xf32>
    %771 = arith.extui %770 : vector<8x32xi1> to vector<8x32xi32>
    %772 = arith.sitofp %771 : vector<8x32xi32> to vector<8x32xf32>
    %cst_262 = arith.constant 6.000000e-01 : f32
    %773 = vector.broadcast %cst_262 : f32 to vector<8x32xf32>
    %774 = arith.cmpf oge, %736, %773 : vector<8x32xf32>
    %775 = arith.extui %774 : vector<8x32xi1> to vector<8x32xi32>
    %776 = arith.sitofp %775 : vector<8x32xi32> to vector<8x32xf32>
    %cst_263 = arith.constant 1.000000e+00 : f32
    %777 = vector.broadcast %cst_263 : f32 to vector<8x32xf32>
    %778 = arith.cmpf oge, %736, %777 : vector<8x32xf32>
    %779 = arith.extui %778 : vector<8x32xi1> to vector<8x32xi32>
    %780 = arith.sitofp %779 : vector<8x32xi32> to vector<8x32xf32>
    %cst_264 = arith.constant 1.400000e+00 : f32
    %781 = vector.broadcast %cst_264 : f32 to vector<8x32xf32>
    %782 = arith.cmpf oge, %736, %781 : vector<8x32xf32>
    %783 = arith.extui %782 : vector<8x32xi1> to vector<8x32xi32>
    %784 = arith.sitofp %783 : vector<8x32xi32> to vector<8x32xf32>
    %cst_265 = arith.constant 1.800000e+00 : f32
    %785 = vector.broadcast %cst_265 : f32 to vector<8x32xf32>
    %786 = arith.cmpf oge, %736, %785 : vector<8x32xf32>
    %787 = arith.extui %786 : vector<8x32xi1> to vector<8x32xi32>
    %788 = arith.sitofp %787 : vector<8x32xi32> to vector<8x32xf32>
    %cst_266 = arith.constant 2.200000e+00 : f32
    %789 = vector.broadcast %cst_266 : f32 to vector<8x32xf32>
    %790 = arith.cmpf oge, %736, %789 : vector<8x32xf32>
    %791 = arith.extui %790 : vector<8x32xi1> to vector<8x32xi32>
    %792 = arith.sitofp %791 : vector<8x32xi32> to vector<8x32xf32>
    %793 = arith.subf %748, %752 : vector<8x32xf32>
    %794 = arith.subf %752, %756 : vector<8x32xf32>
    %795 = arith.subf %756, %760 : vector<8x32xf32>
    %796 = arith.subf %760, %764 : vector<8x32xf32>
    %797 = arith.subf %764, %768 : vector<8x32xf32>
    %798 = arith.subf %768, %772 : vector<8x32xf32>
    %799 = arith.subf %772, %776 : vector<8x32xf32>
    %800 = arith.subf %776, %780 : vector<8x32xf32>
    %801 = arith.subf %780, %784 : vector<8x32xf32>
    %802 = arith.subf %784, %788 : vector<8x32xf32>
    %803 = arith.subf %788, %792 : vector<8x32xf32>
    %cst_267 = arith.constant -2.200000e+00 : f32
    %804 = vector.broadcast %cst_267 : f32 to vector<8x32xf32>
    %805 = arith.subf %736, %804 : vector<8x32xf32>
    %cst_268 = arith.constant 2.500000e+00 : f32
    %806 = vector.broadcast %cst_268 : f32 to vector<8x32xf32>
    %807 = arith.mulf %805, %806 : vector<8x32xf32>
    %808 = arith.mulf %807, %793 : vector<8x32xf32>
    %cst_269 = arith.constant -1.400000e+00 : f32
    %809 = vector.broadcast %cst_269 : f32 to vector<8x32xf32>
    %810 = arith.subf %809, %736 : vector<8x32xf32>
    %cst_270 = arith.constant 2.500000e+00 : f32
    %811 = vector.broadcast %cst_270 : f32 to vector<8x32xf32>
    %812 = arith.mulf %810, %811 : vector<8x32xf32>
    %813 = arith.mulf %812, %794 : vector<8x32xf32>
    %814 = arith.addf %808, %813 : vector<8x32xf32>
    %cst_271 = arith.constant -1.800000e+00 : f32
    %815 = vector.broadcast %cst_271 : f32 to vector<8x32xf32>
    %816 = arith.subf %736, %815 : vector<8x32xf32>
    %cst_272 = arith.constant 2.500000e+00 : f32
    %817 = vector.broadcast %cst_272 : f32 to vector<8x32xf32>
    %818 = arith.mulf %816, %817 : vector<8x32xf32>
    %819 = arith.mulf %818, %794 : vector<8x32xf32>
    %cst_273 = arith.constant -1.000000e+00 : f32
    %820 = vector.broadcast %cst_273 : f32 to vector<8x32xf32>
    %821 = arith.subf %820, %736 : vector<8x32xf32>
    %cst_274 = arith.constant 2.500000e+00 : f32
    %822 = vector.broadcast %cst_274 : f32 to vector<8x32xf32>
    %823 = arith.mulf %821, %822 : vector<8x32xf32>
    %824 = arith.mulf %823, %795 : vector<8x32xf32>
    %825 = arith.addf %819, %824 : vector<8x32xf32>
    %cst_275 = arith.constant -1.400000e+00 : f32
    %826 = vector.broadcast %cst_275 : f32 to vector<8x32xf32>
    %827 = arith.subf %736, %826 : vector<8x32xf32>
    %cst_276 = arith.constant 2.500000e+00 : f32
    %828 = vector.broadcast %cst_276 : f32 to vector<8x32xf32>
    %829 = arith.mulf %827, %828 : vector<8x32xf32>
    %830 = arith.mulf %829, %795 : vector<8x32xf32>
    %cst_277 = arith.constant -6.000000e-01 : f32
    %831 = vector.broadcast %cst_277 : f32 to vector<8x32xf32>
    %832 = arith.subf %831, %736 : vector<8x32xf32>
    %cst_278 = arith.constant 2.500000e+00 : f32
    %833 = vector.broadcast %cst_278 : f32 to vector<8x32xf32>
    %834 = arith.mulf %832, %833 : vector<8x32xf32>
    %835 = arith.mulf %834, %796 : vector<8x32xf32>
    %836 = arith.addf %830, %835 : vector<8x32xf32>
    %cst_279 = arith.constant -1.000000e+00 : f32
    %837 = vector.broadcast %cst_279 : f32 to vector<8x32xf32>
    %838 = arith.subf %736, %837 : vector<8x32xf32>
    %cst_280 = arith.constant 2.500000e+00 : f32
    %839 = vector.broadcast %cst_280 : f32 to vector<8x32xf32>
    %840 = arith.mulf %838, %839 : vector<8x32xf32>
    %841 = arith.mulf %840, %796 : vector<8x32xf32>
    %cst_281 = arith.constant -2.000000e-01 : f32
    %842 = vector.broadcast %cst_281 : f32 to vector<8x32xf32>
    %843 = arith.subf %842, %736 : vector<8x32xf32>
    %cst_282 = arith.constant 2.500000e+00 : f32
    %844 = vector.broadcast %cst_282 : f32 to vector<8x32xf32>
    %845 = arith.mulf %843, %844 : vector<8x32xf32>
    %846 = arith.mulf %845, %797 : vector<8x32xf32>
    %847 = arith.addf %841, %846 : vector<8x32xf32>
    %cst_283 = arith.constant -6.000000e-01 : f32
    %848 = vector.broadcast %cst_283 : f32 to vector<8x32xf32>
    %849 = arith.subf %736, %848 : vector<8x32xf32>
    %cst_284 = arith.constant 2.500000e+00 : f32
    %850 = vector.broadcast %cst_284 : f32 to vector<8x32xf32>
    %851 = arith.mulf %849, %850 : vector<8x32xf32>
    %852 = arith.mulf %851, %797 : vector<8x32xf32>
    %cst_285 = arith.constant 2.000000e-01 : f32
    %853 = vector.broadcast %cst_285 : f32 to vector<8x32xf32>
    %854 = arith.subf %853, %736 : vector<8x32xf32>
    %cst_286 = arith.constant 2.500000e+00 : f32
    %855 = vector.broadcast %cst_286 : f32 to vector<8x32xf32>
    %856 = arith.mulf %854, %855 : vector<8x32xf32>
    %857 = arith.mulf %856, %798 : vector<8x32xf32>
    %858 = arith.addf %852, %857 : vector<8x32xf32>
    %cst_287 = arith.constant -2.000000e-01 : f32
    %859 = vector.broadcast %cst_287 : f32 to vector<8x32xf32>
    %860 = arith.subf %736, %859 : vector<8x32xf32>
    %cst_288 = arith.constant 2.500000e+00 : f32
    %861 = vector.broadcast %cst_288 : f32 to vector<8x32xf32>
    %862 = arith.mulf %860, %861 : vector<8x32xf32>
    %863 = arith.mulf %862, %798 : vector<8x32xf32>
    %cst_289 = arith.constant 6.000000e-01 : f32
    %864 = vector.broadcast %cst_289 : f32 to vector<8x32xf32>
    %865 = arith.subf %864, %736 : vector<8x32xf32>
    %cst_290 = arith.constant 2.500000e+00 : f32
    %866 = vector.broadcast %cst_290 : f32 to vector<8x32xf32>
    %867 = arith.mulf %865, %866 : vector<8x32xf32>
    %868 = arith.mulf %867, %799 : vector<8x32xf32>
    %869 = arith.addf %863, %868 : vector<8x32xf32>
    %cst_291 = arith.constant 2.000000e-01 : f32
    %870 = vector.broadcast %cst_291 : f32 to vector<8x32xf32>
    %871 = arith.subf %736, %870 : vector<8x32xf32>
    %cst_292 = arith.constant 2.500000e+00 : f32
    %872 = vector.broadcast %cst_292 : f32 to vector<8x32xf32>
    %873 = arith.mulf %871, %872 : vector<8x32xf32>
    %874 = arith.mulf %873, %799 : vector<8x32xf32>
    %cst_293 = arith.constant 1.000000e+00 : f32
    %875 = vector.broadcast %cst_293 : f32 to vector<8x32xf32>
    %876 = arith.subf %875, %736 : vector<8x32xf32>
    %cst_294 = arith.constant 2.500000e+00 : f32
    %877 = vector.broadcast %cst_294 : f32 to vector<8x32xf32>
    %878 = arith.mulf %876, %877 : vector<8x32xf32>
    %879 = arith.mulf %878, %800 : vector<8x32xf32>
    %880 = arith.addf %874, %879 : vector<8x32xf32>
    %cst_295 = arith.constant 6.000000e-01 : f32
    %881 = vector.broadcast %cst_295 : f32 to vector<8x32xf32>
    %882 = arith.subf %736, %881 : vector<8x32xf32>
    %cst_296 = arith.constant 2.500000e+00 : f32
    %883 = vector.broadcast %cst_296 : f32 to vector<8x32xf32>
    %884 = arith.mulf %882, %883 : vector<8x32xf32>
    %885 = arith.mulf %884, %800 : vector<8x32xf32>
    %cst_297 = arith.constant 1.400000e+00 : f32
    %886 = vector.broadcast %cst_297 : f32 to vector<8x32xf32>
    %887 = arith.subf %886, %736 : vector<8x32xf32>
    %cst_298 = arith.constant 2.500000e+00 : f32
    %888 = vector.broadcast %cst_298 : f32 to vector<8x32xf32>
    %889 = arith.mulf %887, %888 : vector<8x32xf32>
    %890 = arith.mulf %889, %801 : vector<8x32xf32>
    %891 = arith.addf %885, %890 : vector<8x32xf32>
    %cst_299 = arith.constant 1.000000e+00 : f32
    %892 = vector.broadcast %cst_299 : f32 to vector<8x32xf32>
    %893 = arith.subf %736, %892 : vector<8x32xf32>
    %cst_300 = arith.constant 2.500000e+00 : f32
    %894 = vector.broadcast %cst_300 : f32 to vector<8x32xf32>
    %895 = arith.mulf %893, %894 : vector<8x32xf32>
    %896 = arith.mulf %895, %801 : vector<8x32xf32>
    %cst_301 = arith.constant 1.800000e+00 : f32
    %897 = vector.broadcast %cst_301 : f32 to vector<8x32xf32>
    %898 = arith.subf %897, %736 : vector<8x32xf32>
    %cst_302 = arith.constant 2.500000e+00 : f32
    %899 = vector.broadcast %cst_302 : f32 to vector<8x32xf32>
    %900 = arith.mulf %898, %899 : vector<8x32xf32>
    %901 = arith.mulf %900, %802 : vector<8x32xf32>
    %902 = arith.addf %896, %901 : vector<8x32xf32>
    %cst_303 = arith.constant 1.400000e+00 : f32
    %903 = vector.broadcast %cst_303 : f32 to vector<8x32xf32>
    %904 = arith.subf %736, %903 : vector<8x32xf32>
    %cst_304 = arith.constant 2.500000e+00 : f32
    %905 = vector.broadcast %cst_304 : f32 to vector<8x32xf32>
    %906 = arith.mulf %904, %905 : vector<8x32xf32>
    %907 = arith.mulf %906, %802 : vector<8x32xf32>
    %cst_305 = arith.constant 2.200000e+00 : f32
    %908 = vector.broadcast %cst_305 : f32 to vector<8x32xf32>
    %909 = arith.subf %908, %736 : vector<8x32xf32>
    %cst_306 = arith.constant 2.500000e+00 : f32
    %910 = vector.broadcast %cst_306 : f32 to vector<8x32xf32>
    %911 = arith.mulf %909, %910 : vector<8x32xf32>
    %912 = arith.mulf %911, %803 : vector<8x32xf32>
    %913 = arith.addf %907, %912 : vector<8x32xf32>
    %cst_307 = arith.constant -2.200000e+00 : f32
    %914 = vector.broadcast %cst_307 : f32 to vector<8x32xf32>
    %915 = arith.subf %736, %914 : vector<8x32xf32>
    %cst_308 = arith.constant 1.250000e+00 : f32
    %916 = vector.broadcast %cst_308 : f32 to vector<8x32xf32>
    %917 = arith.mulf %915, %916 : vector<8x32xf32>
    %918 = arith.mulf %917, %814 : vector<8x32xf32>
    %cst_309 = arith.constant -1.000000e+00 : f32
    %919 = vector.broadcast %cst_309 : f32 to vector<8x32xf32>
    %920 = arith.subf %919, %736 : vector<8x32xf32>
    %cst_310 = arith.constant 1.250000e+00 : f32
    %921 = vector.broadcast %cst_310 : f32 to vector<8x32xf32>
    %922 = arith.mulf %920, %921 : vector<8x32xf32>
    %923 = arith.mulf %922, %825 : vector<8x32xf32>
    %924 = arith.addf %918, %923 : vector<8x32xf32>
    %cst_311 = arith.constant -1.800000e+00 : f32
    %925 = vector.broadcast %cst_311 : f32 to vector<8x32xf32>
    %926 = arith.subf %736, %925 : vector<8x32xf32>
    %cst_312 = arith.constant 1.250000e+00 : f32
    %927 = vector.broadcast %cst_312 : f32 to vector<8x32xf32>
    %928 = arith.mulf %926, %927 : vector<8x32xf32>
    %929 = arith.mulf %928, %825 : vector<8x32xf32>
    %cst_313 = arith.constant -6.000000e-01 : f32
    %930 = vector.broadcast %cst_313 : f32 to vector<8x32xf32>
    %931 = arith.subf %930, %736 : vector<8x32xf32>
    %cst_314 = arith.constant 1.250000e+00 : f32
    %932 = vector.broadcast %cst_314 : f32 to vector<8x32xf32>
    %933 = arith.mulf %931, %932 : vector<8x32xf32>
    %934 = arith.mulf %933, %836 : vector<8x32xf32>
    %935 = arith.addf %929, %934 : vector<8x32xf32>
    %cst_315 = arith.constant -1.400000e+00 : f32
    %936 = vector.broadcast %cst_315 : f32 to vector<8x32xf32>
    %937 = arith.subf %736, %936 : vector<8x32xf32>
    %cst_316 = arith.constant 1.250000e+00 : f32
    %938 = vector.broadcast %cst_316 : f32 to vector<8x32xf32>
    %939 = arith.mulf %937, %938 : vector<8x32xf32>
    %940 = arith.mulf %939, %836 : vector<8x32xf32>
    %cst_317 = arith.constant -2.000000e-01 : f32
    %941 = vector.broadcast %cst_317 : f32 to vector<8x32xf32>
    %942 = arith.subf %941, %736 : vector<8x32xf32>
    %cst_318 = arith.constant 1.250000e+00 : f32
    %943 = vector.broadcast %cst_318 : f32 to vector<8x32xf32>
    %944 = arith.mulf %942, %943 : vector<8x32xf32>
    %945 = arith.mulf %944, %847 : vector<8x32xf32>
    %946 = arith.addf %940, %945 : vector<8x32xf32>
    %cst_319 = arith.constant -1.000000e+00 : f32
    %947 = vector.broadcast %cst_319 : f32 to vector<8x32xf32>
    %948 = arith.subf %736, %947 : vector<8x32xf32>
    %cst_320 = arith.constant 1.250000e+00 : f32
    %949 = vector.broadcast %cst_320 : f32 to vector<8x32xf32>
    %950 = arith.mulf %948, %949 : vector<8x32xf32>
    %951 = arith.mulf %950, %847 : vector<8x32xf32>
    %cst_321 = arith.constant 2.000000e-01 : f32
    %952 = vector.broadcast %cst_321 : f32 to vector<8x32xf32>
    %953 = arith.subf %952, %736 : vector<8x32xf32>
    %cst_322 = arith.constant 1.250000e+00 : f32
    %954 = vector.broadcast %cst_322 : f32 to vector<8x32xf32>
    %955 = arith.mulf %953, %954 : vector<8x32xf32>
    %956 = arith.mulf %955, %858 : vector<8x32xf32>
    %957 = arith.addf %951, %956 : vector<8x32xf32>
    %cst_323 = arith.constant -6.000000e-01 : f32
    %958 = vector.broadcast %cst_323 : f32 to vector<8x32xf32>
    %959 = arith.subf %736, %958 : vector<8x32xf32>
    %cst_324 = arith.constant 1.250000e+00 : f32
    %960 = vector.broadcast %cst_324 : f32 to vector<8x32xf32>
    %961 = arith.mulf %959, %960 : vector<8x32xf32>
    %962 = arith.mulf %961, %858 : vector<8x32xf32>
    %cst_325 = arith.constant 6.000000e-01 : f32
    %963 = vector.broadcast %cst_325 : f32 to vector<8x32xf32>
    %964 = arith.subf %963, %736 : vector<8x32xf32>
    %cst_326 = arith.constant 1.250000e+00 : f32
    %965 = vector.broadcast %cst_326 : f32 to vector<8x32xf32>
    %966 = arith.mulf %964, %965 : vector<8x32xf32>
    %967 = arith.mulf %966, %869 : vector<8x32xf32>
    %968 = arith.addf %962, %967 : vector<8x32xf32>
    %cst_327 = arith.constant -2.000000e-01 : f32
    %969 = vector.broadcast %cst_327 : f32 to vector<8x32xf32>
    %970 = arith.subf %736, %969 : vector<8x32xf32>
    %cst_328 = arith.constant 1.250000e+00 : f32
    %971 = vector.broadcast %cst_328 : f32 to vector<8x32xf32>
    %972 = arith.mulf %970, %971 : vector<8x32xf32>
    %973 = arith.mulf %972, %869 : vector<8x32xf32>
    %cst_329 = arith.constant 1.000000e+00 : f32
    %974 = vector.broadcast %cst_329 : f32 to vector<8x32xf32>
    %975 = arith.subf %974, %736 : vector<8x32xf32>
    %cst_330 = arith.constant 1.250000e+00 : f32
    %976 = vector.broadcast %cst_330 : f32 to vector<8x32xf32>
    %977 = arith.mulf %975, %976 : vector<8x32xf32>
    %978 = arith.mulf %977, %880 : vector<8x32xf32>
    %979 = arith.addf %973, %978 : vector<8x32xf32>
    %cst_331 = arith.constant 2.000000e-01 : f32
    %980 = vector.broadcast %cst_331 : f32 to vector<8x32xf32>
    %981 = arith.subf %736, %980 : vector<8x32xf32>
    %cst_332 = arith.constant 1.250000e+00 : f32
    %982 = vector.broadcast %cst_332 : f32 to vector<8x32xf32>
    %983 = arith.mulf %981, %982 : vector<8x32xf32>
    %984 = arith.mulf %983, %880 : vector<8x32xf32>
    %cst_333 = arith.constant 1.400000e+00 : f32
    %985 = vector.broadcast %cst_333 : f32 to vector<8x32xf32>
    %986 = arith.subf %985, %736 : vector<8x32xf32>
    %cst_334 = arith.constant 1.250000e+00 : f32
    %987 = vector.broadcast %cst_334 : f32 to vector<8x32xf32>
    %988 = arith.mulf %986, %987 : vector<8x32xf32>
    %989 = arith.mulf %988, %891 : vector<8x32xf32>
    %990 = arith.addf %984, %989 : vector<8x32xf32>
    %cst_335 = arith.constant 6.000000e-01 : f32
    %991 = vector.broadcast %cst_335 : f32 to vector<8x32xf32>
    %992 = arith.subf %736, %991 : vector<8x32xf32>
    %cst_336 = arith.constant 1.250000e+00 : f32
    %993 = vector.broadcast %cst_336 : f32 to vector<8x32xf32>
    %994 = arith.mulf %992, %993 : vector<8x32xf32>
    %995 = arith.mulf %994, %891 : vector<8x32xf32>
    %cst_337 = arith.constant 1.800000e+00 : f32
    %996 = vector.broadcast %cst_337 : f32 to vector<8x32xf32>
    %997 = arith.subf %996, %736 : vector<8x32xf32>
    %cst_338 = arith.constant 1.250000e+00 : f32
    %998 = vector.broadcast %cst_338 : f32 to vector<8x32xf32>
    %999 = arith.mulf %997, %998 : vector<8x32xf32>
    %1000 = arith.mulf %999, %902 : vector<8x32xf32>
    %1001 = arith.addf %995, %1000 : vector<8x32xf32>
    %cst_339 = arith.constant 1.000000e+00 : f32
    %1002 = vector.broadcast %cst_339 : f32 to vector<8x32xf32>
    %1003 = arith.subf %736, %1002 : vector<8x32xf32>
    %cst_340 = arith.constant 1.250000e+00 : f32
    %1004 = vector.broadcast %cst_340 : f32 to vector<8x32xf32>
    %1005 = arith.mulf %1003, %1004 : vector<8x32xf32>
    %1006 = arith.mulf %1005, %902 : vector<8x32xf32>
    %cst_341 = arith.constant 2.200000e+00 : f32
    %1007 = vector.broadcast %cst_341 : f32 to vector<8x32xf32>
    %1008 = arith.subf %1007, %736 : vector<8x32xf32>
    %cst_342 = arith.constant 1.250000e+00 : f32
    %1009 = vector.broadcast %cst_342 : f32 to vector<8x32xf32>
    %1010 = arith.mulf %1008, %1009 : vector<8x32xf32>
    %1011 = arith.mulf %1010, %913 : vector<8x32xf32>
    %1012 = arith.addf %1006, %1011 : vector<8x32xf32>
    %cst_343 = arith.constant -2.200000e+00 : f32
    %1013 = vector.broadcast %cst_343 : f32 to vector<8x32xf32>
    %1014 = arith.subf %736, %1013 : vector<8x32xf32>
    %cst_344 = arith.constant 0.833333313 : f32
    %1015 = vector.broadcast %cst_344 : f32 to vector<8x32xf32>
    %1016 = arith.mulf %1014, %1015 : vector<8x32xf32>
    %1017 = arith.mulf %1016, %924 : vector<8x32xf32>
    %cst_345 = arith.constant -6.000000e-01 : f32
    %1018 = vector.broadcast %cst_345 : f32 to vector<8x32xf32>
    %1019 = arith.subf %1018, %736 : vector<8x32xf32>
    %cst_346 = arith.constant 0.833333313 : f32
    %1020 = vector.broadcast %cst_346 : f32 to vector<8x32xf32>
    %1021 = arith.mulf %1019, %1020 : vector<8x32xf32>
    %1022 = arith.mulf %1021, %935 : vector<8x32xf32>
    %1023 = arith.addf %1017, %1022 : vector<8x32xf32>
    %cst_347 = arith.constant -1.800000e+00 : f32
    %1024 = vector.broadcast %cst_347 : f32 to vector<8x32xf32>
    %1025 = arith.subf %736, %1024 : vector<8x32xf32>
    %cst_348 = arith.constant 0.833333313 : f32
    %1026 = vector.broadcast %cst_348 : f32 to vector<8x32xf32>
    %1027 = arith.mulf %1025, %1026 : vector<8x32xf32>
    %1028 = arith.mulf %1027, %935 : vector<8x32xf32>
    %cst_349 = arith.constant -2.000000e-01 : f32
    %1029 = vector.broadcast %cst_349 : f32 to vector<8x32xf32>
    %1030 = arith.subf %1029, %736 : vector<8x32xf32>
    %cst_350 = arith.constant 0.833333313 : f32
    %1031 = vector.broadcast %cst_350 : f32 to vector<8x32xf32>
    %1032 = arith.mulf %1030, %1031 : vector<8x32xf32>
    %1033 = arith.mulf %1032, %946 : vector<8x32xf32>
    %1034 = arith.addf %1028, %1033 : vector<8x32xf32>
    %cst_351 = arith.constant -1.400000e+00 : f32
    %1035 = vector.broadcast %cst_351 : f32 to vector<8x32xf32>
    %1036 = arith.subf %736, %1035 : vector<8x32xf32>
    %cst_352 = arith.constant 0.833333313 : f32
    %1037 = vector.broadcast %cst_352 : f32 to vector<8x32xf32>
    %1038 = arith.mulf %1036, %1037 : vector<8x32xf32>
    %1039 = arith.mulf %1038, %946 : vector<8x32xf32>
    %cst_353 = arith.constant 2.000000e-01 : f32
    %1040 = vector.broadcast %cst_353 : f32 to vector<8x32xf32>
    %1041 = arith.subf %1040, %736 : vector<8x32xf32>
    %cst_354 = arith.constant 0.833333313 : f32
    %1042 = vector.broadcast %cst_354 : f32 to vector<8x32xf32>
    %1043 = arith.mulf %1041, %1042 : vector<8x32xf32>
    %1044 = arith.mulf %1043, %957 : vector<8x32xf32>
    %1045 = arith.addf %1039, %1044 : vector<8x32xf32>
    %cst_355 = arith.constant -1.000000e+00 : f32
    %1046 = vector.broadcast %cst_355 : f32 to vector<8x32xf32>
    %1047 = arith.subf %736, %1046 : vector<8x32xf32>
    %cst_356 = arith.constant 0.833333313 : f32
    %1048 = vector.broadcast %cst_356 : f32 to vector<8x32xf32>
    %1049 = arith.mulf %1047, %1048 : vector<8x32xf32>
    %1050 = arith.mulf %1049, %957 : vector<8x32xf32>
    %cst_357 = arith.constant 6.000000e-01 : f32
    %1051 = vector.broadcast %cst_357 : f32 to vector<8x32xf32>
    %1052 = arith.subf %1051, %736 : vector<8x32xf32>
    %cst_358 = arith.constant 0.833333313 : f32
    %1053 = vector.broadcast %cst_358 : f32 to vector<8x32xf32>
    %1054 = arith.mulf %1052, %1053 : vector<8x32xf32>
    %1055 = arith.mulf %1054, %968 : vector<8x32xf32>
    %1056 = arith.addf %1050, %1055 : vector<8x32xf32>
    %cst_359 = arith.constant -6.000000e-01 : f32
    %1057 = vector.broadcast %cst_359 : f32 to vector<8x32xf32>
    %1058 = arith.subf %736, %1057 : vector<8x32xf32>
    %cst_360 = arith.constant 0.833333313 : f32
    %1059 = vector.broadcast %cst_360 : f32 to vector<8x32xf32>
    %1060 = arith.mulf %1058, %1059 : vector<8x32xf32>
    %1061 = arith.mulf %1060, %968 : vector<8x32xf32>
    %cst_361 = arith.constant 1.000000e+00 : f32
    %1062 = vector.broadcast %cst_361 : f32 to vector<8x32xf32>
    %1063 = arith.subf %1062, %736 : vector<8x32xf32>
    %cst_362 = arith.constant 0.833333313 : f32
    %1064 = vector.broadcast %cst_362 : f32 to vector<8x32xf32>
    %1065 = arith.mulf %1063, %1064 : vector<8x32xf32>
    %1066 = arith.mulf %1065, %979 : vector<8x32xf32>
    %1067 = arith.addf %1061, %1066 : vector<8x32xf32>
    %cst_363 = arith.constant -2.000000e-01 : f32
    %1068 = vector.broadcast %cst_363 : f32 to vector<8x32xf32>
    %1069 = arith.subf %736, %1068 : vector<8x32xf32>
    %cst_364 = arith.constant 0.833333313 : f32
    %1070 = vector.broadcast %cst_364 : f32 to vector<8x32xf32>
    %1071 = arith.mulf %1069, %1070 : vector<8x32xf32>
    %1072 = arith.mulf %1071, %979 : vector<8x32xf32>
    %cst_365 = arith.constant 1.400000e+00 : f32
    %1073 = vector.broadcast %cst_365 : f32 to vector<8x32xf32>
    %1074 = arith.subf %1073, %736 : vector<8x32xf32>
    %cst_366 = arith.constant 0.833333313 : f32
    %1075 = vector.broadcast %cst_366 : f32 to vector<8x32xf32>
    %1076 = arith.mulf %1074, %1075 : vector<8x32xf32>
    %1077 = arith.mulf %1076, %990 : vector<8x32xf32>
    %1078 = arith.addf %1072, %1077 : vector<8x32xf32>
    %cst_367 = arith.constant 2.000000e-01 : f32
    %1079 = vector.broadcast %cst_367 : f32 to vector<8x32xf32>
    %1080 = arith.subf %736, %1079 : vector<8x32xf32>
    %cst_368 = arith.constant 0.833333313 : f32
    %1081 = vector.broadcast %cst_368 : f32 to vector<8x32xf32>
    %1082 = arith.mulf %1080, %1081 : vector<8x32xf32>
    %1083 = arith.mulf %1082, %990 : vector<8x32xf32>
    %cst_369 = arith.constant 1.800000e+00 : f32
    %1084 = vector.broadcast %cst_369 : f32 to vector<8x32xf32>
    %1085 = arith.subf %1084, %736 : vector<8x32xf32>
    %cst_370 = arith.constant 0.833333313 : f32
    %1086 = vector.broadcast %cst_370 : f32 to vector<8x32xf32>
    %1087 = arith.mulf %1085, %1086 : vector<8x32xf32>
    %1088 = arith.mulf %1087, %1001 : vector<8x32xf32>
    %1089 = arith.addf %1083, %1088 : vector<8x32xf32>
    %cst_371 = arith.constant 6.000000e-01 : f32
    %1090 = vector.broadcast %cst_371 : f32 to vector<8x32xf32>
    %1091 = arith.subf %736, %1090 : vector<8x32xf32>
    %cst_372 = arith.constant 0.833333313 : f32
    %1092 = vector.broadcast %cst_372 : f32 to vector<8x32xf32>
    %1093 = arith.mulf %1091, %1092 : vector<8x32xf32>
    %1094 = arith.mulf %1093, %1001 : vector<8x32xf32>
    %cst_373 = arith.constant 2.200000e+00 : f32
    %1095 = vector.broadcast %cst_373 : f32 to vector<8x32xf32>
    %1096 = arith.subf %1095, %736 : vector<8x32xf32>
    %cst_374 = arith.constant 0.833333313 : f32
    %1097 = vector.broadcast %cst_374 : f32 to vector<8x32xf32>
    %1098 = arith.mulf %1096, %1097 : vector<8x32xf32>
    %1099 = arith.mulf %1098, %1012 : vector<8x32xf32>
    %1100 = arith.addf %1094, %1099 : vector<8x32xf32>
    %1101 = tpu.concatenate %744, %1023, %1034, %1045, %1056, %1067, %1078, %1089, %1100 in 1 : vector<8x32xf32>, vector<8x32xf32>, vector<8x32xf32>, vector<8x32xf32>, vector<8x32xf32>, vector<8x32xf32>, vector<8x32xf32>, vector<8x32xf32>, vector<8x32xf32> -> vector<8x288xf32>
    %1102 = arith.truncf %1101 : vector<8x288xf32> to vector<8x288xbf16>
    %c0_375 = arith.constant 0 : index
    %c0_376 = arith.constant 0 : index
    %1103 = vector.load %arg4[%c0_375, %c0_376] : memref<288x32xbf16, #tpu.memory_space<vmem>>, vector<288x32xbf16>
    %cst_377 = arith.constant dense<0.000000e+00> : vector<8x32xf32>
    %1104 = tpu.matmul %1102, %1103, %cst_377 {dimension_numbers = #tpu.dot_dimension_numbers<[1], [0], [0], [1], [0, 0, 1, 1], [], []>} : vector<8x288xbf16>, vector<288x32xbf16>, vector<8x32xf32> -> vector<8x32xf32>
    %cst_378 = arith.constant 5.000000e-01 : f32
    %1105 = vector.broadcast %cst_378 : f32 to vector<8x32xf32>
    %1106 = arith.mulf %1105, %1104 : vector<8x32xf32>
    %cst_379 = arith.constant 5.000000e-01 : f32
    %1107 = vector.broadcast %cst_379 : f32 to vector<8x32xf32>
    %1108 = arith.mulf %1107, %1104 : vector<8x32xf32>
    %1109 = math.tanh %1108 : vector<8x32xf32>
    %cst_380 = arith.constant 1.000000e+00 : f32
    %1110 = vector.broadcast %cst_380 : f32 to vector<8x32xf32>
    %1111 = arith.addf %1110, %1109 : vector<8x32xf32>
    %1112 = arith.mulf %1106, %1111 : vector<8x32xf32>
    %cst_381 = arith.constant -2.200000e+00 : f32
    %1113 = vector.broadcast %cst_381 : f32 to vector<8x32xf32>
    %1114 = arith.cmpf oge, %1104, %1113 : vector<8x32xf32>
    %1115 = arith.extui %1114 : vector<8x32xi1> to vector<8x32xi32>
    %1116 = arith.sitofp %1115 : vector<8x32xi32> to vector<8x32xf32>
    %cst_382 = arith.constant -1.800000e+00 : f32
    %1117 = vector.broadcast %cst_382 : f32 to vector<8x32xf32>
    %1118 = arith.cmpf oge, %1104, %1117 : vector<8x32xf32>
    %1119 = arith.extui %1118 : vector<8x32xi1> to vector<8x32xi32>
    %1120 = arith.sitofp %1119 : vector<8x32xi32> to vector<8x32xf32>
    %cst_383 = arith.constant -1.400000e+00 : f32
    %1121 = vector.broadcast %cst_383 : f32 to vector<8x32xf32>
    %1122 = arith.cmpf oge, %1104, %1121 : vector<8x32xf32>
    %1123 = arith.extui %1122 : vector<8x32xi1> to vector<8x32xi32>
    %1124 = arith.sitofp %1123 : vector<8x32xi32> to vector<8x32xf32>
    %cst_384 = arith.constant -1.000000e+00 : f32
    %1125 = vector.broadcast %cst_384 : f32 to vector<8x32xf32>
    %1126 = arith.cmpf oge, %1104, %1125 : vector<8x32xf32>
    %1127 = arith.extui %1126 : vector<8x32xi1> to vector<8x32xi32>
    %1128 = arith.sitofp %1127 : vector<8x32xi32> to vector<8x32xf32>
    %cst_385 = arith.constant -6.000000e-01 : f32
    %1129 = vector.broadcast %cst_385 : f32 to vector<8x32xf32>
    %1130 = arith.cmpf oge, %1104, %1129 : vector<8x32xf32>
    %1131 = arith.extui %1130 : vector<8x32xi1> to vector<8x32xi32>
    %1132 = arith.sitofp %1131 : vector<8x32xi32> to vector<8x32xf32>
    %cst_386 = arith.constant -2.000000e-01 : f32
    %1133 = vector.broadcast %cst_386 : f32 to vector<8x32xf32>
    %1134 = arith.cmpf oge, %1104, %1133 : vector<8x32xf32>
    %1135 = arith.extui %1134 : vector<8x32xi1> to vector<8x32xi32>
    %1136 = arith.sitofp %1135 : vector<8x32xi32> to vector<8x32xf32>
    %cst_387 = arith.constant 2.000000e-01 : f32
    %1137 = vector.broadcast %cst_387 : f32 to vector<8x32xf32>
    %1138 = arith.cmpf oge, %1104, %1137 : vector<8x32xf32>
    %1139 = arith.extui %1138 : vector<8x32xi1> to vector<8x32xi32>
    %1140 = arith.sitofp %1139 : vector<8x32xi32> to vector<8x32xf32>
    %cst_388 = arith.constant 6.000000e-01 : f32
    %1141 = vector.broadcast %cst_388 : f32 to vector<8x32xf32>
    %1142 = arith.cmpf oge, %1104, %1141 : vector<8x32xf32>
    %1143 = arith.extui %1142 : vector<8x32xi1> to vector<8x32xi32>
    %1144 = arith.sitofp %1143 : vector<8x32xi32> to vector<8x32xf32>
    %cst_389 = arith.constant 1.000000e+00 : f32
    %1145 = vector.broadcast %cst_389 : f32 to vector<8x32xf32>
    %1146 = arith.cmpf oge, %1104, %1145 : vector<8x32xf32>
    %1147 = arith.extui %1146 : vector<8x32xi1> to vector<8x32xi32>
    %1148 = arith.sitofp %1147 : vector<8x32xi32> to vector<8x32xf32>
    %cst_390 = arith.constant 1.400000e+00 : f32
    %1149 = vector.broadcast %cst_390 : f32 to vector<8x32xf32>
    %1150 = arith.cmpf oge, %1104, %1149 : vector<8x32xf32>
    %1151 = arith.extui %1150 : vector<8x32xi1> to vector<8x32xi32>
    %1152 = arith.sitofp %1151 : vector<8x32xi32> to vector<8x32xf32>
    %cst_391 = arith.constant 1.800000e+00 : f32
    %1153 = vector.broadcast %cst_391 : f32 to vector<8x32xf32>
    %1154 = arith.cmpf oge, %1104, %1153 : vector<8x32xf32>
    %1155 = arith.extui %1154 : vector<8x32xi1> to vector<8x32xi32>
    %1156 = arith.sitofp %1155 : vector<8x32xi32> to vector<8x32xf32>
    %cst_392 = arith.constant 2.200000e+00 : f32
    %1157 = vector.broadcast %cst_392 : f32 to vector<8x32xf32>
    %1158 = arith.cmpf oge, %1104, %1157 : vector<8x32xf32>
    %1159 = arith.extui %1158 : vector<8x32xi1> to vector<8x32xi32>
    %1160 = arith.sitofp %1159 : vector<8x32xi32> to vector<8x32xf32>
    %1161 = arith.subf %1116, %1120 : vector<8x32xf32>
    %1162 = arith.subf %1120, %1124 : vector<8x32xf32>
    %1163 = arith.subf %1124, %1128 : vector<8x32xf32>
    %1164 = arith.subf %1128, %1132 : vector<8x32xf32>
    %1165 = arith.subf %1132, %1136 : vector<8x32xf32>
    %1166 = arith.subf %1136, %1140 : vector<8x32xf32>
    %1167 = arith.subf %1140, %1144 : vector<8x32xf32>
    %1168 = arith.subf %1144, %1148 : vector<8x32xf32>
    %1169 = arith.subf %1148, %1152 : vector<8x32xf32>
    %1170 = arith.subf %1152, %1156 : vector<8x32xf32>
    %1171 = arith.subf %1156, %1160 : vector<8x32xf32>
    %cst_393 = arith.constant -2.200000e+00 : f32
    %1172 = vector.broadcast %cst_393 : f32 to vector<8x32xf32>
    %1173 = arith.subf %1104, %1172 : vector<8x32xf32>
    %cst_394 = arith.constant 2.500000e+00 : f32
    %1174 = vector.broadcast %cst_394 : f32 to vector<8x32xf32>
    %1175 = arith.mulf %1173, %1174 : vector<8x32xf32>
    %1176 = arith.mulf %1175, %1161 : vector<8x32xf32>
    %cst_395 = arith.constant -1.400000e+00 : f32
    %1177 = vector.broadcast %cst_395 : f32 to vector<8x32xf32>
    %1178 = arith.subf %1177, %1104 : vector<8x32xf32>
    %cst_396 = arith.constant 2.500000e+00 : f32
    %1179 = vector.broadcast %cst_396 : f32 to vector<8x32xf32>
    %1180 = arith.mulf %1178, %1179 : vector<8x32xf32>
    %1181 = arith.mulf %1180, %1162 : vector<8x32xf32>
    %1182 = arith.addf %1176, %1181 : vector<8x32xf32>
    %cst_397 = arith.constant -1.800000e+00 : f32
    %1183 = vector.broadcast %cst_397 : f32 to vector<8x32xf32>
    %1184 = arith.subf %1104, %1183 : vector<8x32xf32>
    %cst_398 = arith.constant 2.500000e+00 : f32
    %1185 = vector.broadcast %cst_398 : f32 to vector<8x32xf32>
    %1186 = arith.mulf %1184, %1185 : vector<8x32xf32>
    %1187 = arith.mulf %1186, %1162 : vector<8x32xf32>
    %cst_399 = arith.constant -1.000000e+00 : f32
    %1188 = vector.broadcast %cst_399 : f32 to vector<8x32xf32>
    %1189 = arith.subf %1188, %1104 : vector<8x32xf32>
    %cst_400 = arith.constant 2.500000e+00 : f32
    %1190 = vector.broadcast %cst_400 : f32 to vector<8x32xf32>
    %1191 = arith.mulf %1189, %1190 : vector<8x32xf32>
    %1192 = arith.mulf %1191, %1163 : vector<8x32xf32>
    %1193 = arith.addf %1187, %1192 : vector<8x32xf32>
    %cst_401 = arith.constant -1.400000e+00 : f32
    %1194 = vector.broadcast %cst_401 : f32 to vector<8x32xf32>
    %1195 = arith.subf %1104, %1194 : vector<8x32xf32>
    %cst_402 = arith.constant 2.500000e+00 : f32
    %1196 = vector.broadcast %cst_402 : f32 to vector<8x32xf32>
    %1197 = arith.mulf %1195, %1196 : vector<8x32xf32>
    %1198 = arith.mulf %1197, %1163 : vector<8x32xf32>
    %cst_403 = arith.constant -6.000000e-01 : f32
    %1199 = vector.broadcast %cst_403 : f32 to vector<8x32xf32>
    %1200 = arith.subf %1199, %1104 : vector<8x32xf32>
    %cst_404 = arith.constant 2.500000e+00 : f32
    %1201 = vector.broadcast %cst_404 : f32 to vector<8x32xf32>
    %1202 = arith.mulf %1200, %1201 : vector<8x32xf32>
    %1203 = arith.mulf %1202, %1164 : vector<8x32xf32>
    %1204 = arith.addf %1198, %1203 : vector<8x32xf32>
    %cst_405 = arith.constant -1.000000e+00 : f32
    %1205 = vector.broadcast %cst_405 : f32 to vector<8x32xf32>
    %1206 = arith.subf %1104, %1205 : vector<8x32xf32>
    %cst_406 = arith.constant 2.500000e+00 : f32
    %1207 = vector.broadcast %cst_406 : f32 to vector<8x32xf32>
    %1208 = arith.mulf %1206, %1207 : vector<8x32xf32>
    %1209 = arith.mulf %1208, %1164 : vector<8x32xf32>
    %cst_407 = arith.constant -2.000000e-01 : f32
    %1210 = vector.broadcast %cst_407 : f32 to vector<8x32xf32>
    %1211 = arith.subf %1210, %1104 : vector<8x32xf32>
    %cst_408 = arith.constant 2.500000e+00 : f32
    %1212 = vector.broadcast %cst_408 : f32 to vector<8x32xf32>
    %1213 = arith.mulf %1211, %1212 : vector<8x32xf32>
    %1214 = arith.mulf %1213, %1165 : vector<8x32xf32>
    %1215 = arith.addf %1209, %1214 : vector<8x32xf32>
    %cst_409 = arith.constant -6.000000e-01 : f32
    %1216 = vector.broadcast %cst_409 : f32 to vector<8x32xf32>
    %1217 = arith.subf %1104, %1216 : vector<8x32xf32>
    %cst_410 = arith.constant 2.500000e+00 : f32
    %1218 = vector.broadcast %cst_410 : f32 to vector<8x32xf32>
    %1219 = arith.mulf %1217, %1218 : vector<8x32xf32>
    %1220 = arith.mulf %1219, %1165 : vector<8x32xf32>
    %cst_411 = arith.constant 2.000000e-01 : f32
    %1221 = vector.broadcast %cst_411 : f32 to vector<8x32xf32>
    %1222 = arith.subf %1221, %1104 : vector<8x32xf32>
    %cst_412 = arith.constant 2.500000e+00 : f32
    %1223 = vector.broadcast %cst_412 : f32 to vector<8x32xf32>
    %1224 = arith.mulf %1222, %1223 : vector<8x32xf32>
    %1225 = arith.mulf %1224, %1166 : vector<8x32xf32>
    %1226 = arith.addf %1220, %1225 : vector<8x32xf32>
    %cst_413 = arith.constant -2.000000e-01 : f32
    %1227 = vector.broadcast %cst_413 : f32 to vector<8x32xf32>
    %1228 = arith.subf %1104, %1227 : vector<8x32xf32>
    %cst_414 = arith.constant 2.500000e+00 : f32
    %1229 = vector.broadcast %cst_414 : f32 to vector<8x32xf32>
    %1230 = arith.mulf %1228, %1229 : vector<8x32xf32>
    %1231 = arith.mulf %1230, %1166 : vector<8x32xf32>
    %cst_415 = arith.constant 6.000000e-01 : f32
    %1232 = vector.broadcast %cst_415 : f32 to vector<8x32xf32>
    %1233 = arith.subf %1232, %1104 : vector<8x32xf32>
    %cst_416 = arith.constant 2.500000e+00 : f32
    %1234 = vector.broadcast %cst_416 : f32 to vector<8x32xf32>
    %1235 = arith.mulf %1233, %1234 : vector<8x32xf32>
    %1236 = arith.mulf %1235, %1167 : vector<8x32xf32>
    %1237 = arith.addf %1231, %1236 : vector<8x32xf32>
    %cst_417 = arith.constant 2.000000e-01 : f32
    %1238 = vector.broadcast %cst_417 : f32 to vector<8x32xf32>
    %1239 = arith.subf %1104, %1238 : vector<8x32xf32>
    %cst_418 = arith.constant 2.500000e+00 : f32
    %1240 = vector.broadcast %cst_418 : f32 to vector<8x32xf32>
    %1241 = arith.mulf %1239, %1240 : vector<8x32xf32>
    %1242 = arith.mulf %1241, %1167 : vector<8x32xf32>
    %cst_419 = arith.constant 1.000000e+00 : f32
    %1243 = vector.broadcast %cst_419 : f32 to vector<8x32xf32>
    %1244 = arith.subf %1243, %1104 : vector<8x32xf32>
    %cst_420 = arith.constant 2.500000e+00 : f32
    %1245 = vector.broadcast %cst_420 : f32 to vector<8x32xf32>
    %1246 = arith.mulf %1244, %1245 : vector<8x32xf32>
    %1247 = arith.mulf %1246, %1168 : vector<8x32xf32>
    %1248 = arith.addf %1242, %1247 : vector<8x32xf32>
    %cst_421 = arith.constant 6.000000e-01 : f32
    %1249 = vector.broadcast %cst_421 : f32 to vector<8x32xf32>
    %1250 = arith.subf %1104, %1249 : vector<8x32xf32>
    %cst_422 = arith.constant 2.500000e+00 : f32
    %1251 = vector.broadcast %cst_422 : f32 to vector<8x32xf32>
    %1252 = arith.mulf %1250, %1251 : vector<8x32xf32>
    %1253 = arith.mulf %1252, %1168 : vector<8x32xf32>
    %cst_423 = arith.constant 1.400000e+00 : f32
    %1254 = vector.broadcast %cst_423 : f32 to vector<8x32xf32>
    %1255 = arith.subf %1254, %1104 : vector<8x32xf32>
    %cst_424 = arith.constant 2.500000e+00 : f32
    %1256 = vector.broadcast %cst_424 : f32 to vector<8x32xf32>
    %1257 = arith.mulf %1255, %1256 : vector<8x32xf32>
    %1258 = arith.mulf %1257, %1169 : vector<8x32xf32>
    %1259 = arith.addf %1253, %1258 : vector<8x32xf32>
    %cst_425 = arith.constant 1.000000e+00 : f32
    %1260 = vector.broadcast %cst_425 : f32 to vector<8x32xf32>
    %1261 = arith.subf %1104, %1260 : vector<8x32xf32>
    %cst_426 = arith.constant 2.500000e+00 : f32
    %1262 = vector.broadcast %cst_426 : f32 to vector<8x32xf32>
    %1263 = arith.mulf %1261, %1262 : vector<8x32xf32>
    %1264 = arith.mulf %1263, %1169 : vector<8x32xf32>
    %cst_427 = arith.constant 1.800000e+00 : f32
    %1265 = vector.broadcast %cst_427 : f32 to vector<8x32xf32>
    %1266 = arith.subf %1265, %1104 : vector<8x32xf32>
    %cst_428 = arith.constant 2.500000e+00 : f32
    %1267 = vector.broadcast %cst_428 : f32 to vector<8x32xf32>
    %1268 = arith.mulf %1266, %1267 : vector<8x32xf32>
    %1269 = arith.mulf %1268, %1170 : vector<8x32xf32>
    %1270 = arith.addf %1264, %1269 : vector<8x32xf32>
    %cst_429 = arith.constant 1.400000e+00 : f32
    %1271 = vector.broadcast %cst_429 : f32 to vector<8x32xf32>
    %1272 = arith.subf %1104, %1271 : vector<8x32xf32>
    %cst_430 = arith.constant 2.500000e+00 : f32
    %1273 = vector.broadcast %cst_430 : f32 to vector<8x32xf32>
    %1274 = arith.mulf %1272, %1273 : vector<8x32xf32>
    %1275 = arith.mulf %1274, %1170 : vector<8x32xf32>
    %cst_431 = arith.constant 2.200000e+00 : f32
    %1276 = vector.broadcast %cst_431 : f32 to vector<8x32xf32>
    %1277 = arith.subf %1276, %1104 : vector<8x32xf32>
    %cst_432 = arith.constant 2.500000e+00 : f32
    %1278 = vector.broadcast %cst_432 : f32 to vector<8x32xf32>
    %1279 = arith.mulf %1277, %1278 : vector<8x32xf32>
    %1280 = arith.mulf %1279, %1171 : vector<8x32xf32>
    %1281 = arith.addf %1275, %1280 : vector<8x32xf32>
    %cst_433 = arith.constant -2.200000e+00 : f32
    %1282 = vector.broadcast %cst_433 : f32 to vector<8x32xf32>
    %1283 = arith.subf %1104, %1282 : vector<8x32xf32>
    %cst_434 = arith.constant 1.250000e+00 : f32
    %1284 = vector.broadcast %cst_434 : f32 to vector<8x32xf32>
    %1285 = arith.mulf %1283, %1284 : vector<8x32xf32>
    %1286 = arith.mulf %1285, %1182 : vector<8x32xf32>
    %cst_435 = arith.constant -1.000000e+00 : f32
    %1287 = vector.broadcast %cst_435 : f32 to vector<8x32xf32>
    %1288 = arith.subf %1287, %1104 : vector<8x32xf32>
    %cst_436 = arith.constant 1.250000e+00 : f32
    %1289 = vector.broadcast %cst_436 : f32 to vector<8x32xf32>
    %1290 = arith.mulf %1288, %1289 : vector<8x32xf32>
    %1291 = arith.mulf %1290, %1193 : vector<8x32xf32>
    %1292 = arith.addf %1286, %1291 : vector<8x32xf32>
    %cst_437 = arith.constant -1.800000e+00 : f32
    %1293 = vector.broadcast %cst_437 : f32 to vector<8x32xf32>
    %1294 = arith.subf %1104, %1293 : vector<8x32xf32>
    %cst_438 = arith.constant 1.250000e+00 : f32
    %1295 = vector.broadcast %cst_438 : f32 to vector<8x32xf32>
    %1296 = arith.mulf %1294, %1295 : vector<8x32xf32>
    %1297 = arith.mulf %1296, %1193 : vector<8x32xf32>
    %cst_439 = arith.constant -6.000000e-01 : f32
    %1298 = vector.broadcast %cst_439 : f32 to vector<8x32xf32>
    %1299 = arith.subf %1298, %1104 : vector<8x32xf32>
    %cst_440 = arith.constant 1.250000e+00 : f32
    %1300 = vector.broadcast %cst_440 : f32 to vector<8x32xf32>
    %1301 = arith.mulf %1299, %1300 : vector<8x32xf32>
    %1302 = arith.mulf %1301, %1204 : vector<8x32xf32>
    %1303 = arith.addf %1297, %1302 : vector<8x32xf32>
    %cst_441 = arith.constant -1.400000e+00 : f32
    %1304 = vector.broadcast %cst_441 : f32 to vector<8x32xf32>
    %1305 = arith.subf %1104, %1304 : vector<8x32xf32>
    %cst_442 = arith.constant 1.250000e+00 : f32
    %1306 = vector.broadcast %cst_442 : f32 to vector<8x32xf32>
    %1307 = arith.mulf %1305, %1306 : vector<8x32xf32>
    %1308 = arith.mulf %1307, %1204 : vector<8x32xf32>
    %cst_443 = arith.constant -2.000000e-01 : f32
    %1309 = vector.broadcast %cst_443 : f32 to vector<8x32xf32>
    %1310 = arith.subf %1309, %1104 : vector<8x32xf32>
    %cst_444 = arith.constant 1.250000e+00 : f32
    %1311 = vector.broadcast %cst_444 : f32 to vector<8x32xf32>
    %1312 = arith.mulf %1310, %1311 : vector<8x32xf32>
    %1313 = arith.mulf %1312, %1215 : vector<8x32xf32>
    %1314 = arith.addf %1308, %1313 : vector<8x32xf32>
    %cst_445 = arith.constant -1.000000e+00 : f32
    %1315 = vector.broadcast %cst_445 : f32 to vector<8x32xf32>
    %1316 = arith.subf %1104, %1315 : vector<8x32xf32>
    %cst_446 = arith.constant 1.250000e+00 : f32
    %1317 = vector.broadcast %cst_446 : f32 to vector<8x32xf32>
    %1318 = arith.mulf %1316, %1317 : vector<8x32xf32>
    %1319 = arith.mulf %1318, %1215 : vector<8x32xf32>
    %cst_447 = arith.constant 2.000000e-01 : f32
    %1320 = vector.broadcast %cst_447 : f32 to vector<8x32xf32>
    %1321 = arith.subf %1320, %1104 : vector<8x32xf32>
    %cst_448 = arith.constant 1.250000e+00 : f32
    %1322 = vector.broadcast %cst_448 : f32 to vector<8x32xf32>
    %1323 = arith.mulf %1321, %1322 : vector<8x32xf32>
    %1324 = arith.mulf %1323, %1226 : vector<8x32xf32>
    %1325 = arith.addf %1319, %1324 : vector<8x32xf32>
    %cst_449 = arith.constant -6.000000e-01 : f32
    %1326 = vector.broadcast %cst_449 : f32 to vector<8x32xf32>
    %1327 = arith.subf %1104, %1326 : vector<8x32xf32>
    %cst_450 = arith.constant 1.250000e+00 : f32
    %1328 = vector.broadcast %cst_450 : f32 to vector<8x32xf32>
    %1329 = arith.mulf %1327, %1328 : vector<8x32xf32>
    %1330 = arith.mulf %1329, %1226 : vector<8x32xf32>
    %cst_451 = arith.constant 6.000000e-01 : f32
    %1331 = vector.broadcast %cst_451 : f32 to vector<8x32xf32>
    %1332 = arith.subf %1331, %1104 : vector<8x32xf32>
    %cst_452 = arith.constant 1.250000e+00 : f32
    %1333 = vector.broadcast %cst_452 : f32 to vector<8x32xf32>
    %1334 = arith.mulf %1332, %1333 : vector<8x32xf32>
    %1335 = arith.mulf %1334, %1237 : vector<8x32xf32>
    %1336 = arith.addf %1330, %1335 : vector<8x32xf32>
    %cst_453 = arith.constant -2.000000e-01 : f32
    %1337 = vector.broadcast %cst_453 : f32 to vector<8x32xf32>
    %1338 = arith.subf %1104, %1337 : vector<8x32xf32>
    %cst_454 = arith.constant 1.250000e+00 : f32
    %1339 = vector.broadcast %cst_454 : f32 to vector<8x32xf32>
    %1340 = arith.mulf %1338, %1339 : vector<8x32xf32>
    %1341 = arith.mulf %1340, %1237 : vector<8x32xf32>
    %cst_455 = arith.constant 1.000000e+00 : f32
    %1342 = vector.broadcast %cst_455 : f32 to vector<8x32xf32>
    %1343 = arith.subf %1342, %1104 : vector<8x32xf32>
    %cst_456 = arith.constant 1.250000e+00 : f32
    %1344 = vector.broadcast %cst_456 : f32 to vector<8x32xf32>
    %1345 = arith.mulf %1343, %1344 : vector<8x32xf32>
    %1346 = arith.mulf %1345, %1248 : vector<8x32xf32>
    %1347 = arith.addf %1341, %1346 : vector<8x32xf32>
    %cst_457 = arith.constant 2.000000e-01 : f32
    %1348 = vector.broadcast %cst_457 : f32 to vector<8x32xf32>
    %1349 = arith.subf %1104, %1348 : vector<8x32xf32>
    %cst_458 = arith.constant 1.250000e+00 : f32
    %1350 = vector.broadcast %cst_458 : f32 to vector<8x32xf32>
    %1351 = arith.mulf %1349, %1350 : vector<8x32xf32>
    %1352 = arith.mulf %1351, %1248 : vector<8x32xf32>
    %cst_459 = arith.constant 1.400000e+00 : f32
    %1353 = vector.broadcast %cst_459 : f32 to vector<8x32xf32>
    %1354 = arith.subf %1353, %1104 : vector<8x32xf32>
    %cst_460 = arith.constant 1.250000e+00 : f32
    %1355 = vector.broadcast %cst_460 : f32 to vector<8x32xf32>
    %1356 = arith.mulf %1354, %1355 : vector<8x32xf32>
    %1357 = arith.mulf %1356, %1259 : vector<8x32xf32>
    %1358 = arith.addf %1352, %1357 : vector<8x32xf32>
    %cst_461 = arith.constant 6.000000e-01 : f32
    %1359 = vector.broadcast %cst_461 : f32 to vector<8x32xf32>
    %1360 = arith.subf %1104, %1359 : vector<8x32xf32>
    %cst_462 = arith.constant 1.250000e+00 : f32
    %1361 = vector.broadcast %cst_462 : f32 to vector<8x32xf32>
    %1362 = arith.mulf %1360, %1361 : vector<8x32xf32>
    %1363 = arith.mulf %1362, %1259 : vector<8x32xf32>
    %cst_463 = arith.constant 1.800000e+00 : f32
    %1364 = vector.broadcast %cst_463 : f32 to vector<8x32xf32>
    %1365 = arith.subf %1364, %1104 : vector<8x32xf32>
    %cst_464 = arith.constant 1.250000e+00 : f32
    %1366 = vector.broadcast %cst_464 : f32 to vector<8x32xf32>
    %1367 = arith.mulf %1365, %1366 : vector<8x32xf32>
    %1368 = arith.mulf %1367, %1270 : vector<8x32xf32>
    %1369 = arith.addf %1363, %1368 : vector<8x32xf32>
    %cst_465 = arith.constant 1.000000e+00 : f32
    %1370 = vector.broadcast %cst_465 : f32 to vector<8x32xf32>
    %1371 = arith.subf %1104, %1370 : vector<8x32xf32>
    %cst_466 = arith.constant 1.250000e+00 : f32
    %1372 = vector.broadcast %cst_466 : f32 to vector<8x32xf32>
    %1373 = arith.mulf %1371, %1372 : vector<8x32xf32>
    %1374 = arith.mulf %1373, %1270 : vector<8x32xf32>
    %cst_467 = arith.constant 2.200000e+00 : f32
    %1375 = vector.broadcast %cst_467 : f32 to vector<8x32xf32>
    %1376 = arith.subf %1375, %1104 : vector<8x32xf32>
    %cst_468 = arith.constant 1.250000e+00 : f32
    %1377 = vector.broadcast %cst_468 : f32 to vector<8x32xf32>
    %1378 = arith.mulf %1376, %1377 : vector<8x32xf32>
    %1379 = arith.mulf %1378, %1281 : vector<8x32xf32>
    %1380 = arith.addf %1374, %1379 : vector<8x32xf32>
    %cst_469 = arith.constant -2.200000e+00 : f32
    %1381 = vector.broadcast %cst_469 : f32 to vector<8x32xf32>
    %1382 = arith.subf %1104, %1381 : vector<8x32xf32>
    %cst_470 = arith.constant 0.833333313 : f32
    %1383 = vector.broadcast %cst_470 : f32 to vector<8x32xf32>
    %1384 = arith.mulf %1382, %1383 : vector<8x32xf32>
    %1385 = arith.mulf %1384, %1292 : vector<8x32xf32>
    %cst_471 = arith.constant -6.000000e-01 : f32
    %1386 = vector.broadcast %cst_471 : f32 to vector<8x32xf32>
    %1387 = arith.subf %1386, %1104 : vector<8x32xf32>
    %cst_472 = arith.constant 0.833333313 : f32
    %1388 = vector.broadcast %cst_472 : f32 to vector<8x32xf32>
    %1389 = arith.mulf %1387, %1388 : vector<8x32xf32>
    %1390 = arith.mulf %1389, %1303 : vector<8x32xf32>
    %1391 = arith.addf %1385, %1390 : vector<8x32xf32>
    %cst_473 = arith.constant -1.800000e+00 : f32
    %1392 = vector.broadcast %cst_473 : f32 to vector<8x32xf32>
    %1393 = arith.subf %1104, %1392 : vector<8x32xf32>
    %cst_474 = arith.constant 0.833333313 : f32
    %1394 = vector.broadcast %cst_474 : f32 to vector<8x32xf32>
    %1395 = arith.mulf %1393, %1394 : vector<8x32xf32>
    %1396 = arith.mulf %1395, %1303 : vector<8x32xf32>
    %cst_475 = arith.constant -2.000000e-01 : f32
    %1397 = vector.broadcast %cst_475 : f32 to vector<8x32xf32>
    %1398 = arith.subf %1397, %1104 : vector<8x32xf32>
    %cst_476 = arith.constant 0.833333313 : f32
    %1399 = vector.broadcast %cst_476 : f32 to vector<8x32xf32>
    %1400 = arith.mulf %1398, %1399 : vector<8x32xf32>
    %1401 = arith.mulf %1400, %1314 : vector<8x32xf32>
    %1402 = arith.addf %1396, %1401 : vector<8x32xf32>
    %cst_477 = arith.constant -1.400000e+00 : f32
    %1403 = vector.broadcast %cst_477 : f32 to vector<8x32xf32>
    %1404 = arith.subf %1104, %1403 : vector<8x32xf32>
    %cst_478 = arith.constant 0.833333313 : f32
    %1405 = vector.broadcast %cst_478 : f32 to vector<8x32xf32>
    %1406 = arith.mulf %1404, %1405 : vector<8x32xf32>
    %1407 = arith.mulf %1406, %1314 : vector<8x32xf32>
    %cst_479 = arith.constant 2.000000e-01 : f32
    %1408 = vector.broadcast %cst_479 : f32 to vector<8x32xf32>
    %1409 = arith.subf %1408, %1104 : vector<8x32xf32>
    %cst_480 = arith.constant 0.833333313 : f32
    %1410 = vector.broadcast %cst_480 : f32 to vector<8x32xf32>
    %1411 = arith.mulf %1409, %1410 : vector<8x32xf32>
    %1412 = arith.mulf %1411, %1325 : vector<8x32xf32>
    %1413 = arith.addf %1407, %1412 : vector<8x32xf32>
    %cst_481 = arith.constant -1.000000e+00 : f32
    %1414 = vector.broadcast %cst_481 : f32 to vector<8x32xf32>
    %1415 = arith.subf %1104, %1414 : vector<8x32xf32>
    %cst_482 = arith.constant 0.833333313 : f32
    %1416 = vector.broadcast %cst_482 : f32 to vector<8x32xf32>
    %1417 = arith.mulf %1415, %1416 : vector<8x32xf32>
    %1418 = arith.mulf %1417, %1325 : vector<8x32xf32>
    %cst_483 = arith.constant 6.000000e-01 : f32
    %1419 = vector.broadcast %cst_483 : f32 to vector<8x32xf32>
    %1420 = arith.subf %1419, %1104 : vector<8x32xf32>
    %cst_484 = arith.constant 0.833333313 : f32
    %1421 = vector.broadcast %cst_484 : f32 to vector<8x32xf32>
    %1422 = arith.mulf %1420, %1421 : vector<8x32xf32>
    %1423 = arith.mulf %1422, %1336 : vector<8x32xf32>
    %1424 = arith.addf %1418, %1423 : vector<8x32xf32>
    %cst_485 = arith.constant -6.000000e-01 : f32
    %1425 = vector.broadcast %cst_485 : f32 to vector<8x32xf32>
    %1426 = arith.subf %1104, %1425 : vector<8x32xf32>
    %cst_486 = arith.constant 0.833333313 : f32
    %1427 = vector.broadcast %cst_486 : f32 to vector<8x32xf32>
    %1428 = arith.mulf %1426, %1427 : vector<8x32xf32>
    %1429 = arith.mulf %1428, %1336 : vector<8x32xf32>
    %cst_487 = arith.constant 1.000000e+00 : f32
    %1430 = vector.broadcast %cst_487 : f32 to vector<8x32xf32>
    %1431 = arith.subf %1430, %1104 : vector<8x32xf32>
    %cst_488 = arith.constant 0.833333313 : f32
    %1432 = vector.broadcast %cst_488 : f32 to vector<8x32xf32>
    %1433 = arith.mulf %1431, %1432 : vector<8x32xf32>
    %1434 = arith.mulf %1433, %1347 : vector<8x32xf32>
    %1435 = arith.addf %1429, %1434 : vector<8x32xf32>
    %cst_489 = arith.constant -2.000000e-01 : f32
    %1436 = vector.broadcast %cst_489 : f32 to vector<8x32xf32>
    %1437 = arith.subf %1104, %1436 : vector<8x32xf32>
    %cst_490 = arith.constant 0.833333313 : f32
    %1438 = vector.broadcast %cst_490 : f32 to vector<8x32xf32>
    %1439 = arith.mulf %1437, %1438 : vector<8x32xf32>
    %1440 = arith.mulf %1439, %1347 : vector<8x32xf32>
    %cst_491 = arith.constant 1.400000e+00 : f32
    %1441 = vector.broadcast %cst_491 : f32 to vector<8x32xf32>
    %1442 = arith.subf %1441, %1104 : vector<8x32xf32>
    %cst_492 = arith.constant 0.833333313 : f32
    %1443 = vector.broadcast %cst_492 : f32 to vector<8x32xf32>
    %1444 = arith.mulf %1442, %1443 : vector<8x32xf32>
    %1445 = arith.mulf %1444, %1358 : vector<8x32xf32>
    %1446 = arith.addf %1440, %1445 : vector<8x32xf32>
    %cst_493 = arith.constant 2.000000e-01 : f32
    %1447 = vector.broadcast %cst_493 : f32 to vector<8x32xf32>
    %1448 = arith.subf %1104, %1447 : vector<8x32xf32>
    %cst_494 = arith.constant 0.833333313 : f32
    %1449 = vector.broadcast %cst_494 : f32 to vector<8x32xf32>
    %1450 = arith.mulf %1448, %1449 : vector<8x32xf32>
    %1451 = arith.mulf %1450, %1358 : vector<8x32xf32>
    %cst_495 = arith.constant 1.800000e+00 : f32
    %1452 = vector.broadcast %cst_495 : f32 to vector<8x32xf32>
    %1453 = arith.subf %1452, %1104 : vector<8x32xf32>
    %cst_496 = arith.constant 0.833333313 : f32
    %1454 = vector.broadcast %cst_496 : f32 to vector<8x32xf32>
    %1455 = arith.mulf %1453, %1454 : vector<8x32xf32>
    %1456 = arith.mulf %1455, %1369 : vector<8x32xf32>
    %1457 = arith.addf %1451, %1456 : vector<8x32xf32>
    %cst_497 = arith.constant 6.000000e-01 : f32
    %1458 = vector.broadcast %cst_497 : f32 to vector<8x32xf32>
    %1459 = arith.subf %1104, %1458 : vector<8x32xf32>
    %cst_498 = arith.constant 0.833333313 : f32
    %1460 = vector.broadcast %cst_498 : f32 to vector<8x32xf32>
    %1461 = arith.mulf %1459, %1460 : vector<8x32xf32>
    %1462 = arith.mulf %1461, %1369 : vector<8x32xf32>
    %cst_499 = arith.constant 2.200000e+00 : f32
    %1463 = vector.broadcast %cst_499 : f32 to vector<8x32xf32>
    %1464 = arith.subf %1463, %1104 : vector<8x32xf32>
    %cst_500 = arith.constant 0.833333313 : f32
    %1465 = vector.broadcast %cst_500 : f32 to vector<8x32xf32>
    %1466 = arith.mulf %1464, %1465 : vector<8x32xf32>
    %1467 = arith.mulf %1466, %1380 : vector<8x32xf32>
    %1468 = arith.addf %1462, %1467 : vector<8x32xf32>
    %1469 = tpu.concatenate %1112, %1391, %1402, %1413, %1424, %1435, %1446, %1457, %1468 in 1 : vector<8x32xf32>, vector<8x32xf32>, vector<8x32xf32>, vector<8x32xf32>, vector<8x32xf32>, vector<8x32xf32>, vector<8x32xf32>, vector<8x32xf32>, vector<8x32xf32> -> vector<8x288xf32>
    %1470 = arith.truncf %1469 : vector<8x288xf32> to vector<8x288xbf16>
    %c0_501 = arith.constant 0 : index
    %c0_502 = arith.constant 0 : index
    %1471 = vector.load %arg5[%c0_501, %c0_502] : memref<288x32xbf16, #tpu.memory_space<vmem>>, vector<288x32xbf16>
    %cst_503 = arith.constant dense<0.000000e+00> : vector<8x32xf32>
    %1472 = tpu.matmul %1470, %1471, %cst_503 {dimension_numbers = #tpu.dot_dimension_numbers<[1], [0], [0], [1], [0, 0, 1, 1], [], []>} : vector<8x288xbf16>, vector<288x32xbf16>, vector<8x32xf32> -> vector<8x32xf32>
    %cst_504 = arith.constant 5.000000e-01 : f32
    %1473 = vector.broadcast %cst_504 : f32 to vector<8x32xf32>
    %1474 = arith.mulf %1473, %1472 : vector<8x32xf32>
    %cst_505 = arith.constant 5.000000e-01 : f32
    %1475 = vector.broadcast %cst_505 : f32 to vector<8x32xf32>
    %1476 = arith.mulf %1475, %1472 : vector<8x32xf32>
    %1477 = math.tanh %1476 : vector<8x32xf32>
    %cst_506 = arith.constant 1.000000e+00 : f32
    %1478 = vector.broadcast %cst_506 : f32 to vector<8x32xf32>
    %1479 = arith.addf %1478, %1477 : vector<8x32xf32>
    %1480 = arith.mulf %1474, %1479 : vector<8x32xf32>
    %cst_507 = arith.constant -2.200000e+00 : f32
    %1481 = vector.broadcast %cst_507 : f32 to vector<8x32xf32>
    %1482 = arith.cmpf oge, %1472, %1481 : vector<8x32xf32>
    %1483 = arith.extui %1482 : vector<8x32xi1> to vector<8x32xi32>
    %1484 = arith.sitofp %1483 : vector<8x32xi32> to vector<8x32xf32>
    %cst_508 = arith.constant -1.800000e+00 : f32
    %1485 = vector.broadcast %cst_508 : f32 to vector<8x32xf32>
    %1486 = arith.cmpf oge, %1472, %1485 : vector<8x32xf32>
    %1487 = arith.extui %1486 : vector<8x32xi1> to vector<8x32xi32>
    %1488 = arith.sitofp %1487 : vector<8x32xi32> to vector<8x32xf32>
    %cst_509 = arith.constant -1.400000e+00 : f32
    %1489 = vector.broadcast %cst_509 : f32 to vector<8x32xf32>
    %1490 = arith.cmpf oge, %1472, %1489 : vector<8x32xf32>
    %1491 = arith.extui %1490 : vector<8x32xi1> to vector<8x32xi32>
    %1492 = arith.sitofp %1491 : vector<8x32xi32> to vector<8x32xf32>
    %cst_510 = arith.constant -1.000000e+00 : f32
    %1493 = vector.broadcast %cst_510 : f32 to vector<8x32xf32>
    %1494 = arith.cmpf oge, %1472, %1493 : vector<8x32xf32>
    %1495 = arith.extui %1494 : vector<8x32xi1> to vector<8x32xi32>
    %1496 = arith.sitofp %1495 : vector<8x32xi32> to vector<8x32xf32>
    %cst_511 = arith.constant -6.000000e-01 : f32
    %1497 = vector.broadcast %cst_511 : f32 to vector<8x32xf32>
    %1498 = arith.cmpf oge, %1472, %1497 : vector<8x32xf32>
    %1499 = arith.extui %1498 : vector<8x32xi1> to vector<8x32xi32>
    %1500 = arith.sitofp %1499 : vector<8x32xi32> to vector<8x32xf32>
    %cst_512 = arith.constant -2.000000e-01 : f32
    %1501 = vector.broadcast %cst_512 : f32 to vector<8x32xf32>
    %1502 = arith.cmpf oge, %1472, %1501 : vector<8x32xf32>
    %1503 = arith.extui %1502 : vector<8x32xi1> to vector<8x32xi32>
    %1504 = arith.sitofp %1503 : vector<8x32xi32> to vector<8x32xf32>
    %cst_513 = arith.constant 2.000000e-01 : f32
    %1505 = vector.broadcast %cst_513 : f32 to vector<8x32xf32>
    %1506 = arith.cmpf oge, %1472, %1505 : vector<8x32xf32>
    %1507 = arith.extui %1506 : vector<8x32xi1> to vector<8x32xi32>
    %1508 = arith.sitofp %1507 : vector<8x32xi32> to vector<8x32xf32>
    %cst_514 = arith.constant 6.000000e-01 : f32
    %1509 = vector.broadcast %cst_514 : f32 to vector<8x32xf32>
    %1510 = arith.cmpf oge, %1472, %1509 : vector<8x32xf32>
    %1511 = arith.extui %1510 : vector<8x32xi1> to vector<8x32xi32>
    %1512 = arith.sitofp %1511 : vector<8x32xi32> to vector<8x32xf32>
    %cst_515 = arith.constant 1.000000e+00 : f32
    %1513 = vector.broadcast %cst_515 : f32 to vector<8x32xf32>
    %1514 = arith.cmpf oge, %1472, %1513 : vector<8x32xf32>
    %1515 = arith.extui %1514 : vector<8x32xi1> to vector<8x32xi32>
    %1516 = arith.sitofp %1515 : vector<8x32xi32> to vector<8x32xf32>
    %cst_516 = arith.constant 1.400000e+00 : f32
    %1517 = vector.broadcast %cst_516 : f32 to vector<8x32xf32>
    %1518 = arith.cmpf oge, %1472, %1517 : vector<8x32xf32>
    %1519 = arith.extui %1518 : vector<8x32xi1> to vector<8x32xi32>
    %1520 = arith.sitofp %1519 : vector<8x32xi32> to vector<8x32xf32>
    %cst_517 = arith.constant 1.800000e+00 : f32
    %1521 = vector.broadcast %cst_517 : f32 to vector<8x32xf32>
    %1522 = arith.cmpf oge, %1472, %1521 : vector<8x32xf32>
    %1523 = arith.extui %1522 : vector<8x32xi1> to vector<8x32xi32>
    %1524 = arith.sitofp %1523 : vector<8x32xi32> to vector<8x32xf32>
    %cst_518 = arith.constant 2.200000e+00 : f32
    %1525 = vector.broadcast %cst_518 : f32 to vector<8x32xf32>
    %1526 = arith.cmpf oge, %1472, %1525 : vector<8x32xf32>
    %1527 = arith.extui %1526 : vector<8x32xi1> to vector<8x32xi32>
    %1528 = arith.sitofp %1527 : vector<8x32xi32> to vector<8x32xf32>
    %1529 = arith.subf %1484, %1488 : vector<8x32xf32>
    %1530 = arith.subf %1488, %1492 : vector<8x32xf32>
    %1531 = arith.subf %1492, %1496 : vector<8x32xf32>
    %1532 = arith.subf %1496, %1500 : vector<8x32xf32>
    %1533 = arith.subf %1500, %1504 : vector<8x32xf32>
    %1534 = arith.subf %1504, %1508 : vector<8x32xf32>
    %1535 = arith.subf %1508, %1512 : vector<8x32xf32>
    %1536 = arith.subf %1512, %1516 : vector<8x32xf32>
    %1537 = arith.subf %1516, %1520 : vector<8x32xf32>
    %1538 = arith.subf %1520, %1524 : vector<8x32xf32>
    %1539 = arith.subf %1524, %1528 : vector<8x32xf32>
    %cst_519 = arith.constant -2.200000e+00 : f32
    %1540 = vector.broadcast %cst_519 : f32 to vector<8x32xf32>
    %1541 = arith.subf %1472, %1540 : vector<8x32xf32>
    %cst_520 = arith.constant 2.500000e+00 : f32
    %1542 = vector.broadcast %cst_520 : f32 to vector<8x32xf32>
    %1543 = arith.mulf %1541, %1542 : vector<8x32xf32>
    %1544 = arith.mulf %1543, %1529 : vector<8x32xf32>
    %cst_521 = arith.constant -1.400000e+00 : f32
    %1545 = vector.broadcast %cst_521 : f32 to vector<8x32xf32>
    %1546 = arith.subf %1545, %1472 : vector<8x32xf32>
    %cst_522 = arith.constant 2.500000e+00 : f32
    %1547 = vector.broadcast %cst_522 : f32 to vector<8x32xf32>
    %1548 = arith.mulf %1546, %1547 : vector<8x32xf32>
    %1549 = arith.mulf %1548, %1530 : vector<8x32xf32>
    %1550 = arith.addf %1544, %1549 : vector<8x32xf32>
    %cst_523 = arith.constant -1.800000e+00 : f32
    %1551 = vector.broadcast %cst_523 : f32 to vector<8x32xf32>
    %1552 = arith.subf %1472, %1551 : vector<8x32xf32>
    %cst_524 = arith.constant 2.500000e+00 : f32
    %1553 = vector.broadcast %cst_524 : f32 to vector<8x32xf32>
    %1554 = arith.mulf %1552, %1553 : vector<8x32xf32>
    %1555 = arith.mulf %1554, %1530 : vector<8x32xf32>
    %cst_525 = arith.constant -1.000000e+00 : f32
    %1556 = vector.broadcast %cst_525 : f32 to vector<8x32xf32>
    %1557 = arith.subf %1556, %1472 : vector<8x32xf32>
    %cst_526 = arith.constant 2.500000e+00 : f32
    %1558 = vector.broadcast %cst_526 : f32 to vector<8x32xf32>
    %1559 = arith.mulf %1557, %1558 : vector<8x32xf32>
    %1560 = arith.mulf %1559, %1531 : vector<8x32xf32>
    %1561 = arith.addf %1555, %1560 : vector<8x32xf32>
    %cst_527 = arith.constant -1.400000e+00 : f32
    %1562 = vector.broadcast %cst_527 : f32 to vector<8x32xf32>
    %1563 = arith.subf %1472, %1562 : vector<8x32xf32>
    %cst_528 = arith.constant 2.500000e+00 : f32
    %1564 = vector.broadcast %cst_528 : f32 to vector<8x32xf32>
    %1565 = arith.mulf %1563, %1564 : vector<8x32xf32>
    %1566 = arith.mulf %1565, %1531 : vector<8x32xf32>
    %cst_529 = arith.constant -6.000000e-01 : f32
    %1567 = vector.broadcast %cst_529 : f32 to vector<8x32xf32>
    %1568 = arith.subf %1567, %1472 : vector<8x32xf32>
    %cst_530 = arith.constant 2.500000e+00 : f32
    %1569 = vector.broadcast %cst_530 : f32 to vector<8x32xf32>
    %1570 = arith.mulf %1568, %1569 : vector<8x32xf32>
    %1571 = arith.mulf %1570, %1532 : vector<8x32xf32>
    %1572 = arith.addf %1566, %1571 : vector<8x32xf32>
    %cst_531 = arith.constant -1.000000e+00 : f32
    %1573 = vector.broadcast %cst_531 : f32 to vector<8x32xf32>
    %1574 = arith.subf %1472, %1573 : vector<8x32xf32>
    %cst_532 = arith.constant 2.500000e+00 : f32
    %1575 = vector.broadcast %cst_532 : f32 to vector<8x32xf32>
    %1576 = arith.mulf %1574, %1575 : vector<8x32xf32>
    %1577 = arith.mulf %1576, %1532 : vector<8x32xf32>
    %cst_533 = arith.constant -2.000000e-01 : f32
    %1578 = vector.broadcast %cst_533 : f32 to vector<8x32xf32>
    %1579 = arith.subf %1578, %1472 : vector<8x32xf32>
    %cst_534 = arith.constant 2.500000e+00 : f32
    %1580 = vector.broadcast %cst_534 : f32 to vector<8x32xf32>
    %1581 = arith.mulf %1579, %1580 : vector<8x32xf32>
    %1582 = arith.mulf %1581, %1533 : vector<8x32xf32>
    %1583 = arith.addf %1577, %1582 : vector<8x32xf32>
    %cst_535 = arith.constant -6.000000e-01 : f32
    %1584 = vector.broadcast %cst_535 : f32 to vector<8x32xf32>
    %1585 = arith.subf %1472, %1584 : vector<8x32xf32>
    %cst_536 = arith.constant 2.500000e+00 : f32
    %1586 = vector.broadcast %cst_536 : f32 to vector<8x32xf32>
    %1587 = arith.mulf %1585, %1586 : vector<8x32xf32>
    %1588 = arith.mulf %1587, %1533 : vector<8x32xf32>
    %cst_537 = arith.constant 2.000000e-01 : f32
    %1589 = vector.broadcast %cst_537 : f32 to vector<8x32xf32>
    %1590 = arith.subf %1589, %1472 : vector<8x32xf32>
    %cst_538 = arith.constant 2.500000e+00 : f32
    %1591 = vector.broadcast %cst_538 : f32 to vector<8x32xf32>
    %1592 = arith.mulf %1590, %1591 : vector<8x32xf32>
    %1593 = arith.mulf %1592, %1534 : vector<8x32xf32>
    %1594 = arith.addf %1588, %1593 : vector<8x32xf32>
    %cst_539 = arith.constant -2.000000e-01 : f32
    %1595 = vector.broadcast %cst_539 : f32 to vector<8x32xf32>
    %1596 = arith.subf %1472, %1595 : vector<8x32xf32>
    %cst_540 = arith.constant 2.500000e+00 : f32
    %1597 = vector.broadcast %cst_540 : f32 to vector<8x32xf32>
    %1598 = arith.mulf %1596, %1597 : vector<8x32xf32>
    %1599 = arith.mulf %1598, %1534 : vector<8x32xf32>
    %cst_541 = arith.constant 6.000000e-01 : f32
    %1600 = vector.broadcast %cst_541 : f32 to vector<8x32xf32>
    %1601 = arith.subf %1600, %1472 : vector<8x32xf32>
    %cst_542 = arith.constant 2.500000e+00 : f32
    %1602 = vector.broadcast %cst_542 : f32 to vector<8x32xf32>
    %1603 = arith.mulf %1601, %1602 : vector<8x32xf32>
    %1604 = arith.mulf %1603, %1535 : vector<8x32xf32>
    %1605 = arith.addf %1599, %1604 : vector<8x32xf32>
    %cst_543 = arith.constant 2.000000e-01 : f32
    %1606 = vector.broadcast %cst_543 : f32 to vector<8x32xf32>
    %1607 = arith.subf %1472, %1606 : vector<8x32xf32>
    %cst_544 = arith.constant 2.500000e+00 : f32
    %1608 = vector.broadcast %cst_544 : f32 to vector<8x32xf32>
    %1609 = arith.mulf %1607, %1608 : vector<8x32xf32>
    %1610 = arith.mulf %1609, %1535 : vector<8x32xf32>
    %cst_545 = arith.constant 1.000000e+00 : f32
    %1611 = vector.broadcast %cst_545 : f32 to vector<8x32xf32>
    %1612 = arith.subf %1611, %1472 : vector<8x32xf32>
    %cst_546 = arith.constant 2.500000e+00 : f32
    %1613 = vector.broadcast %cst_546 : f32 to vector<8x32xf32>
    %1614 = arith.mulf %1612, %1613 : vector<8x32xf32>
    %1615 = arith.mulf %1614, %1536 : vector<8x32xf32>
    %1616 = arith.addf %1610, %1615 : vector<8x32xf32>
    %cst_547 = arith.constant 6.000000e-01 : f32
    %1617 = vector.broadcast %cst_547 : f32 to vector<8x32xf32>
    %1618 = arith.subf %1472, %1617 : vector<8x32xf32>
    %cst_548 = arith.constant 2.500000e+00 : f32
    %1619 = vector.broadcast %cst_548 : f32 to vector<8x32xf32>
    %1620 = arith.mulf %1618, %1619 : vector<8x32xf32>
    %1621 = arith.mulf %1620, %1536 : vector<8x32xf32>
    %cst_549 = arith.constant 1.400000e+00 : f32
    %1622 = vector.broadcast %cst_549 : f32 to vector<8x32xf32>
    %1623 = arith.subf %1622, %1472 : vector<8x32xf32>
    %cst_550 = arith.constant 2.500000e+00 : f32
    %1624 = vector.broadcast %cst_550 : f32 to vector<8x32xf32>
    %1625 = arith.mulf %1623, %1624 : vector<8x32xf32>
    %1626 = arith.mulf %1625, %1537 : vector<8x32xf32>
    %1627 = arith.addf %1621, %1626 : vector<8x32xf32>
    %cst_551 = arith.constant 1.000000e+00 : f32
    %1628 = vector.broadcast %cst_551 : f32 to vector<8x32xf32>
    %1629 = arith.subf %1472, %1628 : vector<8x32xf32>
    %cst_552 = arith.constant 2.500000e+00 : f32
    %1630 = vector.broadcast %cst_552 : f32 to vector<8x32xf32>
    %1631 = arith.mulf %1629, %1630 : vector<8x32xf32>
    %1632 = arith.mulf %1631, %1537 : vector<8x32xf32>
    %cst_553 = arith.constant 1.800000e+00 : f32
    %1633 = vector.broadcast %cst_553 : f32 to vector<8x32xf32>
    %1634 = arith.subf %1633, %1472 : vector<8x32xf32>
    %cst_554 = arith.constant 2.500000e+00 : f32
    %1635 = vector.broadcast %cst_554 : f32 to vector<8x32xf32>
    %1636 = arith.mulf %1634, %1635 : vector<8x32xf32>
    %1637 = arith.mulf %1636, %1538 : vector<8x32xf32>
    %1638 = arith.addf %1632, %1637 : vector<8x32xf32>
    %cst_555 = arith.constant 1.400000e+00 : f32
    %1639 = vector.broadcast %cst_555 : f32 to vector<8x32xf32>
    %1640 = arith.subf %1472, %1639 : vector<8x32xf32>
    %cst_556 = arith.constant 2.500000e+00 : f32
    %1641 = vector.broadcast %cst_556 : f32 to vector<8x32xf32>
    %1642 = arith.mulf %1640, %1641 : vector<8x32xf32>
    %1643 = arith.mulf %1642, %1538 : vector<8x32xf32>
    %cst_557 = arith.constant 2.200000e+00 : f32
    %1644 = vector.broadcast %cst_557 : f32 to vector<8x32xf32>
    %1645 = arith.subf %1644, %1472 : vector<8x32xf32>
    %cst_558 = arith.constant 2.500000e+00 : f32
    %1646 = vector.broadcast %cst_558 : f32 to vector<8x32xf32>
    %1647 = arith.mulf %1645, %1646 : vector<8x32xf32>
    %1648 = arith.mulf %1647, %1539 : vector<8x32xf32>
    %1649 = arith.addf %1643, %1648 : vector<8x32xf32>
    %cst_559 = arith.constant -2.200000e+00 : f32
    %1650 = vector.broadcast %cst_559 : f32 to vector<8x32xf32>
    %1651 = arith.subf %1472, %1650 : vector<8x32xf32>
    %cst_560 = arith.constant 1.250000e+00 : f32
    %1652 = vector.broadcast %cst_560 : f32 to vector<8x32xf32>
    %1653 = arith.mulf %1651, %1652 : vector<8x32xf32>
    %1654 = arith.mulf %1653, %1550 : vector<8x32xf32>
    %cst_561 = arith.constant -1.000000e+00 : f32
    %1655 = vector.broadcast %cst_561 : f32 to vector<8x32xf32>
    %1656 = arith.subf %1655, %1472 : vector<8x32xf32>
    %cst_562 = arith.constant 1.250000e+00 : f32
    %1657 = vector.broadcast %cst_562 : f32 to vector<8x32xf32>
    %1658 = arith.mulf %1656, %1657 : vector<8x32xf32>
    %1659 = arith.mulf %1658, %1561 : vector<8x32xf32>
    %1660 = arith.addf %1654, %1659 : vector<8x32xf32>
    %cst_563 = arith.constant -1.800000e+00 : f32
    %1661 = vector.broadcast %cst_563 : f32 to vector<8x32xf32>
    %1662 = arith.subf %1472, %1661 : vector<8x32xf32>
    %cst_564 = arith.constant 1.250000e+00 : f32
    %1663 = vector.broadcast %cst_564 : f32 to vector<8x32xf32>
    %1664 = arith.mulf %1662, %1663 : vector<8x32xf32>
    %1665 = arith.mulf %1664, %1561 : vector<8x32xf32>
    %cst_565 = arith.constant -6.000000e-01 : f32
    %1666 = vector.broadcast %cst_565 : f32 to vector<8x32xf32>
    %1667 = arith.subf %1666, %1472 : vector<8x32xf32>
    %cst_566 = arith.constant 1.250000e+00 : f32
    %1668 = vector.broadcast %cst_566 : f32 to vector<8x32xf32>
    %1669 = arith.mulf %1667, %1668 : vector<8x32xf32>
    %1670 = arith.mulf %1669, %1572 : vector<8x32xf32>
    %1671 = arith.addf %1665, %1670 : vector<8x32xf32>
    %cst_567 = arith.constant -1.400000e+00 : f32
    %1672 = vector.broadcast %cst_567 : f32 to vector<8x32xf32>
    %1673 = arith.subf %1472, %1672 : vector<8x32xf32>
    %cst_568 = arith.constant 1.250000e+00 : f32
    %1674 = vector.broadcast %cst_568 : f32 to vector<8x32xf32>
    %1675 = arith.mulf %1673, %1674 : vector<8x32xf32>
    %1676 = arith.mulf %1675, %1572 : vector<8x32xf32>
    %cst_569 = arith.constant -2.000000e-01 : f32
    %1677 = vector.broadcast %cst_569 : f32 to vector<8x32xf32>
    %1678 = arith.subf %1677, %1472 : vector<8x32xf32>
    %cst_570 = arith.constant 1.250000e+00 : f32
    %1679 = vector.broadcast %cst_570 : f32 to vector<8x32xf32>
    %1680 = arith.mulf %1678, %1679 : vector<8x32xf32>
    %1681 = arith.mulf %1680, %1583 : vector<8x32xf32>
    %1682 = arith.addf %1676, %1681 : vector<8x32xf32>
    %cst_571 = arith.constant -1.000000e+00 : f32
    %1683 = vector.broadcast %cst_571 : f32 to vector<8x32xf32>
    %1684 = arith.subf %1472, %1683 : vector<8x32xf32>
    %cst_572 = arith.constant 1.250000e+00 : f32
    %1685 = vector.broadcast %cst_572 : f32 to vector<8x32xf32>
    %1686 = arith.mulf %1684, %1685 : vector<8x32xf32>
    %1687 = arith.mulf %1686, %1583 : vector<8x32xf32>
    %cst_573 = arith.constant 2.000000e-01 : f32
    %1688 = vector.broadcast %cst_573 : f32 to vector<8x32xf32>
    %1689 = arith.subf %1688, %1472 : vector<8x32xf32>
    %cst_574 = arith.constant 1.250000e+00 : f32
    %1690 = vector.broadcast %cst_574 : f32 to vector<8x32xf32>
    %1691 = arith.mulf %1689, %1690 : vector<8x32xf32>
    %1692 = arith.mulf %1691, %1594 : vector<8x32xf32>
    %1693 = arith.addf %1687, %1692 : vector<8x32xf32>
    %cst_575 = arith.constant -6.000000e-01 : f32
    %1694 = vector.broadcast %cst_575 : f32 to vector<8x32xf32>
    %1695 = arith.subf %1472, %1694 : vector<8x32xf32>
    %cst_576 = arith.constant 1.250000e+00 : f32
    %1696 = vector.broadcast %cst_576 : f32 to vector<8x32xf32>
    %1697 = arith.mulf %1695, %1696 : vector<8x32xf32>
    %1698 = arith.mulf %1697, %1594 : vector<8x32xf32>
    %cst_577 = arith.constant 6.000000e-01 : f32
    %1699 = vector.broadcast %cst_577 : f32 to vector<8x32xf32>
    %1700 = arith.subf %1699, %1472 : vector<8x32xf32>
    %cst_578 = arith.constant 1.250000e+00 : f32
    %1701 = vector.broadcast %cst_578 : f32 to vector<8x32xf32>
    %1702 = arith.mulf %1700, %1701 : vector<8x32xf32>
    %1703 = arith.mulf %1702, %1605 : vector<8x32xf32>
    %1704 = arith.addf %1698, %1703 : vector<8x32xf32>
    %cst_579 = arith.constant -2.000000e-01 : f32
    %1705 = vector.broadcast %cst_579 : f32 to vector<8x32xf32>
    %1706 = arith.subf %1472, %1705 : vector<8x32xf32>
    %cst_580 = arith.constant 1.250000e+00 : f32
    %1707 = vector.broadcast %cst_580 : f32 to vector<8x32xf32>
    %1708 = arith.mulf %1706, %1707 : vector<8x32xf32>
    %1709 = arith.mulf %1708, %1605 : vector<8x32xf32>
    %cst_581 = arith.constant 1.000000e+00 : f32
    %1710 = vector.broadcast %cst_581 : f32 to vector<8x32xf32>
    %1711 = arith.subf %1710, %1472 : vector<8x32xf32>
    %cst_582 = arith.constant 1.250000e+00 : f32
    %1712 = vector.broadcast %cst_582 : f32 to vector<8x32xf32>
    %1713 = arith.mulf %1711, %1712 : vector<8x32xf32>
    %1714 = arith.mulf %1713, %1616 : vector<8x32xf32>
    %1715 = arith.addf %1709, %1714 : vector<8x32xf32>
    %cst_583 = arith.constant 2.000000e-01 : f32
    %1716 = vector.broadcast %cst_583 : f32 to vector<8x32xf32>
    %1717 = arith.subf %1472, %1716 : vector<8x32xf32>
    %cst_584 = arith.constant 1.250000e+00 : f32
    %1718 = vector.broadcast %cst_584 : f32 to vector<8x32xf32>
    %1719 = arith.mulf %1717, %1718 : vector<8x32xf32>
    %1720 = arith.mulf %1719, %1616 : vector<8x32xf32>
    %cst_585 = arith.constant 1.400000e+00 : f32
    %1721 = vector.broadcast %cst_585 : f32 to vector<8x32xf32>
    %1722 = arith.subf %1721, %1472 : vector<8x32xf32>
    %cst_586 = arith.constant 1.250000e+00 : f32
    %1723 = vector.broadcast %cst_586 : f32 to vector<8x32xf32>
    %1724 = arith.mulf %1722, %1723 : vector<8x32xf32>
    %1725 = arith.mulf %1724, %1627 : vector<8x32xf32>
    %1726 = arith.addf %1720, %1725 : vector<8x32xf32>
    %cst_587 = arith.constant 6.000000e-01 : f32
    %1727 = vector.broadcast %cst_587 : f32 to vector<8x32xf32>
    %1728 = arith.subf %1472, %1727 : vector<8x32xf32>
    %cst_588 = arith.constant 1.250000e+00 : f32
    %1729 = vector.broadcast %cst_588 : f32 to vector<8x32xf32>
    %1730 = arith.mulf %1728, %1729 : vector<8x32xf32>
    %1731 = arith.mulf %1730, %1627 : vector<8x32xf32>
    %cst_589 = arith.constant 1.800000e+00 : f32
    %1732 = vector.broadcast %cst_589 : f32 to vector<8x32xf32>
    %1733 = arith.subf %1732, %1472 : vector<8x32xf32>
    %cst_590 = arith.constant 1.250000e+00 : f32
    %1734 = vector.broadcast %cst_590 : f32 to vector<8x32xf32>
    %1735 = arith.mulf %1733, %1734 : vector<8x32xf32>
    %1736 = arith.mulf %1735, %1638 : vector<8x32xf32>
    %1737 = arith.addf %1731, %1736 : vector<8x32xf32>
    %cst_591 = arith.constant 1.000000e+00 : f32
    %1738 = vector.broadcast %cst_591 : f32 to vector<8x32xf32>
    %1739 = arith.subf %1472, %1738 : vector<8x32xf32>
    %cst_592 = arith.constant 1.250000e+00 : f32
    %1740 = vector.broadcast %cst_592 : f32 to vector<8x32xf32>
    %1741 = arith.mulf %1739, %1740 : vector<8x32xf32>
    %1742 = arith.mulf %1741, %1638 : vector<8x32xf32>
    %cst_593 = arith.constant 2.200000e+00 : f32
    %1743 = vector.broadcast %cst_593 : f32 to vector<8x32xf32>
    %1744 = arith.subf %1743, %1472 : vector<8x32xf32>
    %cst_594 = arith.constant 1.250000e+00 : f32
    %1745 = vector.broadcast %cst_594 : f32 to vector<8x32xf32>
    %1746 = arith.mulf %1744, %1745 : vector<8x32xf32>
    %1747 = arith.mulf %1746, %1649 : vector<8x32xf32>
    %1748 = arith.addf %1742, %1747 : vector<8x32xf32>
    %cst_595 = arith.constant -2.200000e+00 : f32
    %1749 = vector.broadcast %cst_595 : f32 to vector<8x32xf32>
    %1750 = arith.subf %1472, %1749 : vector<8x32xf32>
    %cst_596 = arith.constant 0.833333313 : f32
    %1751 = vector.broadcast %cst_596 : f32 to vector<8x32xf32>
    %1752 = arith.mulf %1750, %1751 : vector<8x32xf32>
    %1753 = arith.mulf %1752, %1660 : vector<8x32xf32>
    %cst_597 = arith.constant -6.000000e-01 : f32
    %1754 = vector.broadcast %cst_597 : f32 to vector<8x32xf32>
    %1755 = arith.subf %1754, %1472 : vector<8x32xf32>
    %cst_598 = arith.constant 0.833333313 : f32
    %1756 = vector.broadcast %cst_598 : f32 to vector<8x32xf32>
    %1757 = arith.mulf %1755, %1756 : vector<8x32xf32>
    %1758 = arith.mulf %1757, %1671 : vector<8x32xf32>
    %1759 = arith.addf %1753, %1758 : vector<8x32xf32>
    %cst_599 = arith.constant -1.800000e+00 : f32
    %1760 = vector.broadcast %cst_599 : f32 to vector<8x32xf32>
    %1761 = arith.subf %1472, %1760 : vector<8x32xf32>
    %cst_600 = arith.constant 0.833333313 : f32
    %1762 = vector.broadcast %cst_600 : f32 to vector<8x32xf32>
    %1763 = arith.mulf %1761, %1762 : vector<8x32xf32>
    %1764 = arith.mulf %1763, %1671 : vector<8x32xf32>
    %cst_601 = arith.constant -2.000000e-01 : f32
    %1765 = vector.broadcast %cst_601 : f32 to vector<8x32xf32>
    %1766 = arith.subf %1765, %1472 : vector<8x32xf32>
    %cst_602 = arith.constant 0.833333313 : f32
    %1767 = vector.broadcast %cst_602 : f32 to vector<8x32xf32>
    %1768 = arith.mulf %1766, %1767 : vector<8x32xf32>
    %1769 = arith.mulf %1768, %1682 : vector<8x32xf32>
    %1770 = arith.addf %1764, %1769 : vector<8x32xf32>
    %cst_603 = arith.constant -1.400000e+00 : f32
    %1771 = vector.broadcast %cst_603 : f32 to vector<8x32xf32>
    %1772 = arith.subf %1472, %1771 : vector<8x32xf32>
    %cst_604 = arith.constant 0.833333313 : f32
    %1773 = vector.broadcast %cst_604 : f32 to vector<8x32xf32>
    %1774 = arith.mulf %1772, %1773 : vector<8x32xf32>
    %1775 = arith.mulf %1774, %1682 : vector<8x32xf32>
    %cst_605 = arith.constant 2.000000e-01 : f32
    %1776 = vector.broadcast %cst_605 : f32 to vector<8x32xf32>
    %1777 = arith.subf %1776, %1472 : vector<8x32xf32>
    %cst_606 = arith.constant 0.833333313 : f32
    %1778 = vector.broadcast %cst_606 : f32 to vector<8x32xf32>
    %1779 = arith.mulf %1777, %1778 : vector<8x32xf32>
    %1780 = arith.mulf %1779, %1693 : vector<8x32xf32>
    %1781 = arith.addf %1775, %1780 : vector<8x32xf32>
    %cst_607 = arith.constant -1.000000e+00 : f32
    %1782 = vector.broadcast %cst_607 : f32 to vector<8x32xf32>
    %1783 = arith.subf %1472, %1782 : vector<8x32xf32>
    %cst_608 = arith.constant 0.833333313 : f32
    %1784 = vector.broadcast %cst_608 : f32 to vector<8x32xf32>
    %1785 = arith.mulf %1783, %1784 : vector<8x32xf32>
    %1786 = arith.mulf %1785, %1693 : vector<8x32xf32>
    %cst_609 = arith.constant 6.000000e-01 : f32
    %1787 = vector.broadcast %cst_609 : f32 to vector<8x32xf32>
    %1788 = arith.subf %1787, %1472 : vector<8x32xf32>
    %cst_610 = arith.constant 0.833333313 : f32
    %1789 = vector.broadcast %cst_610 : f32 to vector<8x32xf32>
    %1790 = arith.mulf %1788, %1789 : vector<8x32xf32>
    %1791 = arith.mulf %1790, %1704 : vector<8x32xf32>
    %1792 = arith.addf %1786, %1791 : vector<8x32xf32>
    %cst_611 = arith.constant -6.000000e-01 : f32
    %1793 = vector.broadcast %cst_611 : f32 to vector<8x32xf32>
    %1794 = arith.subf %1472, %1793 : vector<8x32xf32>
    %cst_612 = arith.constant 0.833333313 : f32
    %1795 = vector.broadcast %cst_612 : f32 to vector<8x32xf32>
    %1796 = arith.mulf %1794, %1795 : vector<8x32xf32>
    %1797 = arith.mulf %1796, %1704 : vector<8x32xf32>
    %cst_613 = arith.constant 1.000000e+00 : f32
    %1798 = vector.broadcast %cst_613 : f32 to vector<8x32xf32>
    %1799 = arith.subf %1798, %1472 : vector<8x32xf32>
    %cst_614 = arith.constant 0.833333313 : f32
    %1800 = vector.broadcast %cst_614 : f32 to vector<8x32xf32>
    %1801 = arith.mulf %1799, %1800 : vector<8x32xf32>
    %1802 = arith.mulf %1801, %1715 : vector<8x32xf32>
    %1803 = arith.addf %1797, %1802 : vector<8x32xf32>
    %cst_615 = arith.constant -2.000000e-01 : f32
    %1804 = vector.broadcast %cst_615 : f32 to vector<8x32xf32>
    %1805 = arith.subf %1472, %1804 : vector<8x32xf32>
    %cst_616 = arith.constant 0.833333313 : f32
    %1806 = vector.broadcast %cst_616 : f32 to vector<8x32xf32>
    %1807 = arith.mulf %1805, %1806 : vector<8x32xf32>
    %1808 = arith.mulf %1807, %1715 : vector<8x32xf32>
    %cst_617 = arith.constant 1.400000e+00 : f32
    %1809 = vector.broadcast %cst_617 : f32 to vector<8x32xf32>
    %1810 = arith.subf %1809, %1472 : vector<8x32xf32>
    %cst_618 = arith.constant 0.833333313 : f32
    %1811 = vector.broadcast %cst_618 : f32 to vector<8x32xf32>
    %1812 = arith.mulf %1810, %1811 : vector<8x32xf32>
    %1813 = arith.mulf %1812, %1726 : vector<8x32xf32>
    %1814 = arith.addf %1808, %1813 : vector<8x32xf32>
    %cst_619 = arith.constant 2.000000e-01 : f32
    %1815 = vector.broadcast %cst_619 : f32 to vector<8x32xf32>
    %1816 = arith.subf %1472, %1815 : vector<8x32xf32>
    %cst_620 = arith.constant 0.833333313 : f32
    %1817 = vector.broadcast %cst_620 : f32 to vector<8x32xf32>
    %1818 = arith.mulf %1816, %1817 : vector<8x32xf32>
    %1819 = arith.mulf %1818, %1726 : vector<8x32xf32>
    %cst_621 = arith.constant 1.800000e+00 : f32
    %1820 = vector.broadcast %cst_621 : f32 to vector<8x32xf32>
    %1821 = arith.subf %1820, %1472 : vector<8x32xf32>
    %cst_622 = arith.constant 0.833333313 : f32
    %1822 = vector.broadcast %cst_622 : f32 to vector<8x32xf32>
    %1823 = arith.mulf %1821, %1822 : vector<8x32xf32>
    %1824 = arith.mulf %1823, %1737 : vector<8x32xf32>
    %1825 = arith.addf %1819, %1824 : vector<8x32xf32>
    %cst_623 = arith.constant 6.000000e-01 : f32
    %1826 = vector.broadcast %cst_623 : f32 to vector<8x32xf32>
    %1827 = arith.subf %1472, %1826 : vector<8x32xf32>
    %cst_624 = arith.constant 0.833333313 : f32
    %1828 = vector.broadcast %cst_624 : f32 to vector<8x32xf32>
    %1829 = arith.mulf %1827, %1828 : vector<8x32xf32>
    %1830 = arith.mulf %1829, %1737 : vector<8x32xf32>
    %cst_625 = arith.constant 2.200000e+00 : f32
    %1831 = vector.broadcast %cst_625 : f32 to vector<8x32xf32>
    %1832 = arith.subf %1831, %1472 : vector<8x32xf32>
    %cst_626 = arith.constant 0.833333313 : f32
    %1833 = vector.broadcast %cst_626 : f32 to vector<8x32xf32>
    %1834 = arith.mulf %1832, %1833 : vector<8x32xf32>
    %1835 = arith.mulf %1834, %1748 : vector<8x32xf32>
    %1836 = arith.addf %1830, %1835 : vector<8x32xf32>
    %1837 = tpu.concatenate %1480, %1759, %1770, %1781, %1792, %1803, %1814, %1825, %1836 in 1 : vector<8x32xf32>, vector<8x32xf32>, vector<8x32xf32>, vector<8x32xf32>, vector<8x32xf32>, vector<8x32xf32>, vector<8x32xf32>, vector<8x32xf32>, vector<8x32xf32> -> vector<8x288xf32>
    %1838 = arith.truncf %1837 : vector<8x288xf32> to vector<8x288xbf16>
    %c0_627 = arith.constant 0 : index
    %c0_628 = arith.constant 0 : index
    %1839 = vector.load %arg6[%c0_627, %c0_628] : memref<288x32xbf16, #tpu.memory_space<vmem>>, vector<288x32xbf16>
    %cst_629 = arith.constant dense<0.000000e+00> : vector<8x32xf32>
    %1840 = tpu.matmul %1838, %1839, %cst_629 {dimension_numbers = #tpu.dot_dimension_numbers<[1], [0], [0], [1], [0, 0, 1, 1], [], []>} : vector<8x288xbf16>, vector<288x32xbf16>, vector<8x32xf32> -> vector<8x32xf32>
    %cst_630 = arith.constant 5.000000e-01 : f32
    %1841 = vector.broadcast %cst_630 : f32 to vector<8x32xf32>
    %1842 = arith.mulf %1841, %1840 : vector<8x32xf32>
    %cst_631 = arith.constant 5.000000e-01 : f32
    %1843 = vector.broadcast %cst_631 : f32 to vector<8x32xf32>
    %1844 = arith.mulf %1843, %1840 : vector<8x32xf32>
    %1845 = math.tanh %1844 : vector<8x32xf32>
    %cst_632 = arith.constant 1.000000e+00 : f32
    %1846 = vector.broadcast %cst_632 : f32 to vector<8x32xf32>
    %1847 = arith.addf %1846, %1845 : vector<8x32xf32>
    %1848 = arith.mulf %1842, %1847 : vector<8x32xf32>
    %cst_633 = arith.constant -2.200000e+00 : f32
    %1849 = vector.broadcast %cst_633 : f32 to vector<8x32xf32>
    %1850 = arith.cmpf oge, %1840, %1849 : vector<8x32xf32>
    %1851 = arith.extui %1850 : vector<8x32xi1> to vector<8x32xi32>
    %1852 = arith.sitofp %1851 : vector<8x32xi32> to vector<8x32xf32>
    %cst_634 = arith.constant -1.800000e+00 : f32
    %1853 = vector.broadcast %cst_634 : f32 to vector<8x32xf32>
    %1854 = arith.cmpf oge, %1840, %1853 : vector<8x32xf32>
    %1855 = arith.extui %1854 : vector<8x32xi1> to vector<8x32xi32>
    %1856 = arith.sitofp %1855 : vector<8x32xi32> to vector<8x32xf32>
    %cst_635 = arith.constant -1.400000e+00 : f32
    %1857 = vector.broadcast %cst_635 : f32 to vector<8x32xf32>
    %1858 = arith.cmpf oge, %1840, %1857 : vector<8x32xf32>
    %1859 = arith.extui %1858 : vector<8x32xi1> to vector<8x32xi32>
    %1860 = arith.sitofp %1859 : vector<8x32xi32> to vector<8x32xf32>
    %cst_636 = arith.constant -1.000000e+00 : f32
    %1861 = vector.broadcast %cst_636 : f32 to vector<8x32xf32>
    %1862 = arith.cmpf oge, %1840, %1861 : vector<8x32xf32>
    %1863 = arith.extui %1862 : vector<8x32xi1> to vector<8x32xi32>
    %1864 = arith.sitofp %1863 : vector<8x32xi32> to vector<8x32xf32>
    %cst_637 = arith.constant -6.000000e-01 : f32
    %1865 = vector.broadcast %cst_637 : f32 to vector<8x32xf32>
    %1866 = arith.cmpf oge, %1840, %1865 : vector<8x32xf32>
    %1867 = arith.extui %1866 : vector<8x32xi1> to vector<8x32xi32>
    %1868 = arith.sitofp %1867 : vector<8x32xi32> to vector<8x32xf32>
    %cst_638 = arith.constant -2.000000e-01 : f32
    %1869 = vector.broadcast %cst_638 : f32 to vector<8x32xf32>
    %1870 = arith.cmpf oge, %1840, %1869 : vector<8x32xf32>
    %1871 = arith.extui %1870 : vector<8x32xi1> to vector<8x32xi32>
    %1872 = arith.sitofp %1871 : vector<8x32xi32> to vector<8x32xf32>
    %cst_639 = arith.constant 2.000000e-01 : f32
    %1873 = vector.broadcast %cst_639 : f32 to vector<8x32xf32>
    %1874 = arith.cmpf oge, %1840, %1873 : vector<8x32xf32>
    %1875 = arith.extui %1874 : vector<8x32xi1> to vector<8x32xi32>
    %1876 = arith.sitofp %1875 : vector<8x32xi32> to vector<8x32xf32>
    %cst_640 = arith.constant 6.000000e-01 : f32
    %1877 = vector.broadcast %cst_640 : f32 to vector<8x32xf32>
    %1878 = arith.cmpf oge, %1840, %1877 : vector<8x32xf32>
    %1879 = arith.extui %1878 : vector<8x32xi1> to vector<8x32xi32>
    %1880 = arith.sitofp %1879 : vector<8x32xi32> to vector<8x32xf32>
    %cst_641 = arith.constant 1.000000e+00 : f32
    %1881 = vector.broadcast %cst_641 : f32 to vector<8x32xf32>
    %1882 = arith.cmpf oge, %1840, %1881 : vector<8x32xf32>
    %1883 = arith.extui %1882 : vector<8x32xi1> to vector<8x32xi32>
    %1884 = arith.sitofp %1883 : vector<8x32xi32> to vector<8x32xf32>
    %cst_642 = arith.constant 1.400000e+00 : f32
    %1885 = vector.broadcast %cst_642 : f32 to vector<8x32xf32>
    %1886 = arith.cmpf oge, %1840, %1885 : vector<8x32xf32>
    %1887 = arith.extui %1886 : vector<8x32xi1> to vector<8x32xi32>
    %1888 = arith.sitofp %1887 : vector<8x32xi32> to vector<8x32xf32>
    %cst_643 = arith.constant 1.800000e+00 : f32
    %1889 = vector.broadcast %cst_643 : f32 to vector<8x32xf32>
    %1890 = arith.cmpf oge, %1840, %1889 : vector<8x32xf32>
    %1891 = arith.extui %1890 : vector<8x32xi1> to vector<8x32xi32>
    %1892 = arith.sitofp %1891 : vector<8x32xi32> to vector<8x32xf32>
    %cst_644 = arith.constant 2.200000e+00 : f32
    %1893 = vector.broadcast %cst_644 : f32 to vector<8x32xf32>
    %1894 = arith.cmpf oge, %1840, %1893 : vector<8x32xf32>
    %1895 = arith.extui %1894 : vector<8x32xi1> to vector<8x32xi32>
    %1896 = arith.sitofp %1895 : vector<8x32xi32> to vector<8x32xf32>
    %1897 = arith.subf %1852, %1856 : vector<8x32xf32>
    %1898 = arith.subf %1856, %1860 : vector<8x32xf32>
    %1899 = arith.subf %1860, %1864 : vector<8x32xf32>
    %1900 = arith.subf %1864, %1868 : vector<8x32xf32>
    %1901 = arith.subf %1868, %1872 : vector<8x32xf32>
    %1902 = arith.subf %1872, %1876 : vector<8x32xf32>
    %1903 = arith.subf %1876, %1880 : vector<8x32xf32>
    %1904 = arith.subf %1880, %1884 : vector<8x32xf32>
    %1905 = arith.subf %1884, %1888 : vector<8x32xf32>
    %1906 = arith.subf %1888, %1892 : vector<8x32xf32>
    %1907 = arith.subf %1892, %1896 : vector<8x32xf32>
    %cst_645 = arith.constant -2.200000e+00 : f32
    %1908 = vector.broadcast %cst_645 : f32 to vector<8x32xf32>
    %1909 = arith.subf %1840, %1908 : vector<8x32xf32>
    %cst_646 = arith.constant 2.500000e+00 : f32
    %1910 = vector.broadcast %cst_646 : f32 to vector<8x32xf32>
    %1911 = arith.mulf %1909, %1910 : vector<8x32xf32>
    %1912 = arith.mulf %1911, %1897 : vector<8x32xf32>
    %cst_647 = arith.constant -1.400000e+00 : f32
    %1913 = vector.broadcast %cst_647 : f32 to vector<8x32xf32>
    %1914 = arith.subf %1913, %1840 : vector<8x32xf32>
    %cst_648 = arith.constant 2.500000e+00 : f32
    %1915 = vector.broadcast %cst_648 : f32 to vector<8x32xf32>
    %1916 = arith.mulf %1914, %1915 : vector<8x32xf32>
    %1917 = arith.mulf %1916, %1898 : vector<8x32xf32>
    %1918 = arith.addf %1912, %1917 : vector<8x32xf32>
    %cst_649 = arith.constant -1.800000e+00 : f32
    %1919 = vector.broadcast %cst_649 : f32 to vector<8x32xf32>
    %1920 = arith.subf %1840, %1919 : vector<8x32xf32>
    %cst_650 = arith.constant 2.500000e+00 : f32
    %1921 = vector.broadcast %cst_650 : f32 to vector<8x32xf32>
    %1922 = arith.mulf %1920, %1921 : vector<8x32xf32>
    %1923 = arith.mulf %1922, %1898 : vector<8x32xf32>
    %cst_651 = arith.constant -1.000000e+00 : f32
    %1924 = vector.broadcast %cst_651 : f32 to vector<8x32xf32>
    %1925 = arith.subf %1924, %1840 : vector<8x32xf32>
    %cst_652 = arith.constant 2.500000e+00 : f32
    %1926 = vector.broadcast %cst_652 : f32 to vector<8x32xf32>
    %1927 = arith.mulf %1925, %1926 : vector<8x32xf32>
    %1928 = arith.mulf %1927, %1899 : vector<8x32xf32>
    %1929 = arith.addf %1923, %1928 : vector<8x32xf32>
    %cst_653 = arith.constant -1.400000e+00 : f32
    %1930 = vector.broadcast %cst_653 : f32 to vector<8x32xf32>
    %1931 = arith.subf %1840, %1930 : vector<8x32xf32>
    %cst_654 = arith.constant 2.500000e+00 : f32
    %1932 = vector.broadcast %cst_654 : f32 to vector<8x32xf32>
    %1933 = arith.mulf %1931, %1932 : vector<8x32xf32>
    %1934 = arith.mulf %1933, %1899 : vector<8x32xf32>
    %cst_655 = arith.constant -6.000000e-01 : f32
    %1935 = vector.broadcast %cst_655 : f32 to vector<8x32xf32>
    %1936 = arith.subf %1935, %1840 : vector<8x32xf32>
    %cst_656 = arith.constant 2.500000e+00 : f32
    %1937 = vector.broadcast %cst_656 : f32 to vector<8x32xf32>
    %1938 = arith.mulf %1936, %1937 : vector<8x32xf32>
    %1939 = arith.mulf %1938, %1900 : vector<8x32xf32>
    %1940 = arith.addf %1934, %1939 : vector<8x32xf32>
    %cst_657 = arith.constant -1.000000e+00 : f32
    %1941 = vector.broadcast %cst_657 : f32 to vector<8x32xf32>
    %1942 = arith.subf %1840, %1941 : vector<8x32xf32>
    %cst_658 = arith.constant 2.500000e+00 : f32
    %1943 = vector.broadcast %cst_658 : f32 to vector<8x32xf32>
    %1944 = arith.mulf %1942, %1943 : vector<8x32xf32>
    %1945 = arith.mulf %1944, %1900 : vector<8x32xf32>
    %cst_659 = arith.constant -2.000000e-01 : f32
    %1946 = vector.broadcast %cst_659 : f32 to vector<8x32xf32>
    %1947 = arith.subf %1946, %1840 : vector<8x32xf32>
    %cst_660 = arith.constant 2.500000e+00 : f32
    %1948 = vector.broadcast %cst_660 : f32 to vector<8x32xf32>
    %1949 = arith.mulf %1947, %1948 : vector<8x32xf32>
    %1950 = arith.mulf %1949, %1901 : vector<8x32xf32>
    %1951 = arith.addf %1945, %1950 : vector<8x32xf32>
    %cst_661 = arith.constant -6.000000e-01 : f32
    %1952 = vector.broadcast %cst_661 : f32 to vector<8x32xf32>
    %1953 = arith.subf %1840, %1952 : vector<8x32xf32>
    %cst_662 = arith.constant 2.500000e+00 : f32
    %1954 = vector.broadcast %cst_662 : f32 to vector<8x32xf32>
    %1955 = arith.mulf %1953, %1954 : vector<8x32xf32>
    %1956 = arith.mulf %1955, %1901 : vector<8x32xf32>
    %cst_663 = arith.constant 2.000000e-01 : f32
    %1957 = vector.broadcast %cst_663 : f32 to vector<8x32xf32>
    %1958 = arith.subf %1957, %1840 : vector<8x32xf32>
    %cst_664 = arith.constant 2.500000e+00 : f32
    %1959 = vector.broadcast %cst_664 : f32 to vector<8x32xf32>
    %1960 = arith.mulf %1958, %1959 : vector<8x32xf32>
    %1961 = arith.mulf %1960, %1902 : vector<8x32xf32>
    %1962 = arith.addf %1956, %1961 : vector<8x32xf32>
    %cst_665 = arith.constant -2.000000e-01 : f32
    %1963 = vector.broadcast %cst_665 : f32 to vector<8x32xf32>
    %1964 = arith.subf %1840, %1963 : vector<8x32xf32>
    %cst_666 = arith.constant 2.500000e+00 : f32
    %1965 = vector.broadcast %cst_666 : f32 to vector<8x32xf32>
    %1966 = arith.mulf %1964, %1965 : vector<8x32xf32>
    %1967 = arith.mulf %1966, %1902 : vector<8x32xf32>
    %cst_667 = arith.constant 6.000000e-01 : f32
    %1968 = vector.broadcast %cst_667 : f32 to vector<8x32xf32>
    %1969 = arith.subf %1968, %1840 : vector<8x32xf32>
    %cst_668 = arith.constant 2.500000e+00 : f32
    %1970 = vector.broadcast %cst_668 : f32 to vector<8x32xf32>
    %1971 = arith.mulf %1969, %1970 : vector<8x32xf32>
    %1972 = arith.mulf %1971, %1903 : vector<8x32xf32>
    %1973 = arith.addf %1967, %1972 : vector<8x32xf32>
    %cst_669 = arith.constant 2.000000e-01 : f32
    %1974 = vector.broadcast %cst_669 : f32 to vector<8x32xf32>
    %1975 = arith.subf %1840, %1974 : vector<8x32xf32>
    %cst_670 = arith.constant 2.500000e+00 : f32
    %1976 = vector.broadcast %cst_670 : f32 to vector<8x32xf32>
    %1977 = arith.mulf %1975, %1976 : vector<8x32xf32>
    %1978 = arith.mulf %1977, %1903 : vector<8x32xf32>
    %cst_671 = arith.constant 1.000000e+00 : f32
    %1979 = vector.broadcast %cst_671 : f32 to vector<8x32xf32>
    %1980 = arith.subf %1979, %1840 : vector<8x32xf32>
    %cst_672 = arith.constant 2.500000e+00 : f32
    %1981 = vector.broadcast %cst_672 : f32 to vector<8x32xf32>
    %1982 = arith.mulf %1980, %1981 : vector<8x32xf32>
    %1983 = arith.mulf %1982, %1904 : vector<8x32xf32>
    %1984 = arith.addf %1978, %1983 : vector<8x32xf32>
    %cst_673 = arith.constant 6.000000e-01 : f32
    %1985 = vector.broadcast %cst_673 : f32 to vector<8x32xf32>
    %1986 = arith.subf %1840, %1985 : vector<8x32xf32>
    %cst_674 = arith.constant 2.500000e+00 : f32
    %1987 = vector.broadcast %cst_674 : f32 to vector<8x32xf32>
    %1988 = arith.mulf %1986, %1987 : vector<8x32xf32>
    %1989 = arith.mulf %1988, %1904 : vector<8x32xf32>
    %cst_675 = arith.constant 1.400000e+00 : f32
    %1990 = vector.broadcast %cst_675 : f32 to vector<8x32xf32>
    %1991 = arith.subf %1990, %1840 : vector<8x32xf32>
    %cst_676 = arith.constant 2.500000e+00 : f32
    %1992 = vector.broadcast %cst_676 : f32 to vector<8x32xf32>
    %1993 = arith.mulf %1991, %1992 : vector<8x32xf32>
    %1994 = arith.mulf %1993, %1905 : vector<8x32xf32>
    %1995 = arith.addf %1989, %1994 : vector<8x32xf32>
    %cst_677 = arith.constant 1.000000e+00 : f32
    %1996 = vector.broadcast %cst_677 : f32 to vector<8x32xf32>
    %1997 = arith.subf %1840, %1996 : vector<8x32xf32>
    %cst_678 = arith.constant 2.500000e+00 : f32
    %1998 = vector.broadcast %cst_678 : f32 to vector<8x32xf32>
    %1999 = arith.mulf %1997, %1998 : vector<8x32xf32>
    %2000 = arith.mulf %1999, %1905 : vector<8x32xf32>
    %cst_679 = arith.constant 1.800000e+00 : f32
    %2001 = vector.broadcast %cst_679 : f32 to vector<8x32xf32>
    %2002 = arith.subf %2001, %1840 : vector<8x32xf32>
    %cst_680 = arith.constant 2.500000e+00 : f32
    %2003 = vector.broadcast %cst_680 : f32 to vector<8x32xf32>
    %2004 = arith.mulf %2002, %2003 : vector<8x32xf32>
    %2005 = arith.mulf %2004, %1906 : vector<8x32xf32>
    %2006 = arith.addf %2000, %2005 : vector<8x32xf32>
    %cst_681 = arith.constant 1.400000e+00 : f32
    %2007 = vector.broadcast %cst_681 : f32 to vector<8x32xf32>
    %2008 = arith.subf %1840, %2007 : vector<8x32xf32>
    %cst_682 = arith.constant 2.500000e+00 : f32
    %2009 = vector.broadcast %cst_682 : f32 to vector<8x32xf32>
    %2010 = arith.mulf %2008, %2009 : vector<8x32xf32>
    %2011 = arith.mulf %2010, %1906 : vector<8x32xf32>
    %cst_683 = arith.constant 2.200000e+00 : f32
    %2012 = vector.broadcast %cst_683 : f32 to vector<8x32xf32>
    %2013 = arith.subf %2012, %1840 : vector<8x32xf32>
    %cst_684 = arith.constant 2.500000e+00 : f32
    %2014 = vector.broadcast %cst_684 : f32 to vector<8x32xf32>
    %2015 = arith.mulf %2013, %2014 : vector<8x32xf32>
    %2016 = arith.mulf %2015, %1907 : vector<8x32xf32>
    %2017 = arith.addf %2011, %2016 : vector<8x32xf32>
    %cst_685 = arith.constant -2.200000e+00 : f32
    %2018 = vector.broadcast %cst_685 : f32 to vector<8x32xf32>
    %2019 = arith.subf %1840, %2018 : vector<8x32xf32>
    %cst_686 = arith.constant 1.250000e+00 : f32
    %2020 = vector.broadcast %cst_686 : f32 to vector<8x32xf32>
    %2021 = arith.mulf %2019, %2020 : vector<8x32xf32>
    %2022 = arith.mulf %2021, %1918 : vector<8x32xf32>
    %cst_687 = arith.constant -1.000000e+00 : f32
    %2023 = vector.broadcast %cst_687 : f32 to vector<8x32xf32>
    %2024 = arith.subf %2023, %1840 : vector<8x32xf32>
    %cst_688 = arith.constant 1.250000e+00 : f32
    %2025 = vector.broadcast %cst_688 : f32 to vector<8x32xf32>
    %2026 = arith.mulf %2024, %2025 : vector<8x32xf32>
    %2027 = arith.mulf %2026, %1929 : vector<8x32xf32>
    %2028 = arith.addf %2022, %2027 : vector<8x32xf32>
    %cst_689 = arith.constant -1.800000e+00 : f32
    %2029 = vector.broadcast %cst_689 : f32 to vector<8x32xf32>
    %2030 = arith.subf %1840, %2029 : vector<8x32xf32>
    %cst_690 = arith.constant 1.250000e+00 : f32
    %2031 = vector.broadcast %cst_690 : f32 to vector<8x32xf32>
    %2032 = arith.mulf %2030, %2031 : vector<8x32xf32>
    %2033 = arith.mulf %2032, %1929 : vector<8x32xf32>
    %cst_691 = arith.constant -6.000000e-01 : f32
    %2034 = vector.broadcast %cst_691 : f32 to vector<8x32xf32>
    %2035 = arith.subf %2034, %1840 : vector<8x32xf32>
    %cst_692 = arith.constant 1.250000e+00 : f32
    %2036 = vector.broadcast %cst_692 : f32 to vector<8x32xf32>
    %2037 = arith.mulf %2035, %2036 : vector<8x32xf32>
    %2038 = arith.mulf %2037, %1940 : vector<8x32xf32>
    %2039 = arith.addf %2033, %2038 : vector<8x32xf32>
    %cst_693 = arith.constant -1.400000e+00 : f32
    %2040 = vector.broadcast %cst_693 : f32 to vector<8x32xf32>
    %2041 = arith.subf %1840, %2040 : vector<8x32xf32>
    %cst_694 = arith.constant 1.250000e+00 : f32
    %2042 = vector.broadcast %cst_694 : f32 to vector<8x32xf32>
    %2043 = arith.mulf %2041, %2042 : vector<8x32xf32>
    %2044 = arith.mulf %2043, %1940 : vector<8x32xf32>
    %cst_695 = arith.constant -2.000000e-01 : f32
    %2045 = vector.broadcast %cst_695 : f32 to vector<8x32xf32>
    %2046 = arith.subf %2045, %1840 : vector<8x32xf32>
    %cst_696 = arith.constant 1.250000e+00 : f32
    %2047 = vector.broadcast %cst_696 : f32 to vector<8x32xf32>
    %2048 = arith.mulf %2046, %2047 : vector<8x32xf32>
    %2049 = arith.mulf %2048, %1951 : vector<8x32xf32>
    %2050 = arith.addf %2044, %2049 : vector<8x32xf32>
    %cst_697 = arith.constant -1.000000e+00 : f32
    %2051 = vector.broadcast %cst_697 : f32 to vector<8x32xf32>
    %2052 = arith.subf %1840, %2051 : vector<8x32xf32>
    %cst_698 = arith.constant 1.250000e+00 : f32
    %2053 = vector.broadcast %cst_698 : f32 to vector<8x32xf32>
    %2054 = arith.mulf %2052, %2053 : vector<8x32xf32>
    %2055 = arith.mulf %2054, %1951 : vector<8x32xf32>
    %cst_699 = arith.constant 2.000000e-01 : f32
    %2056 = vector.broadcast %cst_699 : f32 to vector<8x32xf32>
    %2057 = arith.subf %2056, %1840 : vector<8x32xf32>
    %cst_700 = arith.constant 1.250000e+00 : f32
    %2058 = vector.broadcast %cst_700 : f32 to vector<8x32xf32>
    %2059 = arith.mulf %2057, %2058 : vector<8x32xf32>
    %2060 = arith.mulf %2059, %1962 : vector<8x32xf32>
    %2061 = arith.addf %2055, %2060 : vector<8x32xf32>
    %cst_701 = arith.constant -6.000000e-01 : f32
    %2062 = vector.broadcast %cst_701 : f32 to vector<8x32xf32>
    %2063 = arith.subf %1840, %2062 : vector<8x32xf32>
    %cst_702 = arith.constant 1.250000e+00 : f32
    %2064 = vector.broadcast %cst_702 : f32 to vector<8x32xf32>
    %2065 = arith.mulf %2063, %2064 : vector<8x32xf32>
    %2066 = arith.mulf %2065, %1962 : vector<8x32xf32>
    %cst_703 = arith.constant 6.000000e-01 : f32
    %2067 = vector.broadcast %cst_703 : f32 to vector<8x32xf32>
    %2068 = arith.subf %2067, %1840 : vector<8x32xf32>
    %cst_704 = arith.constant 1.250000e+00 : f32
    %2069 = vector.broadcast %cst_704 : f32 to vector<8x32xf32>
    %2070 = arith.mulf %2068, %2069 : vector<8x32xf32>
    %2071 = arith.mulf %2070, %1973 : vector<8x32xf32>
    %2072 = arith.addf %2066, %2071 : vector<8x32xf32>
    %cst_705 = arith.constant -2.000000e-01 : f32
    %2073 = vector.broadcast %cst_705 : f32 to vector<8x32xf32>
    %2074 = arith.subf %1840, %2073 : vector<8x32xf32>
    %cst_706 = arith.constant 1.250000e+00 : f32
    %2075 = vector.broadcast %cst_706 : f32 to vector<8x32xf32>
    %2076 = arith.mulf %2074, %2075 : vector<8x32xf32>
    %2077 = arith.mulf %2076, %1973 : vector<8x32xf32>
    %cst_707 = arith.constant 1.000000e+00 : f32
    %2078 = vector.broadcast %cst_707 : f32 to vector<8x32xf32>
    %2079 = arith.subf %2078, %1840 : vector<8x32xf32>
    %cst_708 = arith.constant 1.250000e+00 : f32
    %2080 = vector.broadcast %cst_708 : f32 to vector<8x32xf32>
    %2081 = arith.mulf %2079, %2080 : vector<8x32xf32>
    %2082 = arith.mulf %2081, %1984 : vector<8x32xf32>
    %2083 = arith.addf %2077, %2082 : vector<8x32xf32>
    %cst_709 = arith.constant 2.000000e-01 : f32
    %2084 = vector.broadcast %cst_709 : f32 to vector<8x32xf32>
    %2085 = arith.subf %1840, %2084 : vector<8x32xf32>
    %cst_710 = arith.constant 1.250000e+00 : f32
    %2086 = vector.broadcast %cst_710 : f32 to vector<8x32xf32>
    %2087 = arith.mulf %2085, %2086 : vector<8x32xf32>
    %2088 = arith.mulf %2087, %1984 : vector<8x32xf32>
    %cst_711 = arith.constant 1.400000e+00 : f32
    %2089 = vector.broadcast %cst_711 : f32 to vector<8x32xf32>
    %2090 = arith.subf %2089, %1840 : vector<8x32xf32>
    %cst_712 = arith.constant 1.250000e+00 : f32
    %2091 = vector.broadcast %cst_712 : f32 to vector<8x32xf32>
    %2092 = arith.mulf %2090, %2091 : vector<8x32xf32>
    %2093 = arith.mulf %2092, %1995 : vector<8x32xf32>
    %2094 = arith.addf %2088, %2093 : vector<8x32xf32>
    %cst_713 = arith.constant 6.000000e-01 : f32
    %2095 = vector.broadcast %cst_713 : f32 to vector<8x32xf32>
    %2096 = arith.subf %1840, %2095 : vector<8x32xf32>
    %cst_714 = arith.constant 1.250000e+00 : f32
    %2097 = vector.broadcast %cst_714 : f32 to vector<8x32xf32>
    %2098 = arith.mulf %2096, %2097 : vector<8x32xf32>
    %2099 = arith.mulf %2098, %1995 : vector<8x32xf32>
    %cst_715 = arith.constant 1.800000e+00 : f32
    %2100 = vector.broadcast %cst_715 : f32 to vector<8x32xf32>
    %2101 = arith.subf %2100, %1840 : vector<8x32xf32>
    %cst_716 = arith.constant 1.250000e+00 : f32
    %2102 = vector.broadcast %cst_716 : f32 to vector<8x32xf32>
    %2103 = arith.mulf %2101, %2102 : vector<8x32xf32>
    %2104 = arith.mulf %2103, %2006 : vector<8x32xf32>
    %2105 = arith.addf %2099, %2104 : vector<8x32xf32>
    %cst_717 = arith.constant 1.000000e+00 : f32
    %2106 = vector.broadcast %cst_717 : f32 to vector<8x32xf32>
    %2107 = arith.subf %1840, %2106 : vector<8x32xf32>
    %cst_718 = arith.constant 1.250000e+00 : f32
    %2108 = vector.broadcast %cst_718 : f32 to vector<8x32xf32>
    %2109 = arith.mulf %2107, %2108 : vector<8x32xf32>
    %2110 = arith.mulf %2109, %2006 : vector<8x32xf32>
    %cst_719 = arith.constant 2.200000e+00 : f32
    %2111 = vector.broadcast %cst_719 : f32 to vector<8x32xf32>
    %2112 = arith.subf %2111, %1840 : vector<8x32xf32>
    %cst_720 = arith.constant 1.250000e+00 : f32
    %2113 = vector.broadcast %cst_720 : f32 to vector<8x32xf32>
    %2114 = arith.mulf %2112, %2113 : vector<8x32xf32>
    %2115 = arith.mulf %2114, %2017 : vector<8x32xf32>
    %2116 = arith.addf %2110, %2115 : vector<8x32xf32>
    %cst_721 = arith.constant -2.200000e+00 : f32
    %2117 = vector.broadcast %cst_721 : f32 to vector<8x32xf32>
    %2118 = arith.subf %1840, %2117 : vector<8x32xf32>
    %cst_722 = arith.constant 0.833333313 : f32
    %2119 = vector.broadcast %cst_722 : f32 to vector<8x32xf32>
    %2120 = arith.mulf %2118, %2119 : vector<8x32xf32>
    %2121 = arith.mulf %2120, %2028 : vector<8x32xf32>
    %cst_723 = arith.constant -6.000000e-01 : f32
    %2122 = vector.broadcast %cst_723 : f32 to vector<8x32xf32>
    %2123 = arith.subf %2122, %1840 : vector<8x32xf32>
    %cst_724 = arith.constant 0.833333313 : f32
    %2124 = vector.broadcast %cst_724 : f32 to vector<8x32xf32>
    %2125 = arith.mulf %2123, %2124 : vector<8x32xf32>
    %2126 = arith.mulf %2125, %2039 : vector<8x32xf32>
    %2127 = arith.addf %2121, %2126 : vector<8x32xf32>
    %cst_725 = arith.constant -1.800000e+00 : f32
    %2128 = vector.broadcast %cst_725 : f32 to vector<8x32xf32>
    %2129 = arith.subf %1840, %2128 : vector<8x32xf32>
    %cst_726 = arith.constant 0.833333313 : f32
    %2130 = vector.broadcast %cst_726 : f32 to vector<8x32xf32>
    %2131 = arith.mulf %2129, %2130 : vector<8x32xf32>
    %2132 = arith.mulf %2131, %2039 : vector<8x32xf32>
    %cst_727 = arith.constant -2.000000e-01 : f32
    %2133 = vector.broadcast %cst_727 : f32 to vector<8x32xf32>
    %2134 = arith.subf %2133, %1840 : vector<8x32xf32>
    %cst_728 = arith.constant 0.833333313 : f32
    %2135 = vector.broadcast %cst_728 : f32 to vector<8x32xf32>
    %2136 = arith.mulf %2134, %2135 : vector<8x32xf32>
    %2137 = arith.mulf %2136, %2050 : vector<8x32xf32>
    %2138 = arith.addf %2132, %2137 : vector<8x32xf32>
    %cst_729 = arith.constant -1.400000e+00 : f32
    %2139 = vector.broadcast %cst_729 : f32 to vector<8x32xf32>
    %2140 = arith.subf %1840, %2139 : vector<8x32xf32>
    %cst_730 = arith.constant 0.833333313 : f32
    %2141 = vector.broadcast %cst_730 : f32 to vector<8x32xf32>
    %2142 = arith.mulf %2140, %2141 : vector<8x32xf32>
    %2143 = arith.mulf %2142, %2050 : vector<8x32xf32>
    %cst_731 = arith.constant 2.000000e-01 : f32
    %2144 = vector.broadcast %cst_731 : f32 to vector<8x32xf32>
    %2145 = arith.subf %2144, %1840 : vector<8x32xf32>
    %cst_732 = arith.constant 0.833333313 : f32
    %2146 = vector.broadcast %cst_732 : f32 to vector<8x32xf32>
    %2147 = arith.mulf %2145, %2146 : vector<8x32xf32>
    %2148 = arith.mulf %2147, %2061 : vector<8x32xf32>
    %2149 = arith.addf %2143, %2148 : vector<8x32xf32>
    %cst_733 = arith.constant -1.000000e+00 : f32
    %2150 = vector.broadcast %cst_733 : f32 to vector<8x32xf32>
    %2151 = arith.subf %1840, %2150 : vector<8x32xf32>
    %cst_734 = arith.constant 0.833333313 : f32
    %2152 = vector.broadcast %cst_734 : f32 to vector<8x32xf32>
    %2153 = arith.mulf %2151, %2152 : vector<8x32xf32>
    %2154 = arith.mulf %2153, %2061 : vector<8x32xf32>
    %cst_735 = arith.constant 6.000000e-01 : f32
    %2155 = vector.broadcast %cst_735 : f32 to vector<8x32xf32>
    %2156 = arith.subf %2155, %1840 : vector<8x32xf32>
    %cst_736 = arith.constant 0.833333313 : f32
    %2157 = vector.broadcast %cst_736 : f32 to vector<8x32xf32>
    %2158 = arith.mulf %2156, %2157 : vector<8x32xf32>
    %2159 = arith.mulf %2158, %2072 : vector<8x32xf32>
    %2160 = arith.addf %2154, %2159 : vector<8x32xf32>
    %cst_737 = arith.constant -6.000000e-01 : f32
    %2161 = vector.broadcast %cst_737 : f32 to vector<8x32xf32>
    %2162 = arith.subf %1840, %2161 : vector<8x32xf32>
    %cst_738 = arith.constant 0.833333313 : f32
    %2163 = vector.broadcast %cst_738 : f32 to vector<8x32xf32>
    %2164 = arith.mulf %2162, %2163 : vector<8x32xf32>
    %2165 = arith.mulf %2164, %2072 : vector<8x32xf32>
    %cst_739 = arith.constant 1.000000e+00 : f32
    %2166 = vector.broadcast %cst_739 : f32 to vector<8x32xf32>
    %2167 = arith.subf %2166, %1840 : vector<8x32xf32>
    %cst_740 = arith.constant 0.833333313 : f32
    %2168 = vector.broadcast %cst_740 : f32 to vector<8x32xf32>
    %2169 = arith.mulf %2167, %2168 : vector<8x32xf32>
    %2170 = arith.mulf %2169, %2083 : vector<8x32xf32>
    %2171 = arith.addf %2165, %2170 : vector<8x32xf32>
    %cst_741 = arith.constant -2.000000e-01 : f32
    %2172 = vector.broadcast %cst_741 : f32 to vector<8x32xf32>
    %2173 = arith.subf %1840, %2172 : vector<8x32xf32>
    %cst_742 = arith.constant 0.833333313 : f32
    %2174 = vector.broadcast %cst_742 : f32 to vector<8x32xf32>
    %2175 = arith.mulf %2173, %2174 : vector<8x32xf32>
    %2176 = arith.mulf %2175, %2083 : vector<8x32xf32>
    %cst_743 = arith.constant 1.400000e+00 : f32
    %2177 = vector.broadcast %cst_743 : f32 to vector<8x32xf32>
    %2178 = arith.subf %2177, %1840 : vector<8x32xf32>
    %cst_744 = arith.constant 0.833333313 : f32
    %2179 = vector.broadcast %cst_744 : f32 to vector<8x32xf32>
    %2180 = arith.mulf %2178, %2179 : vector<8x32xf32>
    %2181 = arith.mulf %2180, %2094 : vector<8x32xf32>
    %2182 = arith.addf %2176, %2181 : vector<8x32xf32>
    %cst_745 = arith.constant 2.000000e-01 : f32
    %2183 = vector.broadcast %cst_745 : f32 to vector<8x32xf32>
    %2184 = arith.subf %1840, %2183 : vector<8x32xf32>
    %cst_746 = arith.constant 0.833333313 : f32
    %2185 = vector.broadcast %cst_746 : f32 to vector<8x32xf32>
    %2186 = arith.mulf %2184, %2185 : vector<8x32xf32>
    %2187 = arith.mulf %2186, %2094 : vector<8x32xf32>
    %cst_747 = arith.constant 1.800000e+00 : f32
    %2188 = vector.broadcast %cst_747 : f32 to vector<8x32xf32>
    %2189 = arith.subf %2188, %1840 : vector<8x32xf32>
    %cst_748 = arith.constant 0.833333313 : f32
    %2190 = vector.broadcast %cst_748 : f32 to vector<8x32xf32>
    %2191 = arith.mulf %2189, %2190 : vector<8x32xf32>
    %2192 = arith.mulf %2191, %2105 : vector<8x32xf32>
    %2193 = arith.addf %2187, %2192 : vector<8x32xf32>
    %cst_749 = arith.constant 6.000000e-01 : f32
    %2194 = vector.broadcast %cst_749 : f32 to vector<8x32xf32>
    %2195 = arith.subf %1840, %2194 : vector<8x32xf32>
    %cst_750 = arith.constant 0.833333313 : f32
    %2196 = vector.broadcast %cst_750 : f32 to vector<8x32xf32>
    %2197 = arith.mulf %2195, %2196 : vector<8x32xf32>
    %2198 = arith.mulf %2197, %2105 : vector<8x32xf32>
    %cst_751 = arith.constant 2.200000e+00 : f32
    %2199 = vector.broadcast %cst_751 : f32 to vector<8x32xf32>
    %2200 = arith.subf %2199, %1840 : vector<8x32xf32>
    %cst_752 = arith.constant 0.833333313 : f32
    %2201 = vector.broadcast %cst_752 : f32 to vector<8x32xf32>
    %2202 = arith.mulf %2200, %2201 : vector<8x32xf32>
    %2203 = arith.mulf %2202, %2116 : vector<8x32xf32>
    %2204 = arith.addf %2198, %2203 : vector<8x32xf32>
    %2205 = tpu.concatenate %1848, %2127, %2138, %2149, %2160, %2171, %2182, %2193, %2204 in 1 : vector<8x32xf32>, vector<8x32xf32>, vector<8x32xf32>, vector<8x32xf32>, vector<8x32xf32>, vector<8x32xf32>, vector<8x32xf32>, vector<8x32xf32>, vector<8x32xf32> -> vector<8x288xf32>
    %2206 = arith.truncf %2205 : vector<8x288xf32> to vector<8x288xbf16>
    %c0_753 = arith.constant 0 : index
    %c0_754 = arith.constant 0 : index
    %2207 = vector.load %arg7[%c0_753, %c0_754] : memref<288x128xbf16, #tpu.memory_space<vmem>>, vector<288x128xbf16>
    %cst_755 = arith.constant dense<0.000000e+00> : vector<8x128xf32>
    %2208 = tpu.matmul %2206, %2207, %cst_755 {dimension_numbers = #tpu.dot_dimension_numbers<[1], [0], [0], [1], [0, 0, 1, 1], [], []>} : vector<8x288xbf16>, vector<288x128xbf16>, vector<8x128xf32> -> vector<8x128xf32>
    %2209 = vector.extract_strided_slice %2208 {offsets = [0, 0], sizes = [1, 1], strides = [1, 1]} : vector<8x128xf32> to vector<1x1xf32>
    %c0_756 = arith.constant 0 : index
    %c0_757 = arith.constant 0 : index
    %2210 = vector.load %arg9[%c0_756, %c0_757] : memref<1x1xf32, #tpu.memory_space<vmem>>, vector<1x1xf32>
    tpu.vector_store %arg9[%c0_756, %c0_757], %2209 {strides = array<i32>} : memref<1x1xf32, #tpu.memory_space<vmem>>, vector<1x1xf32>,
    %c0_758 = arith.constant 0 : index
    %c0_759 = arith.constant 0 : index
    %2211 = vector.load %arg1[%c0_758, %c0_759] : memref<1x6xf32, #tpu.memory_space<vmem>>, vector<1x6xf32>
    %2212 = vector.broadcast %2209 : vector<1x1xf32> to vector<1x6xf32>
    %2213 = arith.addf %2212, %2211 : vector<1x6xf32>
    %c0_760 = arith.constant 0 : index
    %c0_761 = arith.constant 0 : index
    %2214 = vector.load %arg8[%c0_760, %c0_761] : memref<1x6xf32, #tpu.memory_space<vmem>>, vector<1x6xf32>
    tpu.vector_store %arg8[%c0_760, %c0_761], %2213 {strides = array<i32>} : memref<1x6xf32, #tpu.memory_space<vmem>>, vector<1x6xf32>,
    return
  }
}

</mosaic_0001>

<llo_original>
// kernel: kan_libd_forward.1
$region0: #{kan_libd_forward.1}
  #allocation0 [shape = 'u32[]', space=smem, size = 0x4, offset = 0x4, fixed_abs, tag = 'smem constant byte address 0x4 - core index']
  #allocation1 [shape = 'u32[144,128]{1,0:T(1,128)}', space=vmem, size = 0x12000, scoped, tag = 'internal scratch']
  %s0 = inlined_call_operand.vmem [shape: f32[8,16], index: 0, kind: input, shape index: {}]
  %s1 = inlined_call_operand.vmem [shape: f32[1,6], index: 1, kind: input, shape index: {}]
  %s2 = inlined_call_operand.vmem [shape: bf16[144,32], index: 2, kind: input, shape index: {}]
  %s3 = inlined_call_operand.vmem [shape: bf16[288,32], index: 3, kind: input, shape index: {}]
  %s4 = inlined_call_operand.vmem [shape: bf16[288,32], index: 4, kind: input, shape index: {}]
  %s5 = inlined_call_operand.vmem [shape: bf16[288,32], index: 5, kind: input, shape index: {}]
  %s6 = inlined_call_operand.vmem [shape: bf16[288,32], index: 6, kind: input, shape index: {}]
  %s7 = inlined_call_operand.vmem [shape: bf16[288,128], index: 7, kind: input, shape index: {}]
  %s8 = inlined_call_operand.hbm [shape: f32[1,6], index: 8, kind: output, shape index: {0}]
  %s9 = inlined_call_operand.hbm [shape: f32[1,1], index: 9, kind: output, shape index: {1}]
  %10 = xla_tuple %s8, %s9
  %s11 = sld [smem:[#allocation0]]
  $region50: #{kan_libd_forward.1} parent=0
    _
  %s13 = ssub.s32 1, %s11
  %s14 = scalar_select 0, %s13, %s11
  $region1: #{kan_libd_forward.1} parent=0
    #allocation2 [shape = 'u8[512]{0}', space=vmem, size = 0x400, scoped, tag = 'output window, operand 0, single buffered']
    #allocation3 [shape = 's32[1]{0}', space=sflag, size = 0x4, scoped, tag = 'scoped memory for kan_libd_forward.1']
    #allocation4 [shape = 'u8[512]{0}', space=vmem, size = 0x400, scoped, tag = 'output window, operand 1, single buffered']
    #allocation5 [shape = 's32[1]{0}', space=sflag, size = 0x4, scoped, tag = 'scoped memory for kan_libd_forward.1']
    %15 = vsyncpa [#allocation3], 0
    %16 = vsyncpa [#allocation5], 0
    // Predicated region
    $region2: #{kan_libd_forward.1} parent=1 // pred_check
      _
    $region3: #{kan_libd_forward.1} parent=1 // pred_check_branch
      %18 = sbr.rel (0) target = $region5
    $region4: #{kan_libd_forward.1} parent=1 // pred_region
      _
    $region5: #{kan_libd_forward.1} parent=1 // pred_fallthru
      _
    // Predicated region
    $region6: #{kan_libd_forward.1} parent=1 // pred_check
      _
    $region7: #{kan_libd_forward.1} parent=1 // pred_check_branch
      %20 = sbr.rel (0) target = $region9
    $region8: #{kan_libd_forward.1} parent=1 // pred_region
      _
    $region9: #{kan_libd_forward.1} parent=1 // pred_fallthru
      _
    // Predicated region
    $region10: #{kan_libd_forward.1} parent=1 // pred_check
      _
    $region11: #{kan_libd_forward.1} parent=1 // pred_check_branch
      %22 = sbr.rel (0) target = $region13
    $region12: #{kan_libd_forward.1} parent=1 // pred_region
      _
    $region13: #{kan_libd_forward.1} parent=1 // pred_fallthru
      _
    // Predicated region
    $region14: #{kan_libd_forward.1} parent=1 // pred_check
      _
    $region15: #{kan_libd_forward.1} parent=1 // pred_check_branch
      %24 = sbr.rel (0) target = $region17
    $region16: #{kan_libd_forward.1} parent=1 // pred_region
      _
    $region17: #{kan_libd_forward.1} parent=1 // pred_fallthru
      _
    // Predicated region
    $region18: #{kan_libd_forward.1} parent=1 // pred_check
      _
    $region19: #{kan_libd_forward.1} parent=1 // pred_check_branch
      %26 = sbr.rel (0) target = $region21
    $region20: #{kan_libd_forward.1} parent=1 // pred_region
      _
    $region21: #{kan_libd_forward.1} parent=1 // pred_fallthru
      _
    // Predicated region
    $region22: #{kan_libd_forward.1} parent=1 // pred_check
      _
    $region23: #{kan_libd_forward.1} parent=1 // pred_check_branch
      %28 = sbr.rel (0) target = $region25
    $region24: #{kan_libd_forward.1} parent=1 // pred_region
      _
    $region25: #{kan_libd_forward.1} parent=1 // pred_fallthru
      _
    // Predicated region
    $region26: #{kan_libd_forward.1} parent=1 // pred_check
      _
    $region27: #{kan_libd_forward.1} parent=1 // pred_check_branch
      %30 = sbr.rel (0) target = $region29
    $region28: #{kan_libd_forward.1} parent=1 // pred_region
      _
    $region29: #{kan_libd_forward.1} parent=1 // pred_fallthru
      _
    // Predicated region
    $region30: #{kan_libd_forward.1} parent=1 // pred_check
      _
    $region31: #{kan_libd_forward.1} parent=1 // pred_check_branch
      %32 = sbr.rel (0) target = $region33
    $region32: #{kan_libd_forward.1} parent=1 // pred_region
      _
    $region33: #{kan_libd_forward.1} parent=1 // pred_fallthru
      _
    %v34 = vld [vmem:[%s0] sm:$0xff]
    %v35 = vmul.f32 %v34, 0.5
    %v36 = vtanh.pop %v35
    %v37 = vadd.f32 %v36, 1.0
    %v38 = vmul.f32 %v35, %v37
    %vm39 = vcmp.ge.f32.partialorder %v34, -2.2
    %v40 = vsel %vm39, 1, 0
    %v41 = vcvt.s32.f32 %v40
    %vm42 = vcmp.ge.f32.partialorder %v34, -1.8
    %v43 = vsel %vm42, 1, 0
    %v44 = vcvt.s32.f32 %v43
    %vm45 = vcmp.ge.f32.partialorder %v34, -1.4
    %v46 = vsel %vm45, 1, 0
    %v47 = vcvt.s32.f32 %v46
    %vm48 = vcmp.ge.f32.partialorder %v34, -1.0
    %v49 = vsel %vm48, 1, 0
    %v50 = vcvt.s32.f32 %v49
    %vm51 = vcmp.ge.f32.partialorder %v34, -0.6
    %v52 = vsel %vm51, 1, 0
    %v53 = vcvt.s32.f32 %v52
    %vm54 = vcmp.ge.f32.partialorder %v34, -0.2
    %v55 = vsel %vm54, 1, 0
    %v56 = vcvt.s32.f32 %v55
    %vm57 = vcmp.ge.f32.partialorder %v34, 0.2
    %v58 = vsel %vm57, 1, 0
    %v59 = vcvt.s32.f32 %v58
    %vm60 = vcmp.ge.f32.partialorder %v34, 0.6
    %v61 = vsel %vm60, 1, 0
    %v62 = vcvt.s32.f32 %v61
    %vm63 = vcmp.ge.f32.partialorder %v34, 1.0
    %v64 = vsel %vm63, 1, 0
    %v65 = vcvt.s32.f32 %v64
    %vm66 = vcmp.ge.f32.partialorder %v34, 1.4
    %v67 = vsel %vm66, 1, 0
    %v68 = vcvt.s32.f32 %v67
    %vm69 = vcmp.ge.f32.partialorder %v34, 1.8
    %v70 = vsel %vm69, 1, 0
    %v71 = vcvt.s32.f32 %v70
    %vm72 = vcmp.ge.f32.partialorder %v34, 2.2
    %v73 = vsel %vm72, 1, 0
    %v74 = vcvt.s32.f32 %v73
    %v75 = vsub.f32 %v41, %v44
    %v76 = vsub.f32 %v44, %v47
    %v77 = vsub.f32 %v47, %v50
    %v78 = vsub.f32 %v50, %v53
    %v79 = vsub.f32 %v53, %v56
    %v80 = vsub.f32 %v56, %v59
    %v81 = vsub.f32 %v59, %v62
    %v82 = vsub.f32 %v62, %v65
    %v83 = vsub.f32 %v65, %v68
    %v84 = vsub.f32 %v68, %v71
    %v85 = vsub.f32 %v71, %v74
    %v86 = vsub.f32 %v34, -2.2
    %v87 = vmul.f32 %v86, 2.5
    %v88 = vmul.f32 %v87, %v75
    %v89 = vsub.f32 -1.4, %v34
    %v90 = vmul.f32 %v89, 2.5
    %v91 = vmul.f32 %v90, %v76
    %v92 = vadd.f32 %v88, %v91
    %v93 = vsub.f32 %v34, -1.8
    %v94 = vmul.f32 %v93, 2.5
    %v95 = vmul.f32 %v94, %v76
    %v96 = vsub.f32 -1.0, %v34
    %v97 = vmul.f32 %v96, 2.5
    %v98 = vmul.f32 %v97, %v77
    %v99 = vadd.f32 %v95, %v98
    %v100 = vsub.f32 %v34, -1.4
    %v101 = vmul.f32 %v100, 2.5
    %v102 = vmul.f32 %v101, %v77
    %v103 = vsub.f32 -0.6, %v34
    %v104 = vmul.f32 %v103, 2.5
    %v105 = vmul.f32 %v104, %v78
    %v106 = vadd.f32 %v102, %v105
    %v107 = vsub.f32 %v34, -1.0
    %v108 = vmul.f32 %v107, 2.5
    %v109 = vmul.f32 %v108, %v78
    %v110 = vsub.f32 -0.2, %v34
    %v111 = vmul.f32 %v110, 2.5
    %v112 = vmul.f32 %v111, %v79
    %v113 = vadd.f32 %v109, %v112
    %v114 = vsub.f32 %v34, -0.6
    %v115 = vmul.f32 %v114, 2.5
    %v116 = vmul.f32 %v115, %v79
    %v117 = vsub.f32 0.2, %v34
    %v118 = vmul.f32 %v117, 2.5
    %v119 = vmul.f32 %v118, %v80
    %v120 = vadd.f32 %v116, %v119
    %v121 = vsub.f32 %v34, -0.2
    %v122 = vmul.f32 %v121, 2.5
    %v123 = vmul.f32 %v122, %v80
    %v124 = vsub.f32 0.6, %v34
    %v125 = vmul.f32 %v124, 2.5
    %v126 = vmul.f32 %v125, %v81
    %v127 = vadd.f32 %v123, %v126
    %v128 = vsub.f32 %v34, 0.2
    %v129 = vmul.f32 %v128, 2.5
    %v130 = vmul.f32 %v129, %v81
    %v131 = vsub.f32 1.0, %v34
    %v132 = vmul.f32 %v131, 2.5
    %v133 = vmul.f32 %v132, %v82
    %v134 = vadd.f32 %v130, %v133
    %v135 = vsub.f32 %v34, 0.6
    %v136 = vmul.f32 %v135, 2.5
    %v137 = vmul.f32 %v136, %v82
    %v138 = vsub.f32 1.4, %v34
    %v139 = vmul.f32 %v138, 2.5
    %v140 = vmul.f32 %v139, %v83
    %v141 = vadd.f32 %v137, %v140
    %v142 = vsub.f32 %v34, 1.0
    %v143 = vmul.f32 %v142, 2.5
    %v144 = vmul.f32 %v143, %v83
    %v145 = vsub.f32 1.8, %v34
    %v146 = vmul.f32 %v145, 2.5
    %v147 = vmul.f32 %v146, %v84
    %v148 = vadd.f32 %v144, %v147
    %v149 = vsub.f32 %v34, 1.4
    %v150 = vmul.f32 %v149, 2.5
    %v151 = vmul.f32 %v150, %v84
    %v152 = vsub.f32 2.2, %v34
    %v153 = vmul.f32 %v152, 2.5
    %v154 = vmul.f32 %v153, %v85
    %v155 = vadd.f32 %v151, %v154
    %v156 = vmul.f32 %v86, 1.25
    %v157 = vmul.f32 %v156, %v92
    %v158 = vmul.f32 %v96, 1.25
    %v159 = vmul.f32 %v158, %v99
    %v160 = vadd.f32 %v157, %v159
    %v161 = vmul.f32 %v93, 1.25
    %v162 = vmul.f32 %v161, %v99
    %v163 = vmul.f32 %v103, 1.25
    %v164 = vmul.f32 %v163, %v106
    %v165 = vadd.f32 %v162, %v164
    %v166 = vmul.f32 %v100, 1.25
    %v167 = vmul.f32 %v166, %v106
    %v168 = vmul.f32 %v110, 1.25
    %v169 = vmul.f32 %v168, %v113
    %v170 = vadd.f32 %v167, %v169
    %v171 = vmul.f32 %v107, 1.25
    %v172 = vmul.f32 %v171, %v113
    %v173 = vmul.f32 %v117, 1.25
    %v174 = vmul.f32 %v173, %v120
    %v175 = vadd.f32 %v172, %v174
    %v176 = vmul.f32 %v114, 1.25
    %v177 = vmul.f32 %v176, %v120
    %v178 = vmul.f32 %v124, 1.25
    %v179 = vmul.f32 %v178, %v127
    %v180 = vadd.f32 %v177, %v179
    %v181 = vmul.f32 %v121, 1.25
    %v182 = vmul.f32 %v181, %v127
    %v183 = vmul.f32 %v131, 1.25
    %v184 = vmul.f32 %v183, %v134
    %v185 = vadd.f32 %v182, %v184
    %v186 = vmul.f32 %v128, 1.25
    %v187 = vmul.f32 %v186, %v134
    %v188 = vmul.f32 %v138, 1.25
    %v189 = vmul.f32 %v188, %v141
    %v190 = vadd.f32 %v187, %v189
    %v191 = vmul.f32 %v135, 1.25
    %v192 = vmul.f32 %v191, %v141
    %v193 = vmul.f32 %v145, 1.25
    %v194 = vmul.f32 %v193, %v148
    %v195 = vadd.f32 %v192, %v194
    %v196 = vmul.f32 %v142, 1.25
    %v197 = vmul.f32 %v196, %v148
    %v198 = vmul.f32 %v152, 1.25
    %v199 = vmul.f32 %v198, %v155
    %v200 = vadd.f32 %v197, %v199
    %v201 = vmul.f32 %v86, 0.8333333
    %v202 = vmul.f32 %v201, %v160
    %v203 = vmul.f32 %v103, 0.8333333
    %v204 = vmul.f32 %v203, %v165
    %v205 = vadd.f32 %v202, %v204
    %v206 = vmul.f32 %v93, 0.8333333
    %v207 = vmul.f32 %v206, %v165
    %v208 = vmul.f32 %v110, 0.8333333
    %v209 = vmul.f32 %v208, %v170
    %v210 = vadd.f32 %v207, %v209
    %v211 = vmul.f32 %v100, 0.8333333
    %v212 = vmul.f32 %v211, %v170
    %v213 = vmul.f32 %v117, 0.8333333
    %v214 = vmul.f32 %v213, %v175
    %v215 = vadd.f32 %v212, %v214
    %v216 = vmul.f32 %v107, 0.8333333
    %v217 = vmul.f32 %v216, %v175
    %v218 = vmul.f32 %v124, 0.8333333
    %v219 = vmul.f32 %v218, %v180
    %v220 = vadd.f32 %v217, %v219
    %v221 = vmul.f32 %v114, 0.8333333
    %v222 = vmul.f32 %v221, %v180
    %v223 = vmul.f32 %v131, 0.8333333
    %v224 = vmul.f32 %v223, %v185
    %v225 = vadd.f32 %v222, %v224
    %v226 = vmul.f32 %v121, 0.8333333
    %v227 = vmul.f32 %v226, %v185
    %v228 = vmul.f32 %v138, 0.8333333
    %v229 = vmul.f32 %v228, %v190
    %v230 = vadd.f32 %v227, %v229
    %v231 = vmul.f32 %v128, 0.8333333
    %v232 = vmul.f32 %v231, %v190
    %v233 = vmul.f32 %v145, 0.8333333
    %v234 = vmul.f32 %v233, %v195
    %v235 = vadd.f32 %v232, %v234
    %v236 = vmul.f32 %v135, 0.8333333
    %v237 = vmul.f32 %v236, %v195
    %v238 = vmul.f32 %v152, 0.8333333
    %v239 = vmul.f32 %v238, %v200
    %v240 = vadd.f32 %v237, %v239
    %242 = vrot.lane.b32.xlu0 %v205, 16
    %v243 = vpop.permute.xlu0 %242
    %246 = vrot.lane.b32.xlu0 %v210, 32
    %v247 = vpop.permute.xlu0 %246
    %250 = vrot.lane.b32.xlu0 %v215, 48
    %v251 = vpop.permute.xlu0 %250
    %254 = vrot.lane.b32.xlu0 %v220, 64
    %v255 = vpop.permute.xlu0 %254
    %258 = vrot.lane.b32.xlu0 %v225, 80
    %v259 = vpop.permute.xlu0 %258
    %262 = vrot.lane.b32.xlu0 %v230, 96
    %v263 = vpop.permute.xlu0 %262
    %266 = vrot.lane.b32.xlu0 %v235, 112
    %v267 = vpop.permute.xlu0 %266
    %vm269 = vcmask 130048
    %v270 = vsel %vm269, %v38, %v243
    %vm271 = vcmask 261120
    %v272 = vsel %vm271, %v270, %v247
    %vm273 = vcmask 392192
    %v274 = vsel %vm273, %v272, %v251
    %vm275 = vcmask 523264
    %v276 = vsel %vm275, %v274, %v255
    %vm277 = vcmask 654336
    %v278 = vsel %vm277, %v276, %v259
    %vm279 = vcmask 785408
    %v280 = vsel %vm279, %v278, %v263
    %vm281 = vcmask 916480
    %v282 = vsel %vm281, %v280, %v267
    %v283 = vpack.c.bf16 %v282, %v282
    %v284 = vpack.c.bf16 %v240, %v240
    %v285 = vld [vmem:[%s2] sm:$0xf]
    %v286 = vld [vmem:[%s2 + $0x4] sm:$0xf]
    %v287 = vld [vmem:[%s2 + $0x8] sm:$0xf]
    %v288 = vld [vmem:[%s2 + $0xc] sm:$0xf]
    %v289 = vld [vmem:[%s2 + $0x10] sm:$0xf]
    %v290 = vld [vmem:[%s2 + $0x14] sm:$0xf]
    %v291 = vld [vmem:[%s2 + $0x18] sm:$0xf]
    %v292 = vld [vmem:[%s2 + $0x1c] sm:$0xf]
    %v293 = vld [vmem:[%s2 + $0x20] sm:$0xf]
    %v294 = vld [vmem:[%s2 + $0x24] sm:$0xf]
    %v295 = vld [vmem:[%s2 + $0x28] sm:$0xf]
    %v296 = vld [vmem:[%s2 + $0x2c] sm:$0xf]
    %v297 = vld [vmem:[%s2 + $0x30] sm:$0xf]
    %v298 = vld [vmem:[%s2 + $0x34] sm:$0xf]
    %v299 = vld [vmem:[%s2 + $0x38] sm:$0xf]
    %v300 = vld [vmem:[%s2 + $0x3c] sm:$0xf]
    %v301 = vld [vmem:[%s2 + $0x40] sm:$0xf]
    %v302 = vld [vmem:[%s2 + $0x44] sm:$0xf]
    %v321 = vunpack.c.l.b16 %v285
    %v322 = vunpack.c.l.b16 %v286
    %v323 = vunpack.c.l.b16 %v287
    %v324 = vunpack.c.l.b16 %v288
    %v325 = vunpack.c.l.b16 %v289
    %v326 = vunpack.c.l.b16 %v290
    %v327 = vunpack.c.l.b16 %v291
    %v328 = vunpack.c.l.b16 %v292
    %v329 = vunpack.c.l.b16 %v293
    %v330 = vunpack.c.l.b16 %v294
    %v331 = vunpack.c.l.b16 %v295
    %v332 = vunpack.c.l.b16 %v296
    %v333 = vunpack.c.l.b16 %v297
    %v334 = vunpack.c.l.b16 %v298
    %v335 = vunpack.c.l.b16 %v299
    %v336 = vunpack.c.l.b16 %v300
    %v337 = vunpack.c.l.b16 %v301
    %v338 = vunpack.c.l.b16 %v302
    %v339 = vpack.c.b16 %v322, %v321
    %v340 = vpack.c.b16 %v324, %v323
    %v341 = vpack.c.b16 %v326, %v325
    %v342 = vpack.c.b16 %v328, %v327
    %v343 = vpack.c.b16 %v330, %v329
    %v344 = vpack.c.b16 %v332, %v331
    %v345 = vpack.c.b16 %v334, %v333
    %v346 = vpack.c.b16 %v336, %v335
    %v347 = vpack.c.b16 %v338, %v337
    %v358 = vsel %vm269, %v284, 0
    %360 = vmatprep.subr.bf16.mxu0 0
    %361 = vmatpush1.bf16.msra.mxu0 %v339
    %362 = vmatprep.subr.bf16.mxu0 0
    %363 = vmatpush1.bf16.msra.mxu0 %v340
    %364 = vmatprep.subr.bf16.mxu0 0
    %365 = vmatpush1.bf16.msra.mxu0 %v341
    %366 = vmatprep.subr.bf16.mxu0 0
    %367 = vmatpush1.bf16.msra.mxu0 %v342
    %368 = vmatprep.subr.bf16.mxu0 0
    %369 = vmatpush1.bf16.msra.mxu0 %v343
    %370 = vmatprep.subr.bf16.mxu0 0
    %371 = vmatpush1.bf16.msra.mxu0 %v344
    %372 = vmatprep.subr.bf16.mxu0 0
    %373 = vmatpush1.bf16.msra.mxu0 %v345
    %374 = vmatprep.subr.bf16.mxu0 0
    %375 = vmatpush1.bf16.msra.mxu0 %v346
    %376 = vmatprep.subr.bf16.mxu0 0
    %377 = vmatpush1.bf16.msra.mxu0 %v347
    %378 = vmatprep.subr.bf16.mxu0 0
    %379 = vmatpush1.bf16.msra.mxu0 0
    %380 = vmatprep.subr.bf16.mxu0 0
    %381 = vmatpush1.bf16.msra.mxu0 0
    %382 = vmatprep.subr.bf16.mxu0 0
    %383 = vmatpush1.bf16.msra.mxu0 0
    %384 = vmatprep.subr.bf16.mxu0 0
    %385 = vmatpush1.bf16.msra.mxu0 0
    %386 = vmatprep.subr.bf16.mxu0 0
    %387 = vmatpush1.bf16.msra.mxu0 0
    %388 = vmatprep.subr.bf16.mxu0 0
    %389 = vmatpush1.bf16.msra.mxu0 0
    %390 = vmatprep.subr.bf16.mxu0 0
    %391 = vmatpush1.bf16.msra.mxu0 0
    %392 = vmatprep.mubr.bf16.mxu0 %v358
    %393 = vmatmul.mubr.bf16.gmra.mrb[0].mxu0 %v283
    %v394 = vpop.f32.mrb[0].mxu0
    %v395 = vadd.f32 0.0, %v394
    %v396 = vpop.f32.mrb[0].mxu0
    %v397 = vpop.f32.mrb[0].mxu0
    %v398 = vpop.f32.mrb[0].mxu0
    %399 = vdwg.mxu0
    %v400 = vmul.f32 %v395, 0.5
    %v401 = vtanh.pop %v400
    %v402 = vadd.f32 %v401, 1.0
    %v403 = vmul.f32 %v400, %v402
    %vm404 = vcmp.ge.f32.partialorder %v395, -2.2
    %v405 = vsel %vm404, 1, 0
    %v406 = vcvt.s32.f32 %v405
    %vm407 = vcmp.ge.f32.partialorder %v395, -1.8
    %v408 = vsel %vm407, 1, 0
    %v409 = vcvt.s32.f32 %v408
    %vm410 = vcmp.ge.f32.partialorder %v395, -1.4
    %v411 = vsel %vm410, 1, 0
    %v412 = vcvt.s32.f32 %v411
    %vm413 = vcmp.ge.f32.partialorder %v395, -1.0
    %v414 = vsel %vm413, 1, 0
    %v415 = vcvt.s32.f32 %v414
    %vm416 = vcmp.ge.f32.partialorder %v395, -0.6
    %v417 = vsel %vm416, 1, 0
    %v418 = vcvt.s32.f32 %v417
    %vm419 = vcmp.ge.f32.partialorder %v395, -0.2
    %v420 = vsel %vm419, 1, 0
    %v421 = vcvt.s32.f32 %v420
    %vm422 = vcmp.ge.f32.partialorder %v395, 0.2
    %v423 = vsel %vm422, 1, 0
    %v424 = vcvt.s32.f32 %v423
    %vm425 = vcmp.ge.f32.partialorder %v395, 0.6
    %v426 = vsel %vm425, 1, 0
    %v427 = vcvt.s32.f32 %v426
    %vm428 = vcmp.ge.f32.partialorder %v395, 1.0
    %v429 = vsel %vm428, 1, 0
    %v430 = vcvt.s32.f32 %v429
    %vm431 = vcmp.ge.f32.partialorder %v395, 1.4
    %v432 = vsel %vm431, 1, 0
    %v433 = vcvt.s32.f32 %v432
    %vm434 = vcmp.ge.f32.partialorder %v395, 1.8
    %v435 = vsel %vm434, 1, 0
    %v436 = vcvt.s32.f32 %v435
    %vm437 = vcmp.ge.f32.partialorder %v395, 2.2
    %v438 = vsel %vm437, 1, 0
    %v439 = vcvt.s32.f32 %v438
    %v440 = vsub.f32 %v406, %v409
    %v441 = vsub.f32 %v409, %v412
    %v442 = vsub.f32 %v412, %v415
    %v443 = vsub.f32 %v415, %v418
    %v444 = vsub.f32 %v418, %v421
    %v445 = vsub.f32 %v421, %v424
    %v446 = vsub.f32 %v424, %v427
    %v447 = vsub.f32 %v427, %v430
    %v448 = vsub.f32 %v430, %v433
    %v449 = vsub.f32 %v433, %v436
    %v450 = vsub.f32 %v436, %v439
    %v451 = vsub.f32 %v395, -2.2
    %v452 = vmul.f32 %v451, 2.5
    %v453 = vmul.f32 %v452, %v440
    %v454 = vsub.f32 -1.4, %v395
    %v455 = vmul.f32 %v454, 2.5
    %v456 = vmul.f32 %v455, %v441
    %v457 = vadd.f32 %v453, %v456
    %v458 = vsub.f32 %v395, -1.8
    %v459 = vmul.f32 %v458, 2.5
    %v460 = vmul.f32 %v459, %v441
    %v461 = vsub.f32 -1.0, %v395
    %v462 = vmul.f32 %v461, 2.5
    %v463 = vmul.f32 %v462, %v442
    %v464 = vadd.f32 %v460, %v463
    %v465 = vsub.f32 %v395, -1.4
    %v466 = vmul.f32 %v465, 2.5
    %v467 = vmul.f32 %v466, %v442
    %v468 = vsub.f32 -0.6, %v395
    %v469 = vmul.f32 %v468, 2.5
    %v470 = vmul.f32 %v469, %v443
    %v471 = vadd.f32 %v467, %v470
    %v472 = vsub.f32 %v395, -1.0
    %v473 = vmul.f32 %v472, 2.5
    %v474 = vmul.f32 %v473, %v443
    %v475 = vsub.f32 -0.2, %v395
    %v476 = vmul.f32 %v475, 2.5
    %v477 = vmul.f32 %v476, %v444
    %v478 = vadd.f32 %v474, %v477
    %v479 = vsub.f32 %v395, -0.6
    %v480 = vmul.f32 %v479, 2.5
    %v481 = vmul.f32 %v480, %v444
    %v482 = vsub.f32 0.2, %v395
    %v483 = vmul.f32 %v482, 2.5
    %v484 = vmul.f32 %v483, %v445
    %v485 = vadd.f32 %v481, %v484
    %v486 = vsub.f32 %v395, -0.2
    %v487 = vmul.f32 %v486, 2.5
    %v488 = vmul.f32 %v487, %v445
    %v489 = vsub.f32 0.6, %v395
    %v490 = vmul.f32 %v489, 2.5
    %v491 = vmul.f32 %v490, %v446
    %v492 = vadd.f32 %v488, %v491
    %v493 = vsub.f32 %v395, 0.2
    %v494 = vmul.f32 %v493, 2.5
    %v495 = vmul.f32 %v494, %v446
    %v496 = vsub.f32 1.0, %v395
    %v497 = vmul.f32 %v496, 2.5
    %v498 = vmul.f32 %v497, %v447
    %v499 = vadd.f32 %v495, %v498
    %v500 = vsub.f32 %v395, 0.6
    %v501 = vmul.f32 %v500, 2.5
    %v502 = vmul.f32 %v501, %v447
    %v503 = vsub.f32 1.4, %v395
    %v504 = vmul.f32 %v503, 2.5
    %v505 = vmul.f32 %v504, %v448
    %v506 = vadd.f32 %v502, %v505
    %v507 = vsub.f32 %v395, 1.0
    %v508 = vmul.f32 %v507, 2.5
    %v509 = vmul.f32 %v508, %v448
    %v510 = vsub.f32 1.8, %v395
    %v511 = vmul.f32 %v510, 2.5
    %v512 = vmul.f32 %v511, %v449
    %v513 = vadd.f32 %v509, %v512
    %v514 = vsub.f32 %v395, 1.4
    %v515 = vmul.f32 %v514, 2.5
    %v516 = vmul.f32 %v515, %v449
    %v517 = vsub.f32 2.2, %v395
    %v518 = vmul.f32 %v517, 2.5
    %v519 = vmul.f32 %v518, %v450
    %v520 = vadd.f32 %v516, %v519
    %v521 = vmul.f32 %v451, 1.25
    %v522 = vmul.f32 %v521, %v457
    %v523 = vmul.f32 %v461, 1.25
    %v524 = vmul.f32 %v523, %v464
    %v525 = vadd.f32 %v522, %v524
    %v526 = vmul.f32 %v458, 1.25
    %v527 = vmul.f32 %v526, %v464
    %v528 = vmul.f32 %v468, 1.25
    %v529 = vmul.f32 %v528, %v471
    %v530 = vadd.f32 %v527, %v529
    %v531 = vmul.f32 %v465, 1.25
    %v532 = vmul.f32 %v531, %v471
    %v533 = vmul.f32 %v475, 1.25
    %v534 = vmul.f32 %v533, %v478
    %v535 = vadd.f32 %v532, %v534
    %v536 = vmul.f32 %v472, 1.25
    %v537 = vmul.f32 %v536, %v478
    %v538 = vmul.f32 %v482, 1.25
    %v539 = vmul.f32 %v538, %v485
    %v540 = vadd.f32 %v537, %v539
    %v541 = vmul.f32 %v479, 1.25
    %v542 = vmul.f32 %v541, %v485
    %v543 = vmul.f32 %v489, 1.25
    %v544 = vmul.f32 %v543, %v492
    %v545 = vadd.f32 %v542, %v544
    %v546 = vmul.f32 %v486, 1.25
    %v547 = vmul.f32 %v546, %v492
    %v548 = vmul.f32 %v496, 1.25
    %v549 = vmul.f32 %v548, %v499
    %v550 = vadd.f32 %v547, %v549
    %v551 = vmul.f32 %v493, 1.25
    %v552 = vmul.f32 %v551, %v499
    %v553 = vmul.f32 %v503, 1.25
    %v554 = vmul.f32 %v553, %v506
    %v555 = vadd.f32 %v552, %v554
    %v556 = vmul.f32 %v500, 1.25
    %v557 = vmul.f32 %v556, %v506
    %v558 = vmul.f32 %v510, 1.25
    %v559 = vmul.f32 %v558, %v513
    %v560 = vadd.f32 %v557, %v559
    %v561 = vmul.f32 %v507, 1.25
    %v562 = vmul.f32 %v561, %v513
    %v563 = vmul.f32 %v517, 1.25
    %v564 = vmul.f32 %v563, %v520
    %v565 = vadd.f32 %v562, %v564
    %v566 = vmul.f32 %v451, 0.8333333
    %v567 = vmul.f32 %v566, %v525
    %v568 = vmul.f32 %v468, 0.8333333
    %v569 = vmul.f32 %v568, %v530
    %v570 = vadd.f32 %v567, %v569
    %v571 = vmul.f32 %v458, 0.8333333
    %v572 = vmul.f32 %v571, %v530
    %v573 = vmul.f32 %v475, 0.8333333
    %v574 = vmul.f32 %v573, %v535
    %v575 = vadd.f32 %v572, %v574
    %v576 = vmul.f32 %v465, 0.8333333
    %v577 = vmul.f32 %v576, %v535
    %v578 = vmul.f32 %v482, 0.8333333
    %v579 = vmul.f32 %v578, %v540
    %v580 = vadd.f32 %v577, %v579
    %v581 = vmul.f32 %v472, 0.8333333
    %v582 = vmul.f32 %v581, %v540
    %v583 = vmul.f32 %v489, 0.8333333
    %v584 = vmul.f32 %v583, %v545
    %v585 = vadd.f32 %v582, %v584
    %v586 = vmul.f32 %v479, 0.8333333
    %v587 = vmul.f32 %v586, %v545
    %v588 = vmul.f32 %v496, 0.8333333
    %v589 = vmul.f32 %v588, %v550
    %v590 = vadd.f32 %v587, %v589
    %v591 = vmul.f32 %v486, 0.8333333
    %v592 = vmul.f32 %v591, %v550
    %v593 = vmul.f32 %v503, 0.8333333
    %v594 = vmul.f32 %v593, %v555
    %v595 = vadd.f32 %v592, %v594
    %v596 = vmul.f32 %v493, 0.8333333
    %v597 = vmul.f32 %v596, %v555
    %v598 = vmul.f32 %v510, 0.8333333
    %v599 = vmul.f32 %v598, %v560
    %v600 = vadd.f32 %v597, %v599
    %v601 = vmul.f32 %v500, 0.8333333
    %v602 = vmul.f32 %v601, %v560
    %v603 = vmul.f32 %v517, 0.8333333
    %v604 = vmul.f32 %v603, %v565
    %v605 = vadd.f32 %v602, %v604
    %607 = vrot.lane.b32.xlu0 %v570, 32
    %v608 = vpop.permute.xlu0 %607
    %611 = vrot.lane.b32.xlu0 %v575, 64
    %v612 = vpop.permute.xlu0 %611
    %615 = vrot.lane.b32.xlu0 %v580, 96
    %v616 = vpop.permute.xlu0 %615
    %619 = vrot.lane.b32.xlu0 %v590, 32
    %v620 = vpop.permute.xlu0 %619
    %623 = vrot.lane.b32.xlu0 %v595, 64
    %v624 = vpop.permute.xlu0 %623
    %627 = vrot.lane.b32.xlu0 %v600, 96
    %v628 = vpop.permute.xlu0 %627
    %v630 = vsel %vm271, %v403, %v608
    %v631 = vsel %vm275, %v630, %v612
    %v632 = vsel %vm279, %v631, %v616
    %v633 = vsel %vm271, %v585, %v620
    %v634 = vsel %vm275, %v633, %v624
    %v635 = vsel %vm279, %v634, %v628
    %v636 = vpack.c.bf16 %v632, %v632
    %v637 = vpack.c.bf16 %v635, %v635
    %v638 = vpack.c.bf16 %v605, %v605
    %v639 = vld [vmem:[%s3] sm:$0xf]
    %v640 = vld [vmem:[%s3 + $0x4] sm:$0xf]
    %v641 = vld [vmem:[%s3 + $0x8] sm:$0xf]
    %v642 = vld [vmem:[%s3 + $0xc] sm:$0xf]
    %v643 = vld [vmem:[%s3 + $0x10] sm:$0xf]
    %v644 = vld [vmem:[%s3 + $0x14] sm:$0xf]
    %v645 = vld [vmem:[%s3 + $0x18] sm:$0xf]
    %v646 = vld [vmem:[%s3 + $0x1c] sm:$0xf]
    %v647 = vld [vmem:[%s3 + $0x20] sm:$0xf]
    %v648 = vld [vmem:[%s3 + $0x24] sm:$0xf]
    %v649 = vld [vmem:[%s3 + $0x28] sm:$0xf]
    %v650 = vld [vmem:[%s3 + $0x2c] sm:$0xf]
    %v651 = vld [vmem:[%s3 + $0x30] sm:$0xf]
    %v652 = vld [vmem:[%s3 + $0x34] sm:$0xf]
    %v653 = vld [vmem:[%s3 + $0x38] sm:$0xf]
    %v654 = vld [vmem:[%s3 + $0x3c] sm:$0xf]
    %v655 = vld [vmem:[%s3 + $0x40] sm:$0xf]
    %v656 = vld [vmem:[%s3 + $0x44] sm:$0xf]
    %v657 = vld [vmem:[%s3 + $0x48] sm:$0xf]
    %v658 = vld [vmem:[%s3 + $0x4c] sm:$0xf]
    %v659 = vld [vmem:[%s3 + $0x50] sm:$0xf]
    %v660 = vld [vmem:[%s3 + $0x54] sm:$0xf]
    %v661 = vld [vmem:[%s3 + $0x58] sm:$0xf]
    %v662 = vld [vmem:[%s3 + $0x5c] sm:$0xf]
    %v663 = vld [vmem:[%s3 + $0x60] sm:$0xf]
    %v664 = vld [vmem:[%s3 + $0x64] sm:$0xf]
    %v665 = vld [vmem:[%s3 + $0x68] sm:$0xf]
    %v666 = vld [vmem:[%s3 + $0x6c] sm:$0xf]
    %v667 = vld [vmem:[%s3 + $0x70] sm:$0xf]
    %v668 = vld [vmem:[%s3 + $0x74] sm:$0xf]
    %v669 = vld [vmem:[%s3 + $0x78] sm:$0xf]
    %v670 = vld [vmem:[%s3 + $0x7c] sm:$0xf]
    %v671 = vld [vmem:[%s3 + $0x80] sm:$0xf]
    %v672 = vld [vmem:[%s3 + $0x84] sm:$0xf]
    %v673 = vld [vmem:[%s3 + $0x88] sm:$0xf]
    %v674 = vld [vmem:[%s3 + $0x8c] sm:$0xf]
    %v711 = vunpack.c.l.b16 %v639
    %v712 = vunpack.c.l.b16 %v640
    %v713 = vunpack.c.l.b16 %v641
    %v714 = vunpack.c.l.b16 %v642
    %v715 = vunpack.c.l.b16 %v643
    %v716 = vunpack.c.l.b16 %v644
    %v717 = vunpack.c.l.b16 %v645
    %v718 = vunpack.c.l.b16 %v646
    %v719 = vunpack.c.l.b16 %v647
    %v720 = vunpack.c.l.b16 %v648
    %v721 = vunpack.c.l.b16 %v649
    %v722 = vunpack.c.l.b16 %v650
    %v723 = vunpack.c.l.b16 %v651
    %v724 = vunpack.c.l.b16 %v652
    %v725 = vunpack.c.l.b16 %v653
    %v726 = vunpack.c.l.b16 %v654
    %v727 = vunpack.c.l.b16 %v655
    %v728 = vunpack.c.l.b16 %v656
    %v729 = vunpack.c.l.b16 %v657
    %v730 = vunpack.c.l.b16 %v658
    %v731 = vunpack.c.l.b16 %v659
    %v732 = vunpack.c.l.b16 %v660
    %v733 = vunpack.c.l.b16 %v661
    %v734 = vunpack.c.l.b16 %v662
    %v735 = vunpack.c.l.b16 %v663
    %v736 = vunpack.c.l.b16 %v664
    %v737 = vunpack.c.l.b16 %v665
    %v738 = vunpack.c.l.b16 %v666
    %v739 = vunpack.c.l.b16 %v667
    %v740 = vunpack.c.l.b16 %v668
    %v741 = vunpack.c.l.b16 %v669
    %v742 = vunpack.c.l.b16 %v670
    %v743 = vunpack.c.l.b16 %v671
    %v744 = vunpack.c.l.b16 %v672
    %v745 = vunpack.c.l.b16 %v673
    %v746 = vunpack.c.l.b16 %v674
    %v747 = vpack.c.b16 %v712, %v711
    %v748 = vpack.c.b16 %v714, %v713
    %v749 = vpack.c.b16 %v716, %v715
    %v750 = vpack.c.b16 %v718, %v717
    %v751 = vpack.c.b16 %v720, %v719
    %v752 = vpack.c.b16 %v722, %v721
    %v753 = vpack.c.b16 %v724, %v723
    %v754 = vpack.c.b16 %v726, %v725
    %v755 = vpack.c.b16 %v728, %v727
    %v756 = vpack.c.b16 %v730, %v729
    %v757 = vpack.c.b16 %v732, %v731
    %v758 = vpack.c.b16 %v734, %v733
    %v759 = vpack.c.b16 %v736, %v735
    %v760 = vpack.c.b16 %v738, %v737
    %v761 = vpack.c.b16 %v740, %v739
    %v762 = vpack.c.b16 %v742, %v741
    %v763 = vpack.c.b16 %v744, %v743
    %v764 = vpack.c.b16 %v746, %v745
    %v784 = vsel %vm271, %v638, 0
    %786 = vmatprep.subr.bf16.mxu0 0
    %787 = vmatpush1.bf16.msra.mxu0 %v747
    %788 = vmatprep.subr.bf16.mxu0 0
    %789 = vmatpush1.bf16.msra.mxu0 %v748
    %790 = vmatprep.subr.bf16.mxu0 0
    %791 = vmatpush1.bf16.msra.mxu0 %v749
    %792 = vmatprep.subr.bf16.mxu0 0
    %793 = vmatpush1.bf16.msra.mxu0 %v750
    %794 = vmatprep.subr.bf16.mxu0 0
    %795 = vmatpush1.bf16.msra.mxu0 %v751
    %796 = vmatprep.subr.bf16.mxu0 0
    %797 = vmatpush1.bf16.msra.mxu0 %v752
    %798 = vmatprep.subr.bf16.mxu0 0
    %799 = vmatpush1.bf16.msra.mxu0 %v753
    %800 = vmatprep.subr.bf16.mxu0 0
    %801 = vmatpush1.bf16.msra.mxu0 %v754
    %802 = vmatprep.subr.bf16.mxu0 0
    %803 = vmatpush1.bf16.msra.mxu0 %v755
    %804 = vmatprep.subr.bf16.mxu0 0
    %805 = vmatpush1.bf16.msra.mxu0 %v756
    %806 = vmatprep.subr.bf16.mxu0 0
    %807 = vmatpush1.bf16.msra.mxu0 %v757
    %808 = vmatprep.subr.bf16.mxu0 0
    %809 = vmatpush1.bf16.msra.mxu0 %v758
    %810 = vmatprep.subr.bf16.mxu0 0
    %811 = vmatpush1.bf16.msra.mxu0 %v759
    %812 = vmatprep.subr.bf16.mxu0 0
    %813 = vmatpush1.bf16.msra.mxu0 %v760
    %814 = vmatprep.subr.bf16.mxu0 0
    %815 = vmatpush1.bf16.msra.mxu0 %v761
    %816 = vmatprep.subr.bf16.mxu0 0
    %817 = vmatpush1.bf16.msra.mxu0 %v762
    %818 = vmatprep.mubr.bf16.mxu0 %v637
    %819 = vmatmul.mubr.bf16.gmra.mrb[0].mxu0 %v636
    %v820 = vpop.f32.mrb[0].mxu0
    %v821 = vadd.f32 0.0, %v820
    %v822 = vpop.f32.mrb[0].mxu0
    %v823 = vpop.f32.mrb[0].mxu0
    %v824 = vpop.f32.mrb[0].mxu0
    %825 = vdwg.mxu0
    %826 = vmatprep.subr.bf16.mxu0 0
    %827 = vmatpush1.bf16.msra.mxu0 %v763
    %828 = vmatprep.subr.bf16.mxu0 0
    %829 = vmatpush1.bf16.msra.mxu0 %v764
    %830 = vmatprep.subr.bf16.mxu0 0
    %831 = vmatpush1.bf16.msra.mxu0 0
    %832 = vmatprep.subr.bf16.mxu0 0
    %833 = vmatpush1.bf16.msra.mxu0 0
    %834 = vmatprep.subr.bf16.mxu0 0
    %835 = vmatpush1.bf16.msra.mxu0 0
    %836 = vmatprep.subr.bf16.mxu0 0
    %837 = vmatpush1.bf16.msra.mxu0 0
    %838 = vmatprep.subr.bf16.mxu0 0
    %839 = vmatpush1.bf16.msra.mxu0 0
    %840 = vmatprep.subr.bf16.mxu0 0
    %841 = vmatpush1.bf16.msra.mxu0 0
    %842 = vmatprep.subr.bf16.mxu0 0
    %843 = vmatpush1.bf16.msra.mxu0 0
    %844 = vmatprep.subr.bf16.mxu0 0
    %845 = vmatpush1.bf16.msra.mxu0 0
    %846 = vmatprep.subr.bf16.mxu0 0
    %847 = vmatpush1.bf16.msra.mxu0 0
    %848 = vmatprep.subr.bf16.mxu0 0
    %849 = vmatpush1.bf16.msra.mxu0 0
    %850 = vmatprep.subr.bf16.mxu0 0
    %851 = vmatpush1.bf16.msra.mxu0 0
    %852 = vmatprep.subr.bf16.mxu0 0
    %853 = vmatpush1.bf16.msra.mxu0 0
    %854 = vmatprep.subr.bf16.mxu0 0
    %855 = vmatpush1.bf16.msra.mxu0 0
    %856 = vmatprep.subr.bf16.mxu0 0
    %857 = vmatpush1.bf16.msra.mxu0 0
    %858 = vmatprep.mubr.bf16.mxu0 0
    %859 = vmatmul.mubr.bf16.gmra.mrb[0].mxu0 %v784
    %v860 = vpop.f32.mrb[0].mxu0
    %v861 = vadd.f32 %v821, %v860
    %v862 = vpop.f32.mrb[0].mxu0
    %v863 = vpop.f32.mrb[0].mxu0
    %v864 = vpop.f32.mrb[0].mxu0
    %865 = vdwg.mxu0
    %v866 = vmul.f32 %v861, 0.5
    %v867 = vtanh.pop %v866
    %v868 = vadd.f32 %v867, 1.0
    %v869 = vmul.f32 %v866, %v868
    %vm870 = vcmp.ge.f32.partialorder %v861, -2.2
    %v871 = vsel %vm870, 1, 0
    %v872 = vcvt.s32.f32 %v871
    %vm873 = vcmp.ge.f32.partialorder %v861, -1.8
    %v874 = vsel %vm873, 1, 0
    %v875 = vcvt.s32.f32 %v874
    %vm876 = vcmp.ge.f32.partialorder %v861, -1.4
    %v877 = vsel %vm876, 1, 0
    %v878 = vcvt.s32.f32 %v877
    %vm879 = vcmp.ge.f32.partialorder %v861, -1.0
    %v880 = vsel %vm879, 1, 0
    %v881 = vcvt.s32.f32 %v880
    %vm882 = vcmp.ge.f32.partialorder %v861, -0.6
    %v883 = vsel %vm882, 1, 0
    %v884 = vcvt.s32.f32 %v883
    %vm885 = vcmp.ge.f32.partialorder %v861, -0.2
    %v886 = vsel %vm885, 1, 0
    %v887 = vcvt.s32.f32 %v886
    %vm888 = vcmp.ge.f32.partialorder %v861, 0.2
    %v889 = vsel %vm888, 1, 0
    %v890 = vcvt.s32.f32 %v889
    %vm891 = vcmp.ge.f32.partialorder %v861, 0.6
    %v892 = vsel %vm891, 1, 0
    %v893 = vcvt.s32.f32 %v892
    %vm894 = vcmp.ge.f32.partialorder %v861, 1.0
    %v895 = vsel %vm894, 1, 0
    %v896 = vcvt.s32.f32 %v895
    %vm897 = vcmp.ge.f32.partialorder %v861, 1.4
    %v898 = vsel %vm897, 1, 0
    %v899 = vcvt.s32.f32 %v898
    %vm900 = vcmp.ge.f32.partialorder %v861, 1.8
    %v901 = vsel %vm900, 1, 0
    %v902 = vcvt.s32.f32 %v901
    %vm903 = vcmp.ge.f32.partialorder %v861, 2.2
    %v904 = vsel %vm903, 1, 0
    %v905 = vcvt.s32.f32 %v904
    %v906 = vsub.f32 %v872, %v875
    %v907 = vsub.f32 %v875, %v878
    %v908 = vsub.f32 %v878, %v881
    %v909 = vsub.f32 %v881, %v884
    %v910 = vsub.f32 %v884, %v887
    %v911 = vsub.f32 %v887, %v890
    %v912 = vsub.f32 %v890, %v893
    %v913 = vsub.f32 %v893, %v896
    %v914 = vsub.f32 %v896, %v899
    %v915 = vsub.f32 %v899, %v902
    %v916 = vsub.f32 %v902, %v905
    %v917 = vsub.f32 %v861, -2.2
    %v918 = vmul.f32 %v917, 2.5
    %v919 = vmul.f32 %v918, %v906
    %v920 = vsub.f32 -1.4, %v861
    %v921 = vmul.f32 %v920, 2.5
    %v922 = vmul.f32 %v921, %v907
    %v923 = vadd.f32 %v919, %v922
    %v924 = vsub.f32 %v861, -1.8
    %v925 = vmul.f32 %v924, 2.5
    %v926 = vmul.f32 %v925, %v907
    %v927 = vsub.f32 -1.0, %v861
    %v928 = vmul.f32 %v927, 2.5
    %v929 = vmul.f32 %v928, %v908
    %v930 = vadd.f32 %v926, %v929
    %v931 = vsub.f32 %v861, -1.4
    %v932 = vmul.f32 %v931, 2.5
    %v933 = vmul.f32 %v932, %v908
    %v934 = vsub.f32 -0.6, %v861
    %v935 = vmul.f32 %v934, 2.5
    %v936 = vmul.f32 %v935, %v909
    %v937 = vadd.f32 %v933, %v936
    %v938 = vsub.f32 %v861, -1.0
    %v939 = vmul.f32 %v938, 2.5
    %v940 = vmul.f32 %v939, %v909
    %v941 = vsub.f32 -0.2, %v861
    %v942 = vmul.f32 %v941, 2.5
    %v943 = vmul.f32 %v942, %v910
    %v944 = vadd.f32 %v940, %v943
    %v945 = vsub.f32 %v861, -0.6
    %v946 = vmul.f32 %v945, 2.5
    %v947 = vmul.f32 %v946, %v910
    %v948 = vsub.f32 0.2, %v861
    %v949 = vmul.f32 %v948, 2.5
    %v950 = vmul.f32 %v949, %v911
    %v951 = vadd.f32 %v947, %v950
    %v952 = vsub.f32 %v861, -0.2
    %v953 = vmul.f32 %v952, 2.5
    %v954 = vmul.f32 %v953, %v911
    %v955 = vsub.f32 0.6, %v861
    %v956 = vmul.f32 %v955, 2.5
    %v957 = vmul.f32 %v956, %v912
    %v958 = vadd.f32 %v954, %v957
    %v959 = vsub.f32 %v861, 0.2
    %v960 = vmul.f32 %v959, 2.5
    %v961 = vmul.f32 %v960, %v912
    %v962 = vsub.f32 1.0, %v861
    %v963 = vmul.f32 %v962, 2.5
    %v964 = vmul.f32 %v963, %v913
    %v965 = vadd.f32 %v961, %v964
    %v966 = vsub.f32 %v861, 0.6
    %v967 = vmul.f32 %v966, 2.5
    %v968 = vmul.f32 %v967, %v913
    %v969 = vsub.f32 1.4, %v861
    %v970 = vmul.f32 %v969, 2.5
    %v971 = vmul.f32 %v970, %v914
    %v972 = vadd.f32 %v968, %v971
    %v973 = vsub.f32 %v861, 1.0
    %v974 = vmul.f32 %v973, 2.5
    %v975 = vmul.f32 %v974, %v914
    %v976 = vsub.f32 1.8, %v861
    %v977 = vmul.f32 %v976, 2.5
    %v978 = vmul.f32 %v977, %v915
    %v979 = vadd.f32 %v975, %v978
    %v980 = vsub.f32 %v861, 1.4
    %v981 = vmul.f32 %v980, 2.5
    %v982 = vmul.f32 %v981, %v915
    %v983 = vsub.f32 2.2, %v861
    %v984 = vmul.f32 %v983, 2.5
    %v985 = vmul.f32 %v984, %v916
    %v986 = vadd.f32 %v982, %v985
    %v987 = vmul.f32 %v917, 1.25
    %v988 = vmul.f32 %v987, %v923
    %v989 = vmul.f32 %v927, 1.25
    %v990 = vmul.f32 %v989, %v930
    %v991 = vadd.f32 %v988, %v990
    %v992 = vmul.f32 %v924, 1.25
    %v993 = vmul.f32 %v992, %v930
    %v994 = vmul.f32 %v934, 1.25
    %v995 = vmul.f32 %v994, %v937
    %v996 = vadd.f32 %v993, %v995
    %v997 = vmul.f32 %v931, 1.25
    %v998 = vmul.f32 %v997, %v937
    %v999 = vmul.f32 %v941, 1.25
    %v1000 = vmul.f32 %v999, %v944
    %v1001 = vadd.f32 %v998, %v1000
    %v1002 = vmul.f32 %v938, 1.25
    %v1003 = vmul.f32 %v1002, %v944
    %v1004 = vmul.f32 %v948, 1.25
    %v1005 = vmul.f32 %v1004, %v951
    %v1006 = vadd.f32 %v1003, %v1005
    %v1007 = vmul.f32 %v945, 1.25
    %v1008 = vmul.f32 %v1007, %v951
    %v1009 = vmul.f32 %v955, 1.25
    %v1010 = vmul.f32 %v1009, %v958
    %v1011 = vadd.f32 %v1008, %v1010
    %v1012 = vmul.f32 %v952, 1.25
    %v1013 = vmul.f32 %v1012, %v958
    %v1014 = vmul.f32 %v962, 1.25
    %v1015 = vmul.f32 %v1014, %v965
    %v1016 = vadd.f32 %v1013, %v1015
    %v1017 = vmul.f32 %v959, 1.25
    %v1018 = vmul.f32 %v1017, %v965
    %v1019 = vmul.f32 %v969, 1.25
    %v1020 = vmul.f32 %v1019, %v972
    %v1021 = vadd.f32 %v1018, %v1020
    %v1022 = vmul.f32 %v966, 1.25
    %v1023 = vmul.f32 %v1022, %v972
    %v1024 = vmul.f32 %v976, 1.25
    %v1025 = vmul.f32 %v1024, %v979
    %v1026 = vadd.f32 %v1023, %v1025
    %v1027 = vmul.f32 %v973, 1.25
    %v1028 = vmul.f32 %v1027, %v979
    %v1029 = vmul.f32 %v983, 1.25
    %v1030 = vmul.f32 %v1029, %v986
    %v1031 = vadd.f32 %v1028, %v1030
    %v1032 = vmul.f32 %v917, 0.8333333
    %v1033 = vmul.f32 %v1032, %v991
    %v1034 = vmul.f32 %v934, 0.8333333
    %v1035 = vmul.f32 %v1034, %v996
    %v1036 = vadd.f32 %v1033, %v1035
    %v1037 = vmul.f32 %v924, 0.8333333
    %v1038 = vmul.f32 %v1037, %v996
    %v1039 = vmul.f32 %v941, 0.8333333
    %v1040 = vmul.f32 %v1039, %v1001
    %v1041 = vadd.f32 %v1038, %v1040
    %v1042 = vmul.f32 %v931, 0.8333333
    %v1043 = vmul.f32 %v1042, %v1001
    %v1044 = vmul.f32 %v948, 0.8333333
    %v1045 = vmul.f32 %v1044, %v1006
    %v1046 = vadd.f32 %v1043, %v1045
    %v1047 = vmul.f32 %v938, 0.8333333
    %v1048 = vmul.f32 %v1047, %v1006
    %v1049 = vmul.f32 %v955, 0.8333333
    %v1050 = vmul.f32 %v1049, %v1011
    %v1051 = vadd.f32 %v1048, %v1050
    %v1052 = vmul.f32 %v945, 0.8333333
    %v1053 = vmul.f32 %v1052, %v1011
    %v1054 = vmul.f32 %v962, 0.8333333
    %v1055 = vmul.f32 %v1054, %v1016
    %v1056 = vadd.f32 %v1053, %v1055
    %v1057 = vmul.f32 %v952, 0.8333333
    %v1058 = vmul.f32 %v1057, %v1016
    %v1059 = vmul.f32 %v969, 0.8333333
    %v1060 = vmul.f32 %v1059, %v1021
    %v1061 = vadd.f32 %v1058, %v1060
    %v1062 = vmul.f32 %v959, 0.8333333
    %v1063 = vmul.f32 %v1062, %v1021
    %v1064 = vmul.f32 %v976, 0.8333333
    %v1065 = vmul.f32 %v1064, %v1026
    %v1066 = vadd.f32 %v1063, %v1065
    %v1067 = vmul.f32 %v966, 0.8333333
    %v1068 = vmul.f32 %v1067, %v1026
    %v1069 = vmul.f32 %v983, 0.8333333
    %v1070 = vmul.f32 %v1069, %v1031
    %v1071 = vadd.f32 %v1068, %v1070
    %1073 = vrot.lane.b32.xlu0 %v1036, 32
    %v1074 = vpop.permute.xlu0 %1073
    %1077 = vrot.lane.b32.xlu0 %v1041, 64
    %v1078 = vpop.permute.xlu0 %1077
    %1081 = vrot.lane.b32.xlu0 %v1046, 96
    %v1082 = vpop.permute.xlu0 %1081
    %1085 = vrot.lane.b32.xlu0 %v1056, 32
    %v1086 = vpop.permute.xlu0 %1085
    %1089 = vrot.lane.b32.xlu0 %v1061, 64
    %v1090 = vpop.permute.xlu0 %1089
    %1093 = vrot.lane.b32.xlu0 %v1066, 96
    %v1094 = vpop.permute.xlu0 %1093
    %v1096 = vsel %vm271, %v869, %v1074
    %v1097 = vsel %vm275, %v1096, %v1078
    %v1098 = vsel %vm279, %v1097, %v1082
    %v1099 = vsel %vm271, %v1051, %v1086
    %v1100 = vsel %vm275, %v1099, %v1090
    %v1101 = vsel %vm279, %v1100, %v1094
    %v1102 = vpack.c.bf16 %v1098, %v1098
    %v1103 = vpack.c.bf16 %v1101, %v1101
    %v1104 = vpack.c.bf16 %v1071, %v1071
    %v1105 = vld [vmem:[%s4] sm:$0xf]
    %v1106 = vld [vmem:[%s4 + $0x4] sm:$0xf]
    %v1107 = vld [vmem:[%s4 + $0x8] sm:$0xf]
    %v1108 = vld [vmem:[%s4 + $0xc] sm:$0xf]
    %v1109 = vld [vmem:[%s4 + $0x10] sm:$0xf]
    %v1110 = vld [vmem:[%s4 + $0x14] sm:$0xf]
    %v1111 = vld [vmem:[%s4 + $0x18] sm:$0xf]
    %v1112 = vld [vmem:[%s4 + $0x1c] sm:$0xf]
    %v1113 = vld [vmem:[%s4 + $0x20] sm:$0xf]
    %v1114 = vld [vmem:[%s4 + $0x24] sm:$0xf]
    %v1115 = vld [vmem:[%s4 + $0x28] sm:$0xf]
    %v1116 = vld [vmem:[%s4 + $0x2c] sm:$0xf]
    %v1117 = vld [vmem:[%s4 + $0x30] sm:$0xf]
    %v1118 = vld [vmem:[%s4 + $0x34] sm:$0xf]
    %v1119 = vld [vmem:[%s4 + $0x38] sm:$0xf]
    %v1120 = vld [vmem:[%s4 + $0x3c] sm:$0xf]
    %v1121 = vld [vmem:[%s4 + $0x40] sm:$0xf]
    %v1122 = vld [vmem:[%s4 + $0x44] sm:$0xf]
    %v1123 = vld [vmem:[%s4 + $0x48] sm:$0xf]
    %v1124 = vld [vmem:[%s4 + $0x4c] sm:$0xf]
    %v1125 = vld [vmem:[%s4 + $0x50] sm:$0xf]
    %v1126 = vld [vmem:[%s4 + $0x54] sm:$0xf]
    %v1127 = vld [vmem:[%s4 + $0x58] sm:$0xf]
    %v1128 = vld [vmem:[%s4 + $0x5c] sm:$0xf]
    %v1129 = vld [vmem:[%s4 + $0x60] sm:$0xf]
    %v1130 = vld [vmem:[%s4 + $0x64] sm:$0xf]
    %v1131 = vld [vmem:[%s4 + $0x68] sm:$0xf]
    %v1132 = vld [vmem:[%s4 + $0x6c] sm:$0xf]
    %v1133 = vld [vmem:[%s4 + $0x70] sm:$0xf]
    %v1134 = vld [vmem:[%s4 + $0x74] sm:$0xf]
    %v1135 = vld [vmem:[%s4 + $0x78] sm:$0xf]
    %v1136 = vld [vmem:[%s4 + $0x7c] sm:$0xf]
    %v1137 = vld [vmem:[%s4 + $0x80] sm:$0xf]
    %v1138 = vld [vmem:[%s4 + $0x84] sm:$0xf]
    %v1139 = vld [vmem:[%s4 + $0x88] sm:$0xf]
    %v1140 = vld [vmem:[%s4 + $0x8c] sm:$0xf]
    %v1177 = vunpack.c.l.b16 %v1105
    %v1178 = vunpack.c.l.b16 %v1106
    %v1179 = vunpack.c.l.b16 %v1107
    %v1180 = vunpack.c.l.b16 %v1108
    %v1181 = vunpack.c.l.b16 %v1109
    %v1182 = vunpack.c.l.b16 %v1110
    %v1183 = vunpack.c.l.b16 %v1111
    %v1184 = vunpack.c.l.b16 %v1112
    %v1185 = vunpack.c.l.b16 %v1113
    %v1186 = vunpack.c.l.b16 %v1114
    %v1187 = vunpack.c.l.b16 %v1115
    %v1188 = vunpack.c.l.b16 %v1116
    %v1189 = vunpack.c.l.b16 %v1117
    %v1190 = vunpack.c.l.b16 %v1118
    %v1191 = vunpack.c.l.b16 %v1119
    %v1192 = vunpack.c.l.b16 %v1120
    %v1193 = vunpack.c.l.b16 %v1121
    %v1194 = vunpack.c.l.b16 %v1122
    %v1195 = vunpack.c.l.b16 %v1123
    %v1196 = vunpack.c.l.b16 %v1124
    %v1197 = vunpack.c.l.b16 %v1125
    %v1198 = vunpack.c.l.b16 %v1126
    %v1199 = vunpack.c.l.b16 %v1127
    %v1200 = vunpack.c.l.b16 %v1128
    %v1201 = vunpack.c.l.b16 %v1129
    %v1202 = vunpack.c.l.b16 %v1130
    %v1203 = vunpack.c.l.b16 %v1131
    %v1204 = vunpack.c.l.b16 %v1132
    %v1205 = vunpack.c.l.b16 %v1133
    %v1206 = vunpack.c.l.b16 %v1134
    %v1207 = vunpack.c.l.b16 %v1135
    %v1208 = vunpack.c.l.b16 %v1136
    %v1209 = vunpack.c.l.b16 %v1137
    %v1210 = vunpack.c.l.b16 %v1138
    %v1211 = vunpack.c.l.b16 %v1139
    %v1212 = vunpack.c.l.b16 %v1140
    %v1213 = vpack.c.b16 %v1178, %v1177
    %v1214 = vpack.c.b16 %v1180, %v1179
    %v1215 = vpack.c.b16 %v1182, %v1181
    %v1216 = vpack.c.b16 %v1184, %v1183
    %v1217 = vpack.c.b16 %v1186, %v1185
    %v1218 = vpack.c.b16 %v1188, %v1187
    %v1219 = vpack.c.b16 %v1190, %v1189
    %v1220 = vpack.c.b16 %v1192, %v1191
    %v1221 = vpack.c.b16 %v1194, %v1193
    %v1222 = vpack.c.b16 %v1196, %v1195
    %v1223 = vpack.c.b16 %v1198, %v1197
    %v1224 = vpack.c.b16 %v1200, %v1199
    %v1225 = vpack.c.b16 %v1202, %v1201
    %v1226 = vpack.c.b16 %v1204, %v1203
    %v1227 = vpack.c.b16 %v1206, %v1205
    %v1228 = vpack.c.b16 %v1208, %v1207
    %v1229 = vpack.c.b16 %v1210, %v1209
    %v1230 = vpack.c.b16 %v1212, %v1211
    %v1250 = vsel %vm271, %v1104, 0
    %1252 = vmatprep.subr.bf16.mxu0 0
    %1253 = vmatpush1.bf16.msra.mxu0 %v1213
    %1254 = vmatprep.subr.bf16.mxu0 0
    %1255 = vmatpush1.bf16.msra.mxu0 %v1214
    %1256 = vmatprep.subr.bf16.mxu0 0
    %1257 = vmatpush1.bf16.msra.mxu0 %v1215
    %1258 = vmatprep.subr.bf16.mxu0 0
    %1259 = vmatpush1.bf16.msra.mxu0 %v1216
    %1260 = vmatprep.subr.bf16.mxu0 0
    %1261 = vmatpush1.bf16.msra.mxu0 %v1217
    %1262 = vmatprep.subr.bf16.mxu0 0
    %1263 = vmatpush1.bf16.msra.mxu0 %v1218
    %1264 = vmatprep.subr.bf16.mxu0 0
    %1265 = vmatpush1.bf16.msra.mxu0 %v1219
    %1266 = vmatprep.subr.bf16.mxu0 0
    %1267 = vmatpush1.bf16.msra.mxu0 %v1220
    %1268 = vmatprep.subr.bf16.mxu0 0
    %1269 = vmatpush1.bf16.msra.mxu0 %v1221
    %1270 = vmatprep.subr.bf16.mxu0 0
    %1271 = vmatpush1.bf16.msra.mxu0 %v1222
    %1272 = vmatprep.subr.bf16.mxu0 0
    %1273 = vmatpush1.bf16.msra.mxu0 %v1223
    %1274 = vmatprep.subr.bf16.mxu0 0
    %1275 = vmatpush1.bf16.msra.mxu0 %v1224
    %1276 = vmatprep.subr.bf16.mxu0 0
    %1277 = vmatpush1.bf16.msra.mxu0 %v1225
    %1278 = vmatprep.subr.bf16.mxu0 0
    %1279 = vmatpush1.bf16.msra.mxu0 %v1226
    %1280 = vmatprep.subr.bf16.mxu0 0
    %1281 = vmatpush1.bf16.msra.mxu0 %v1227
    %1282 = vmatprep.subr.bf16.mxu0 0
    %1283 = vmatpush1.bf16.msra.mxu0 %v1228
    %1284 = vmatprep.mubr.bf16.mxu0 %v1103
    %1285 = vmatmul.mubr.bf16.gmra.mrb[0].mxu0 %v1102
    %v1286 = vpop.f32.mrb[0].mxu0
    %v1287 = vadd.f32 0.0, %v1286
    %v1288 = vpop.f32.mrb[0].mxu0
    %v1289 = vpop.f32.mrb[0].mxu0
    %v1290 = vpop.f32.mrb[0].mxu0
    %1291 = vdwg.mxu0
    %1292 = vmatprep.subr.bf16.mxu0 0
    %1293 = vmatpush1.bf16.msra.mxu0 %v1229
    %1294 = vmatprep.subr.bf16.mxu0 0
    %1295 = vmatpush1.bf16.msra.mxu0 %v1230
    %1296 = vmatprep.subr.bf16.mxu0 0
    %1297 = vmatpush1.bf16.msra.mxu0 0
    %1298 = vmatprep.subr.bf16.mxu0 0
    %1299 = vmatpush1.bf16.msra.mxu0 0
    %1300 = vmatprep.subr.bf16.mxu0 0
    %1301 = vmatpush1.bf16.msra.mxu0 0
    %1302 = vmatprep.subr.bf16.mxu0 0
    %1303 = vmatpush1.bf16.msra.mxu0 0
    %1304 = vmatprep.subr.bf16.mxu0 0
    %1305 = vmatpush1.bf16.msra.mxu0 0
    %1306 = vmatprep.subr.bf16.mxu0 0
    %1307 = vmatpush1.bf16.msra.mxu0 0
    %1308 = vmatprep.subr.bf16.mxu0 0
    %1309 = vmatpush1.bf16.msra.mxu0 0
    %1310 = vmatprep.subr.bf16.mxu0 0
    %1311 = vmatpush1.bf16.msra.mxu0 0
    %1312 = vmatprep.subr.bf16.mxu0 0
    %1313 = vmatpush1.bf16.msra.mxu0 0
    %1314 = vmatprep.subr.bf16.mxu0 0
    %1315 = vmatpush1.bf16.msra.mxu0 0
    %1316 = vmatprep.subr.bf16.mxu0 0
    %1317 = vmatpush1.bf16.msra.mxu0 0
    %1318 = vmatprep.subr.bf16.mxu0 0
    %1319 = vmatpush1.bf16.msra.mxu0 0
    %1320 = vmatprep.subr.bf16.mxu0 0
    %1321 = vmatpush1.bf16.msra.mxu0 0
    %1322 = vmatprep.subr.bf16.mxu0 0
    %1323 = vmatpush1.bf16.msra.mxu0 0
    %1324 = vmatprep.mubr.bf16.mxu0 0
    %1325 = vmatmul.mubr.bf16.gmra.mrb[0].mxu0 %v1250
    %v1326 = vpop.f32.mrb[0].mxu0
    %v1327 = vadd.f32 %v1287, %v1326
    %v1328 = vpop.f32.mrb[0].mxu0
    %v1329 = vpop.f32.mrb[0].mxu0
    %v1330 = vpop.f32.mrb[0].mxu0
    %1331 = vdwg.mxu0
    %v1332 = vmul.f32 %v1327, 0.5
    %v1333 = vtanh.pop %v1332
    %v1334 = vadd.f32 %v1333, 1.0
    %v1335 = vmul.f32 %v1332, %v1334
    %vm1336 = vcmp.ge.f32.partialorder %v1327, -2.2
    %v1337 = vsel %vm1336, 1, 0
    %v1338 = vcvt.s32.f32 %v1337
    %vm1339 = vcmp.ge.f32.partialorder %v1327, -1.8
    %v1340 = vsel %vm1339, 1, 0
    %v1341 = vcvt.s32.f32 %v1340
    %vm1342 = vcmp.ge.f32.partialorder %v1327, -1.4
    %v1343 = vsel %vm1342, 1, 0
    %v1344 = vcvt.s32.f32 %v1343
    %vm1345 = vcmp.ge.f32.partialorder %v1327, -1.0
    %v1346 = vsel %vm1345, 1, 0
    %v1347 = vcvt.s32.f32 %v1346
    %vm1348 = vcmp.ge.f32.partialorder %v1327, -0.6
    %v1349 = vsel %vm1348, 1, 0
    %v1350 = vcvt.s32.f32 %v1349
    %vm1351 = vcmp.ge.f32.partialorder %v1327, -0.2
    %v1352 = vsel %vm1351, 1, 0
    %v1353 = vcvt.s32.f32 %v1352
    %vm1354 = vcmp.ge.f32.partialorder %v1327, 0.2
    %v1355 = vsel %vm1354, 1, 0
    %v1356 = vcvt.s32.f32 %v1355
    %vm1357 = vcmp.ge.f32.partialorder %v1327, 0.6
    %v1358 = vsel %vm1357, 1, 0
    %v1359 = vcvt.s32.f32 %v1358
    %vm1360 = vcmp.ge.f32.partialorder %v1327, 1.0
    %v1361 = vsel %vm1360, 1, 0
    %v1362 = vcvt.s32.f32 %v1361
    %vm1363 = vcmp.ge.f32.partialorder %v1327, 1.4
    %v1364 = vsel %vm1363, 1, 0
    %v1365 = vcvt.s32.f32 %v1364
    %vm1366 = vcmp.ge.f32.partialorder %v1327, 1.8
    %v1367 = vsel %vm1366, 1, 0
    %v1368 = vcvt.s32.f32 %v1367
    %vm1369 = vcmp.ge.f32.partialorder %v1327, 2.2
    %v1370 = vsel %vm1369, 1, 0
    %v1371 = vcvt.s32.f32 %v1370
    %v1372 = vsub.f32 %v1338, %v1341
    %v1373 = vsub.f32 %v1341, %v1344
    %v1374 = vsub.f32 %v1344, %v1347
    %v1375 = vsub.f32 %v1347, %v1350
    %v1376 = vsub.f32 %v1350, %v1353
    %v1377 = vsub.f32 %v1353, %v1356
    %v1378 = vsub.f32 %v1356, %v1359
    %v1379 = vsub.f32 %v1359, %v1362
    %v1380 = vsub.f32 %v1362, %v1365
    %v1381 = vsub.f32 %v1365, %v1368
    %v1382 = vsub.f32 %v1368, %v1371
    %v1383 = vsub.f32 %v1327, -2.2
    %v1384 = vmul.f32 %v1383, 2.5
    %v1385 = vmul.f32 %v1384, %v1372
    %v1386 = vsub.f32 -1.4, %v1327
    %v1387 = vmul.f32 %v1386, 2.5
    %v1388 = vmul.f32 %v1387, %v1373
    %v1389 = vadd.f32 %v1385, %v1388
    %v1390 = vsub.f32 %v1327, -1.8
    %v1391 = vmul.f32 %v1390, 2.5
    %v1392 = vmul.f32 %v1391, %v1373
    %v1393 = vsub.f32 -1.0, %v1327
    %v1394 = vmul.f32 %v1393, 2.5
    %v1395 = vmul.f32 %v1394, %v1374
    %v1396 = vadd.f32 %v1392, %v1395
    %v1397 = vsub.f32 %v1327, -1.4
    %v1398 = vmul.f32 %v1397, 2.5
    %v1399 = vmul.f32 %v1398, %v1374
    %v1400 = vsub.f32 -0.6, %v1327
    %v1401 = vmul.f32 %v1400, 2.5
    %v1402 = vmul.f32 %v1401, %v1375
    %v1403 = vadd.f32 %v1399, %v1402
    %v1404 = vsub.f32 %v1327, -1.0
    %v1405 = vmul.f32 %v1404, 2.5
    %v1406 = vmul.f32 %v1405, %v1375
    %v1407 = vsub.f32 -0.2, %v1327
    %v1408 = vmul.f32 %v1407, 2.5
    %v1409 = vmul.f32 %v1408, %v1376
    %v1410 = vadd.f32 %v1406, %v1409
    %v1411 = vsub.f32 %v1327, -0.6
    %v1412 = vmul.f32 %v1411, 2.5
    %v1413 = vmul.f32 %v1412, %v1376
    %v1414 = vsub.f32 0.2, %v1327
    %v1415 = vmul.f32 %v1414, 2.5
    %v1416 = vmul.f32 %v1415, %v1377
    %v1417 = vadd.f32 %v1413, %v1416
    %v1418 = vsub.f32 %v1327, -0.2
    %v1419 = vmul.f32 %v1418, 2.5
    %v1420 = vmul.f32 %v1419, %v1377
    %v1421 = vsub.f32 0.6, %v1327
    %v1422 = vmul.f32 %v1421, 2.5
    %v1423 = vmul.f32 %v1422, %v1378
    %v1424 = vadd.f32 %v1420, %v1423
    %v1425 = vsub.f32 %v1327, 0.2
    %v1426 = vmul.f32 %v1425, 2.5
    %v1427 = vmul.f32 %v1426, %v1378
    %v1428 = vsub.f32 1.0, %v1327
    %v1429 = vmul.f32 %v1428, 2.5
    %v1430 = vmul.f32 %v1429, %v1379
    %v1431 = vadd.f32 %v1427, %v1430
    %v1432 = vsub.f32 %v1327, 0.6
    %v1433 = vmul.f32 %v1432, 2.5
    %v1434 = vmul.f32 %v1433, %v1379
    %v1435 = vsub.f32 1.4, %v1327
    %v1436 = vmul.f32 %v1435, 2.5
    %v1437 = vmul.f32 %v1436, %v1380
    %v1438 = vadd.f32 %v1434, %v1437
    %v1439 = vsub.f32 %v1327, 1.0
    %v1440 = vmul.f32 %v1439, 2.5
    %v1441 = vmul.f32 %v1440, %v1380
    %v1442 = vsub.f32 1.8, %v1327
    %v1443 = vmul.f32 %v1442, 2.5
    %v1444 = vmul.f32 %v1443, %v1381
    %v1445 = vadd.f32 %v1441, %v1444
    %v1446 = vsub.f32 %v1327, 1.4
    %v1447 = vmul.f32 %v1446, 2.5
    %v1448 = vmul.f32 %v1447, %v1381
    %v1449 = vsub.f32 2.2, %v1327
    %v1450 = vmul.f32 %v1449, 2.5
    %v1451 = vmul.f32 %v1450, %v1382
    %v1452 = vadd.f32 %v1448, %v1451
    %v1453 = vmul.f32 %v1383, 1.25
    %v1454 = vmul.f32 %v1453, %v1389
    %v1455 = vmul.f32 %v1393, 1.25
    %v1456 = vmul.f32 %v1455, %v1396
    %v1457 = vadd.f32 %v1454, %v1456
    %v1458 = vmul.f32 %v1390, 1.25
    %v1459 = vmul.f32 %v1458, %v1396
    %v1460 = vmul.f32 %v1400, 1.25
    %v1461 = vmul.f32 %v1460, %v1403
    %v1462 = vadd.f32 %v1459, %v1461
    %v1463 = vmul.f32 %v1397, 1.25
    %v1464 = vmul.f32 %v1463, %v1403
    %v1465 = vmul.f32 %v1407, 1.25
    %v1466 = vmul.f32 %v1465, %v1410
    %v1467 = vadd.f32 %v1464, %v1466
    %v1468 = vmul.f32 %v1404, 1.25
    %v1469 = vmul.f32 %v1468, %v1410
    %v1470 = vmul.f32 %v1414, 1.25
    %v1471 = vmul.f32 %v1470, %v1417
    %v1472 = vadd.f32 %v1469, %v1471
    %v1473 = vmul.f32 %v1411, 1.25
    %v1474 = vmul.f32 %v1473, %v1417
    %v1475 = vmul.f32 %v1421, 1.25
    %v1476 = vmul.f32 %v1475, %v1424
    %v1477 = vadd.f32 %v1474, %v1476
    %v1478 = vmul.f32 %v1418, 1.25
    %v1479 = vmul.f32 %v1478, %v1424
    %v1480 = vmul.f32 %v1428, 1.25
    %v1481 = vmul.f32 %v1480, %v1431
    %v1482 = vadd.f32 %v1479, %v1481
    %v1483 = vmul.f32 %v1425, 1.25
    %v1484 = vmul.f32 %v1483, %v1431
    %v1485 = vmul.f32 %v1435, 1.25
    %v1486 = vmul.f32 %v1485, %v1438
    %v1487 = vadd.f32 %v1484, %v1486
    %v1488 = vmul.f32 %v1432, 1.25
    %v1489 = vmul.f32 %v1488, %v1438
    %v1490 = vmul.f32 %v1442, 1.25
    %v1491 = vmul.f32 %v1490, %v1445
    %v1492 = vadd.f32 %v1489, %v1491
    %v1493 = vmul.f32 %v1439, 1.25
    %v1494 = vmul.f32 %v1493, %v1445
    %v1495 = vmul.f32 %v1449, 1.25
    %v1496 = vmul.f32 %v1495, %v1452
    %v1497 = vadd.f32 %v1494, %v1496
    %v1498 = vmul.f32 %v1383, 0.8333333
    %v1499 = vmul.f32 %v1498, %v1457
    %v1500 = vmul.f32 %v1400, 0.8333333
    %v1501 = vmul.f32 %v1500, %v1462
    %v1502 = vadd.f32 %v1499, %v1501
    %v1503 = vmul.f32 %v1390, 0.8333333
    %v1504 = vmul.f32 %v1503, %v1462
    %v1505 = vmul.f32 %v1407, 0.8333333
    %v1506 = vmul.f32 %v1505, %v1467
    %v1507 = vadd.f32 %v1504, %v1506
    %v1508 = vmul.f32 %v1397, 0.8333333
    %v1509 = vmul.f32 %v1508, %v1467
    %v1510 = vmul.f32 %v1414, 0.8333333
    %v1511 = vmul.f32 %v1510, %v1472
    %v1512 = vadd.f32 %v1509, %v1511
    %v1513 = vmul.f32 %v1404, 0.8333333
    %v1514 = vmul.f32 %v1513, %v1472
    %v1515 = vmul.f32 %v1421, 0.8333333
    %v1516 = vmul.f32 %v1515, %v1477
    %v1517 = vadd.f32 %v1514, %v1516
    %v1518 = vmul.f32 %v1411, 0.8333333
    %v1519 = vmul.f32 %v1518, %v1477
    %v1520 = vmul.f32 %v1428, 0.8333333
    %v1521 = vmul.f32 %v1520, %v1482
    %v1522 = vadd.f32 %v1519, %v1521
    %v1523 = vmul.f32 %v1418, 0.8333333
    %v1524 = vmul.f32 %v1523, %v1482
    %v1525 = vmul.f32 %v1435, 0.8333333
    %v1526 = vmul.f32 %v1525, %v1487
    %v1527 = vadd.f32 %v1524, %v1526
    %v1528 = vmul.f32 %v1425, 0.8333333
    %v1529 = vmul.f32 %v1528, %v1487
    %v1530 = vmul.f32 %v1442, 0.8333333
    %v1531 = vmul.f32 %v1530, %v1492
    %v1532 = vadd.f32 %v1529, %v1531
    %v1533 = vmul.f32 %v1432, 0.8333333
    %v1534 = vmul.f32 %v1533, %v1492
    %v1535 = vmul.f32 %v1449, 0.8333333
    %v1536 = vmul.f32 %v1535, %v1497
    %v1537 = vadd.f32 %v1534, %v1536
    %1539 = vrot.lane.b32.xlu0 %v1502, 32
    %v1540 = vpop.permute.xlu0 %1539
    %1543 = vrot.lane.b32.xlu0 %v1507, 64
    %v1544 = vpop.permute.xlu0 %1543
    %1547 = vrot.lane.b32.xlu0 %v1512, 96
    %v1548 = vpop.permute.xlu0 %1547
    %1551 = vrot.lane.b32.xlu0 %v1522, 32
    %v1552 = vpop.permute.xlu0 %1551
    %1555 = vrot.lane.b32.xlu0 %v1527, 64
    %v1556 = vpop.permute.xlu0 %1555
    %1559 = vrot.lane.b32.xlu0 %v1532, 96
    %v1560 = vpop.permute.xlu0 %1559
    %v1562 = vsel %vm271, %v1335, %v1540
    %v1563 = vsel %vm275, %v1562, %v1544
    %v1564 = vsel %vm279, %v1563, %v1548
    %v1565 = vsel %vm271, %v1517, %v1552
    %v1566 = vsel %vm275, %v1565, %v1556
    %v1567 = vsel %vm279, %v1566, %v1560
    %v1568 = vpack.c.bf16 %v1564, %v1564
    %v1569 = vpack.c.bf16 %v1567, %v1567
    %v1570 = vpack.c.bf16 %v1537, %v1537
    %v1571 = vld [vmem:[%s5] sm:$0xf]
    %v1572 = vld [vmem:[%s5 + $0x4] sm:$0xf]
    %v1573 = vld [vmem:[%s5 + $0x8] sm:$0xf]
    %v1574 = vld [vmem:[%s5 + $0xc] sm:$0xf]
    %v1575 = vld [vmem:[%s5 + $0x10] sm:$0xf]
    %v1576 = vld [vmem:[%s5 + $0x14] sm:$0xf]
    %v1577 = vld [vmem:[%s5 + $0x18] sm:$0xf]
    %v1578 = vld [vmem:[%s5 + $0x1c] sm:$0xf]
    %v1579 = vld [vmem:[%s5 + $0x20] sm:$0xf]
    %v1580 = vld [vmem:[%s5 + $0x24] sm:$0xf]
    %v1581 = vld [vmem:[%s5 + $0x28] sm:$0xf]
    %v1582 = vld [vmem:[%s5 + $0x2c] sm:$0xf]
    %v1583 = vld [vmem:[%s5 + $0x30] sm:$0xf]
    %v1584 = vld [vmem:[%s5 + $0x34] sm:$0xf]
    %v1585 = vld [vmem:[%s5 + $0x38] sm:$0xf]
    %v1586 = vld [vmem:[%s5 + $0x3c] sm:$0xf]
    %v1587 = vld [vmem:[%s5 + $0x40] sm:$0xf]
    %v1588 = vld [vmem:[%s5 + $0x44] sm:$0xf]
    %v1589 = vld [vmem:[%s5 + $0x48] sm:$0xf]
    %v1590 = vld [vmem:[%s5 + $0x4c] sm:$0xf]
    %v1591 = vld [vmem:[%s5 + $0x50] sm:$0xf]
    %v1592 = vld [vmem:[%s5 + $0x54] sm:$0xf]
    %v1593 = vld [vmem:[%s5 + $0x58] sm:$0xf]
    %v1594 = vld [vmem:[%s5 + $0x5c] sm:$0xf]
    %v1595 = vld [vmem:[%s5 + $0x60] sm:$0xf]
    %v1596 = vld [vmem:[%s5 + $0x64] sm:$0xf]
    %v1597 = vld [vmem:[%s5 + $0x68] sm:$0xf]
    %v1598 = vld [vmem:[%s5 + $0x6c] sm:$0xf]
    %v1599 = vld [vmem:[%s5 + $0x70] sm:$0xf]
    %v1600 = vld [vmem:[%s5 + $0x74] sm:$0xf]
    %v1601 = vld [vmem:[%s5 + $0x78] sm:$0xf]
    %v1602 = vld [vmem:[%s5 + $0x7c] sm:$0xf]
    %v1603 = vld [vmem:[%s5 + $0x80] sm:$0xf]
    %v1604 = vld [vmem:[%s5 + $0x84] sm:$0xf]
    %v1605 = vld [vmem:[%s5 + $0x88] sm:$0xf]
    %v1606 = vld [vmem:[%s5 + $0x8c] sm:$0xf]
    %v1643 = vunpack.c.l.b16 %v1571
    %v1644 = vunpack.c.l.b16 %v1572
    %v1645 = vunpack.c.l.b16 %v1573
    %v1646 = vunpack.c.l.b16 %v1574
    %v1647 = vunpack.c.l.b16 %v1575
    %v1648 = vunpack.c.l.b16 %v1576
    %v1649 = vunpack.c.l.b16 %v1577
    %v1650 = vunpack.c.l.b16 %v1578
    %v1651 = vunpack.c.l.b16 %v1579
    %v1652 = vunpack.c.l.b16 %v1580
    %v1653 = vunpack.c.l.b16 %v1581
    %v1654 = vunpack.c.l.b16 %v1582
    %v1655 = vunpack.c.l.b16 %v1583
    %v1656 = vunpack.c.l.b16 %v1584
    %v1657 = vunpack.c.l.b16 %v1585
    %v1658 = vunpack.c.l.b16 %v1586
    %v1659 = vunpack.c.l.b16 %v1587
    %v1660 = vunpack.c.l.b16 %v1588
    %v1661 = vunpack.c.l.b16 %v1589
    %v1662 = vunpack.c.l.b16 %v1590
    %v1663 = vunpack.c.l.b16 %v1591
    %v1664 = vunpack.c.l.b16 %v1592
    %v1665 = vunpack.c.l.b16 %v1593
    %v1666 = vunpack.c.l.b16 %v1594
    %v1667 = vunpack.c.l.b16 %v1595
    %v1668 = vunpack.c.l.b16 %v1596
    %v1669 = vunpack.c.l.b16 %v1597
    %v1670 = vunpack.c.l.b16 %v1598
    %v1671 = vunpack.c.l.b16 %v1599
    %v1672 = vunpack.c.l.b16 %v1600
    %v1673 = vunpack.c.l.b16 %v1601
    %v1674 = vunpack.c.l.b16 %v1602
    %v1675 = vunpack.c.l.b16 %v1603
    %v1676 = vunpack.c.l.b16 %v1604
    %v1677 = vunpack.c.l.b16 %v1605
    %v1678 = vunpack.c.l.b16 %v1606
    %v1679 = vpack.c.b16 %v1644, %v1643
    %v1680 = vpack.c.b16 %v1646, %v1645
    %v1681 = vpack.c.b16 %v1648, %v1647
    %v1682 = vpack.c.b16 %v1650, %v1649
    %v1683 = vpack.c.b16 %v1652, %v1651
    %v1684 = vpack.c.b16 %v1654, %v1653
    %v1685 = vpack.c.b16 %v1656, %v1655
    %v1686 = vpack.c.b16 %v1658, %v1657
    %v1687 = vpack.c.b16 %v1660, %v1659
    %v1688 = vpack.c.b16 %v1662, %v1661
    %v1689 = vpack.c.b16 %v1664, %v1663
    %v1690 = vpack.c.b16 %v1666, %v1665
    %v1691 = vpack.c.b16 %v1668, %v1667
    %v1692 = vpack.c.b16 %v1670, %v1669
    %v1693 = vpack.c.b16 %v1672, %v1671
    %v1694 = vpack.c.b16 %v1674, %v1673
    %v1695 = vpack.c.b16 %v1676, %v1675
    %v1696 = vpack.c.b16 %v1678, %v1677
    %v1716 = vsel %vm271, %v1570, 0
    %1718 = vmatprep.subr.bf16.mxu0 0
    %1719 = vmatpush1.bf16.msra.mxu0 %v1679
    %1720 = vmatprep.subr.bf16.mxu0 0
    %1721 = vmatpush1.bf16.msra.mxu0 %v1680
    %1722 = vmatprep.subr.bf16.mxu0 0
    %1723 = vmatpush1.bf16.msra.mxu0 %v1681
    %1724 = vmatprep.subr.bf16.mxu0 0
    %1725 = vmatpush1.bf16.msra.mxu0 %v1682
    %1726 = vmatprep.subr.bf16.mxu0 0
    %1727 = vmatpush1.bf16.msra.mxu0 %v1683
    %1728 = vmatprep.subr.bf16.mxu0 0
    %1729 = vmatpush1.bf16.msra.mxu0 %v1684
    %1730 = vmatprep.subr.bf16.mxu0 0
    %1731 = vmatpush1.bf16.msra.mxu0 %v1685
    %1732 = vmatprep.subr.bf16.mxu0 0
    %1733 = vmatpush1.bf16.msra.mxu0 %v1686
    %1734 = vmatprep.subr.bf16.mxu0 0
    %1735 = vmatpush1.bf16.msra.mxu0 %v1687
    %1736 = vmatprep.subr.bf16.mxu0 0
    %1737 = vmatpush1.bf16.msra.mxu0 %v1688
    %1738 = vmatprep.subr.bf16.mxu0 0
    %1739 = vmatpush1.bf16.msra.mxu0 %v1689
    %1740 = vmatprep.subr.bf16.mxu0 0
    %1741 = vmatpush1.bf16.msra.mxu0 %v1690
    %1742 = vmatprep.subr.bf16.mxu0 0
    %1743 = vmatpush1.bf16.msra.mxu0 %v1691
    %1744 = vmatprep.subr.bf16.mxu0 0
    %1745 = vmatpush1.bf16.msra.mxu0 %v1692
    %1746 = vmatprep.subr.bf16.mxu0 0
    %1747 = vmatpush1.bf16.msra.mxu0 %v1693
    %1748 = vmatprep.subr.bf16.mxu0 0
    %1749 = vmatpush1.bf16.msra.mxu0 %v1694
    %1750 = vmatprep.mubr.bf16.mxu0 %v1569
    %1751 = vmatmul.mubr.bf16.gmra.mrb[0].mxu0 %v1568
    %v1752 = vpop.f32.mrb[0].mxu0
    %v1753 = vadd.f32 0.0, %v1752
    %v1754 = vpop.f32.mrb[0].mxu0
    %v1755 = vpop.f32.mrb[0].mxu0
    %v1756 = vpop.f32.mrb[0].mxu0
    %1757 = vdwg.mxu0
    %1758 = vmatprep.subr.bf16.mxu0 0
    %1759 = vmatpush1.bf16.msra.mxu0 %v1695
    %1760 = vmatprep.subr.bf16.mxu0 0
    %1761 = vmatpush1.bf16.msra.mxu0 %v1696
    %1762 = vmatprep.subr.bf16.mxu0 0
    %1763 = vmatpush1.bf16.msra.mxu0 0
    %1764 = vmatprep.subr.bf16.mxu0 0
    %1765 = vmatpush1.bf16.msra.mxu0 0
    %1766 = vmatprep.subr.bf16.mxu0 0
    %1767 = vmatpush1.bf16.msra.mxu0 0
    %1768 = vmatprep.subr.bf16.mxu0 0
    %1769 = vmatpush1.bf16.msra.mxu0 0
    %1770 = vmatprep.subr.bf16.mxu0 0
    %1771 = vmatpush1.bf16.msra.mxu0 0
    %1772 = vmatprep.subr.bf16.mxu0 0
    %1773 = vmatpush1.bf16.msra.mxu0 0
    %1774 = vmatprep.subr.bf16.mxu0 0
    %1775 = vmatpush1.bf16.msra.mxu0 0
    %1776 = vmatprep.subr.bf16.mxu0 0
    %1777 = vmatpush1.bf16.msra.mxu0 0
    %1778 = vmatprep.subr.bf16.mxu0 0
    %1779 = vmatpush1.bf16.msra.mxu0 0
    %1780 = vmatprep.subr.bf16.mxu0 0
    %1781 = vmatpush1.bf16.msra.mxu0 0
    %1782 = vmatprep.subr.bf16.mxu0 0
    %1783 = vmatpush1.bf16.msra.mxu0 0
    %1784 = vmatprep.subr.bf16.mxu0 0
    %1785 = vmatpush1.bf16.msra.mxu0 0
    %1786 = vmatprep.subr.bf16.mxu0 0
    %1787 = vmatpush1.bf16.msra.mxu0 0
    %1788 = vmatprep.subr.bf16.mxu0 0
    %1789 = vmatpush1.bf16.msra.mxu0 0
    %1790 = vmatprep.mubr.bf16.mxu0 0
    %1791 = vmatmul.mubr.bf16.gmra.mrb[0].mxu0 %v1716
    %v1792 = vpop.f32.mrb[0].mxu0
    %v1793 = vadd.f32 %v1753, %v1792
    %v1794 = vpop.f32.mrb[0].mxu0
    %v1795 = vpop.f32.mrb[0].mxu0
    %v1796 = vpop.f32.mrb[0].mxu0
    %1797 = vdwg.mxu0
    %v1798 = vmul.f32 %v1793, 0.5
    %v1799 = vtanh.pop %v1798
    %v1800 = vadd.f32 %v1799, 1.0
    %v1801 = vmul.f32 %v1798, %v1800
    %vm1802 = vcmp.ge.f32.partialorder %v1793, -2.2
    %v1803 = vsel %vm1802, 1, 0
    %v1804 = vcvt.s32.f32 %v1803
    %vm1805 = vcmp.ge.f32.partialorder %v1793, -1.8
    %v1806 = vsel %vm1805, 1, 0
    %v1807 = vcvt.s32.f32 %v1806
    %vm1808 = vcmp.ge.f32.partialorder %v1793, -1.4
    %v1809 = vsel %vm1808, 1, 0
    %v1810 = vcvt.s32.f32 %v1809
    %vm1811 = vcmp.ge.f32.partialorder %v1793, -1.0
    %v1812 = vsel %vm1811, 1, 0
    %v1813 = vcvt.s32.f32 %v1812
    %vm1814 = vcmp.ge.f32.partialorder %v1793, -0.6
    %v1815 = vsel %vm1814, 1, 0
    %v1816 = vcvt.s32.f32 %v1815
    %vm1817 = vcmp.ge.f32.partialorder %v1793, -0.2
    %v1818 = vsel %vm1817, 1, 0
    %v1819 = vcvt.s32.f32 %v1818
    %vm1820 = vcmp.ge.f32.partialorder %v1793, 0.2
    %v1821 = vsel %vm1820, 1, 0
    %v1822 = vcvt.s32.f32 %v1821
    %vm1823 = vcmp.ge.f32.partialorder %v1793, 0.6
    %v1824 = vsel %vm1823, 1, 0
    %v1825 = vcvt.s32.f32 %v1824
    %vm1826 = vcmp.ge.f32.partialorder %v1793, 1.0
    %v1827 = vsel %vm1826, 1, 0
    %v1828 = vcvt.s32.f32 %v1827
    %vm1829 = vcmp.ge.f32.partialorder %v1793, 1.4
    %v1830 = vsel %vm1829, 1, 0
    %v1831 = vcvt.s32.f32 %v1830
    %vm1832 = vcmp.ge.f32.partialorder %v1793, 1.8
    %v1833 = vsel %vm1832, 1, 0
    %v1834 = vcvt.s32.f32 %v1833
    %vm1835 = vcmp.ge.f32.partialorder %v1793, 2.2
    %v1836 = vsel %vm1835, 1, 0
    %v1837 = vcvt.s32.f32 %v1836
    %v1838 = vsub.f32 %v1804, %v1807
    %v1839 = vsub.f32 %v1807, %v1810
    %v1840 = vsub.f32 %v1810, %v1813
    %v1841 = vsub.f32 %v1813, %v1816
    %v1842 = vsub.f32 %v1816, %v1819
    %v1843 = vsub.f32 %v1819, %v1822
    %v1844 = vsub.f32 %v1822, %v1825
    %v1845 = vsub.f32 %v1825, %v1828
    %v1846 = vsub.f32 %v1828, %v1831
    %v1847 = vsub.f32 %v1831, %v1834
    %v1848 = vsub.f32 %v1834, %v1837
    %v1849 = vsub.f32 %v1793, -2.2
    %v1850 = vmul.f32 %v1849, 2.5
    %v1851 = vmul.f32 %v1850, %v1838
    %v1852 = vsub.f32 -1.4, %v1793
    %v1853 = vmul.f32 %v1852, 2.5
    %v1854 = vmul.f32 %v1853, %v1839
    %v1855 = vadd.f32 %v1851, %v1854
    %v1856 = vsub.f32 %v1793, -1.8
    %v1857 = vmul.f32 %v1856, 2.5
    %v1858 = vmul.f32 %v1857, %v1839
    %v1859 = vsub.f32 -1.0, %v1793
    %v1860 = vmul.f32 %v1859, 2.5
    %v1861 = vmul.f32 %v1860, %v1840
    %v1862 = vadd.f32 %v1858, %v1861
    %v1863 = vsub.f32 %v1793, -1.4
    %v1864 = vmul.f32 %v1863, 2.5
    %v1865 = vmul.f32 %v1864, %v1840
    %v1866 = vsub.f32 -0.6, %v1793
    %v1867 = vmul.f32 %v1866, 2.5
    %v1868 = vmul.f32 %v1867, %v1841
    %v1869 = vadd.f32 %v1865, %v1868
    %v1870 = vsub.f32 %v1793, -1.0
    %v1871 = vmul.f32 %v1870, 2.5
    %v1872 = vmul.f32 %v1871, %v1841
    %v1873 = vsub.f32 -0.2, %v1793
    %v1874 = vmul.f32 %v1873, 2.5
    %v1875 = vmul.f32 %v1874, %v1842
    %v1876 = vadd.f32 %v1872, %v1875
    %v1877 = vsub.f32 %v1793, -0.6
    %v1878 = vmul.f32 %v1877, 2.5
    %v1879 = vmul.f32 %v1878, %v1842
    %v1880 = vsub.f32 0.2, %v1793
    %v1881 = vmul.f32 %v1880, 2.5
    %v1882 = vmul.f32 %v1881, %v1843
    %v1883 = vadd.f32 %v1879, %v1882
    %v1884 = vsub.f32 %v1793, -0.2
    %v1885 = vmul.f32 %v1884, 2.5
    %v1886 = vmul.f32 %v1885, %v1843
    %v1887 = vsub.f32 0.6, %v1793
    %v1888 = vmul.f32 %v1887, 2.5
    %v1889 = vmul.f32 %v1888, %v1844
    %v1890 = vadd.f32 %v1886, %v1889
    %v1891 = vsub.f32 %v1793, 0.2
    %v1892 = vmul.f32 %v1891, 2.5
    %v1893 = vmul.f32 %v1892, %v1844
    %v1894 = vsub.f32 1.0, %v1793
    %v1895 = vmul.f32 %v1894, 2.5
    %v1896 = vmul.f32 %v1895, %v1845
    %v1897 = vadd.f32 %v1893, %v1896
    %v1898 = vsub.f32 %v1793, 0.6
    %v1899 = vmul.f32 %v1898, 2.5
    %v1900 = vmul.f32 %v1899, %v1845
    %v1901 = vsub.f32 1.4, %v1793
    %v1902 = vmul.f32 %v1901, 2.5
    %v1903 = vmul.f32 %v1902, %v1846
    %v1904 = vadd.f32 %v1900, %v1903
    %v1905 = vsub.f32 %v1793, 1.0
    %v1906 = vmul.f32 %v1905, 2.5
    %v1907 = vmul.f32 %v1906, %v1846
    %v1908 = vsub.f32 1.8, %v1793
    %v1909 = vmul.f32 %v1908, 2.5
    %v1910 = vmul.f32 %v1909, %v1847
    %v1911 = vadd.f32 %v1907, %v1910
    %v1912 = vsub.f32 %v1793, 1.4
    %v1913 = vmul.f32 %v1912, 2.5
    %v1914 = vmul.f32 %v1913, %v1847
    %v1915 = vsub.f32 2.2, %v1793
    %v1916 = vmul.f32 %v1915, 2.5
    %v1917 = vmul.f32 %v1916, %v1848
    %v1918 = vadd.f32 %v1914, %v1917
    %v1919 = vmul.f32 %v1849, 1.25
    %v1920 = vmul.f32 %v1919, %v1855
    %v1921 = vmul.f32 %v1859, 1.25
    %v1922 = vmul.f32 %v1921, %v1862
    %v1923 = vadd.f32 %v1920, %v1922
    %v1924 = vmul.f32 %v1856, 1.25
    %v1925 = vmul.f32 %v1924, %v1862
    %v1926 = vmul.f32 %v1866, 1.25
    %v1927 = vmul.f32 %v1926, %v1869
    %v1928 = vadd.f32 %v1925, %v1927
    %v1929 = vmul.f32 %v1863, 1.25
    %v1930 = vmul.f32 %v1929, %v1869
    %v1931 = vmul.f32 %v1873, 1.25
    %v1932 = vmul.f32 %v1931, %v1876
    %v1933 = vadd.f32 %v1930, %v1932
    %v1934 = vmul.f32 %v1870, 1.25
    %v1935 = vmul.f32 %v1934, %v1876
    %v1936 = vmul.f32 %v1880, 1.25
    %v1937 = vmul.f32 %v1936, %v1883
    %v1938 = vadd.f32 %v1935, %v1937
    %v1939 = vmul.f32 %v1877, 1.25
    %v1940 = vmul.f32 %v1939, %v1883
    %v1941 = vmul.f32 %v1887, 1.25
    %v1942 = vmul.f32 %v1941, %v1890
    %v1943 = vadd.f32 %v1940, %v1942
    %v1944 = vmul.f32 %v1884, 1.25
    %v1945 = vmul.f32 %v1944, %v1890
    %v1946 = vmul.f32 %v1894, 1.25
    %v1947 = vmul.f32 %v1946, %v1897
    %v1948 = vadd.f32 %v1945, %v1947
    %v1949 = vmul.f32 %v1891, 1.25
    %v1950 = vmul.f32 %v1949, %v1897
    %v1951 = vmul.f32 %v1901, 1.25
    %v1952 = vmul.f32 %v1951, %v1904
    %v1953 = vadd.f32 %v1950, %v1952
    %v1954 = vmul.f32 %v1898, 1.25
    %v1955 = vmul.f32 %v1954, %v1904
    %v1956 = vmul.f32 %v1908, 1.25
    %v1957 = vmul.f32 %v1956, %v1911
    %v1958 = vadd.f32 %v1955, %v1957
    %v1959 = vmul.f32 %v1905, 1.25
    %v1960 = vmul.f32 %v1959, %v1911
    %v1961 = vmul.f32 %v1915, 1.25
    %v1962 = vmul.f32 %v1961, %v1918
    %v1963 = vadd.f32 %v1960, %v1962
    %v1964 = vmul.f32 %v1849, 0.8333333
    %v1965 = vmul.f32 %v1964, %v1923
    %v1966 = vmul.f32 %v1866, 0.8333333
    %v1967 = vmul.f32 %v1966, %v1928
    %v1968 = vadd.f32 %v1965, %v1967
    %v1969 = vmul.f32 %v1856, 0.8333333
    %v1970 = vmul.f32 %v1969, %v1928
    %v1971 = vmul.f32 %v1873, 0.8333333
    %v1972 = vmul.f32 %v1971, %v1933
    %v1973 = vadd.f32 %v1970, %v1972
    %v1974 = vmul.f32 %v1863, 0.8333333
    %v1975 = vmul.f32 %v1974, %v1933
    %v1976 = vmul.f32 %v1880, 0.8333333
    %v1977 = vmul.f32 %v1976, %v1938
    %v1978 = vadd.f32 %v1975, %v1977
    %v1979 = vmul.f32 %v1870, 0.8333333
    %v1980 = vmul.f32 %v1979, %v1938
    %v1981 = vmul.f32 %v1887, 0.8333333
    %v1982 = vmul.f32 %v1981, %v1943
    %v1983 = vadd.f32 %v1980, %v1982
    %v1984 = vmul.f32 %v1877, 0.8333333
    %v1985 = vmul.f32 %v1984, %v1943
    %v1986 = vmul.f32 %v1894, 0.8333333
    %v1987 = vmul.f32 %v1986, %v1948
    %v1988 = vadd.f32 %v1985, %v1987
    %v1989 = vmul.f32 %v1884, 0.8333333
    %v1990 = vmul.f32 %v1989, %v1948
    %v1991 = vmul.f32 %v1901, 0.8333333
    %v1992 = vmul.f32 %v1991, %v1953
    %v1993 = vadd.f32 %v1990, %v1992
    %v1994 = vmul.f32 %v1891, 0.8333333
    %v1995 = vmul.f32 %v1994, %v1953
    %v1996 = vmul.f32 %v1908, 0.8333333
    %v1997 = vmul.f32 %v1996, %v1958
    %v1998 = vadd.f32 %v1995, %v1997
    %v1999 = vmul.f32 %v1898, 0.8333333
    %v2000 = vmul.f32 %v1999, %v1958
    %v2001 = vmul.f32 %v1915, 0.8333333
    %v2002 = vmul.f32 %v2001, %v1963
    %v2003 = vadd.f32 %v2000, %v2002
    %2005 = vrot.lane.b32.xlu0 %v1968, 32
    %v2006 = vpop.permute.xlu0 %2005
    %2009 = vrot.lane.b32.xlu0 %v1973, 64
    %v2010 = vpop.permute.xlu0 %2009
    %2013 = vrot.lane.b32.xlu0 %v1978, 96
    %v2014 = vpop.permute.xlu0 %2013
    %2017 = vrot.lane.b32.xlu0 %v1988, 32
    %v2018 = vpop.permute.xlu0 %2017
    %2021 = vrot.lane.b32.xlu0 %v1993, 64
    %v2022 = vpop.permute.xlu0 %2021
    %2025 = vrot.lane.b32.xlu0 %v1998, 96
    %v2026 = vpop.permute.xlu0 %2025
    %v2028 = vsel %vm271, %v1801, %v2006
    %v2029 = vsel %vm275, %v2028, %v2010
    %v2030 = vsel %vm279, %v2029, %v2014
    %v2031 = vsel %vm271, %v1983, %v2018
    %v2032 = vsel %vm275, %v2031, %v2022
    %v2033 = vsel %vm279, %v2032, %v2026
    %v2034 = vpack.c.bf16 %v2030, %v2030
    %v2035 = vpack.c.bf16 %v2033, %v2033
    %v2036 = vpack.c.bf16 %v2003, %v2003
    %v2037 = vld [vmem:[%s6] sm:$0xf]
    %v2038 = vld [vmem:[%s6 + $0x4] sm:$0xf]
    %v2039 = vld [vmem:[%s6 + $0x8] sm:$0xf]
    %v2040 = vld [vmem:[%s6 + $0xc] sm:$0xf]
    %v2041 = vld [vmem:[%s6 + $0x10] sm:$0xf]
    %v2042 = vld [vmem:[%s6 + $0x14] sm:$0xf]
    %v2043 = vld [vmem:[%s6 + $0x18] sm:$0xf]
    %v2044 = vld [vmem:[%s6 + $0x1c] sm:$0xf]
    %v2045 = vld [vmem:[%s6 + $0x20] sm:$0xf]
    %v2046 = vld [vmem:[%s6 + $0x24] sm:$0xf]
    %v2047 = vld [vmem:[%s6 + $0x28] sm:$0xf]
    %v2048 = vld [vmem:[%s6 + $0x2c] sm:$0xf]
    %v2049 = vld [vmem:[%s6 + $0x30] sm:$0xf]
    %v2050 = vld [vmem:[%s6 + $0x34] sm:$0xf]
    %v2051 = vld [vmem:[%s6 + $0x38] sm:$0xf]
    %v2052 = vld [vmem:[%s6 + $0x3c] sm:$0xf]
    %v2053 = vld [vmem:[%s6 + $0x40] sm:$0xf]
    %v2054 = vld [vmem:[%s6 + $0x44] sm:$0xf]
    %v2055 = vld [vmem:[%s6 + $0x48] sm:$0xf]
    %v2056 = vld [vmem:[%s6 + $0x4c] sm:$0xf]
    %v2057 = vld [vmem:[%s6 + $0x50] sm:$0xf]
    %v2058 = vld [vmem:[%s6 + $0x54] sm:$0xf]
    %v2059 = vld [vmem:[%s6 + $0x58] sm:$0xf]
    %v2060 = vld [vmem:[%s6 + $0x5c] sm:$0xf]
    %v2061 = vld [vmem:[%s6 + $0x60] sm:$0xf]
    %v2062 = vld [vmem:[%s6 + $0x64] sm:$0xf]
    %v2063 = vld [vmem:[%s6 + $0x68] sm:$0xf]
    %v2064 = vld [vmem:[%s6 + $0x6c] sm:$0xf]
    %v2065 = vld [vmem:[%s6 + $0x70] sm:$0xf]
    %v2066 = vld [vmem:[%s6 + $0x74] sm:$0xf]
    %v2067 = vld [vmem:[%s6 + $0x78] sm:$0xf]
    %v2068 = vld [vmem:[%s6 + $0x7c] sm:$0xf]
    %v2069 = vld [vmem:[%s6 + $0x80] sm:$0xf]
    %v2070 = vld [vmem:[%s6 + $0x84] sm:$0xf]
    %v2071 = vld [vmem:[%s6 + $0x88] sm:$0xf]
    %v2072 = vld [vmem:[%s6 + $0x8c] sm:$0xf]
    %v2109 = vunpack.c.l.b16 %v2037
    %v2110 = vunpack.c.l.b16 %v2038
    %v2111 = vunpack.c.l.b16 %v2039
    %v2112 = vunpack.c.l.b16 %v2040
    %v2113 = vunpack.c.l.b16 %v2041
    %v2114 = vunpack.c.l.b16 %v2042
    %v2115 = vunpack.c.l.b16 %v2043
    %v2116 = vunpack.c.l.b16 %v2044
    %v2117 = vunpack.c.l.b16 %v2045
    %v2118 = vunpack.c.l.b16 %v2046
    %v2119 = vunpack.c.l.b16 %v2047
    %v2120 = vunpack.c.l.b16 %v2048
    %v2121 = vunpack.c.l.b16 %v2049
    %v2122 = vunpack.c.l.b16 %v2050
    %v2123 = vunpack.c.l.b16 %v2051
    %v2124 = vunpack.c.l.b16 %v2052
    %v2125 = vunpack.c.l.b16 %v2053
    %v2126 = vunpack.c.l.b16 %v2054
    %v2127 = vunpack.c.l.b16 %v2055
    %v2128 = vunpack.c.l.b16 %v2056
    %v2129 = vunpack.c.l.b16 %v2057
    %v2130 = vunpack.c.l.b16 %v2058
    %v2131 = vunpack.c.l.b16 %v2059
    %v2132 = vunpack.c.l.b16 %v2060
    %v2133 = vunpack.c.l.b16 %v2061
    %v2134 = vunpack.c.l.b16 %v2062
    %v2135 = vunpack.c.l.b16 %v2063
    %v2136 = vunpack.c.l.b16 %v2064
    %v2137 = vunpack.c.l.b16 %v2065
    %v2138 = vunpack.c.l.b16 %v2066
    %v2139 = vunpack.c.l.b16 %v2067
    %v2140 = vunpack.c.l.b16 %v2068
    %v2141 = vunpack.c.l.b16 %v2069
    %v2142 = vunpack.c.l.b16 %v2070
    %v2143 = vunpack.c.l.b16 %v2071
    %v2144 = vunpack.c.l.b16 %v2072
    %v2145 = vpack.c.b16 %v2110, %v2109
    %v2146 = vpack.c.b16 %v2112, %v2111
    %v2147 = vpack.c.b16 %v2114, %v2113
    %v2148 = vpack.c.b16 %v2116, %v2115
    %v2149 = vpack.c.b16 %v2118, %v2117
    %v2150 = vpack.c.b16 %v2120, %v2119
    %v2151 = vpack.c.b16 %v2122, %v2121
    %v2152 = vpack.c.b16 %v2124, %v2123
    %v2153 = vpack.c.b16 %v2126, %v2125
    %v2154 = vpack.c.b16 %v2128, %v2127
    %v2155 = vpack.c.b16 %v2130, %v2129
    %v2156 = vpack.c.b16 %v2132, %v2131
    %v2157 = vpack.c.b16 %v2134, %v2133
    %v2158 = vpack.c.b16 %v2136, %v2135
    %v2159 = vpack.c.b16 %v2138, %v2137
    %v2160 = vpack.c.b16 %v2140, %v2139
    %v2161 = vpack.c.b16 %v2142, %v2141
    %v2162 = vpack.c.b16 %v2144, %v2143
    %v2182 = vsel %vm271, %v2036, 0
    %2184 = vmatprep.subr.bf16.mxu0 0
    %2185 = vmatpush1.bf16.msra.mxu0 %v2145
    %2186 = vmatprep.subr.bf16.mxu0 0
    %2187 = vmatpush1.bf16.msra.mxu0 %v2146
    %2188 = vmatprep.subr.bf16.mxu0 0
    %2189 = vmatpush1.bf16.msra.mxu0 %v2147
    %2190 = vmatprep.subr.bf16.mxu0 0
    %2191 = vmatpush1.bf16.msra.mxu0 %v2148
    %2192 = vmatprep.subr.bf16.mxu0 0
    %2193 = vmatpush1.bf16.msra.mxu0 %v2149
    %2194 = vmatprep.subr.bf16.mxu0 0
    %2195 = vmatpush1.bf16.msra.mxu0 %v2150
    %2196 = vmatprep.subr.bf16.mxu0 0
    %2197 = vmatpush1.bf16.msra.mxu0 %v2151
    %2198 = vmatprep.subr.bf16.mxu0 0
    %2199 = vmatpush1.bf16.msra.mxu0 %v2152
    %2200 = vmatprep.subr.bf16.mxu0 0
    %2201 = vmatpush1.bf16.msra.mxu0 %v2153
    %2202 = vmatprep.subr.bf16.mxu0 0
    %2203 = vmatpush1.bf16.msra.mxu0 %v2154
    %2204 = vmatprep.subr.bf16.mxu0 0
    %2205 = vmatpush1.bf16.msra.mxu0 %v2155
    %2206 = vmatprep.subr.bf16.mxu0 0
    %2207 = vmatpush1.bf16.msra.mxu0 %v2156
    %2208 = vmatprep.subr.bf16.mxu0 0
    %2209 = vmatpush1.bf16.msra.mxu0 %v2157
    %2210 = vmatprep.subr.bf16.mxu0 0
    %2211 = vmatpush1.bf16.msra.mxu0 %v2158
    %2212 = vmatprep.subr.bf16.mxu0 0
    %2213 = vmatpush1.bf16.msra.mxu0 %v2159
    %2214 = vmatprep.subr.bf16.mxu0 0
    %2215 = vmatpush1.bf16.msra.mxu0 %v2160
    %2216 = vmatprep.mubr.bf16.mxu0 %v2035
    %2217 = vmatmul.mubr.bf16.gmra.mrb[0].mxu0 %v2034
    %v2218 = vpop.f32.mrb[0].mxu0
    %v2219 = vadd.f32 0.0, %v2218
    %v2220 = vpop.f32.mrb[0].mxu0
    %v2221 = vpop.f32.mrb[0].mxu0
    %v2222 = vpop.f32.mrb[0].mxu0
    %2223 = vdwg.mxu0
    %2224 = vmatprep.subr.bf16.mxu0 0
    %2225 = vmatpush1.bf16.msra.mxu0 %v2161
    %2226 = vmatprep.subr.bf16.mxu0 0
    %2227 = vmatpush1.bf16.msra.mxu0 %v2162
    %2228 = vmatprep.subr.bf16.mxu0 0
    %2229 = vmatpush1.bf16.msra.mxu0 0
    %2230 = vmatprep.subr.bf16.mxu0 0
    %2231 = vmatpush1.bf16.msra.mxu0 0
    %2232 = vmatprep.subr.bf16.mxu0 0
    %2233 = vmatpush1.bf16.msra.mxu0 0
    %2234 = vmatprep.subr.bf16.mxu0 0
    %2235 = vmatpush1.bf16.msra.mxu0 0
    %2236 = vmatprep.subr.bf16.mxu0 0
    %2237 = vmatpush1.bf16.msra.mxu0 0
    %2238 = vmatprep.subr.bf16.mxu0 0
    %2239 = vmatpush1.bf16.msra.mxu0 0
    %2240 = vmatprep.subr.bf16.mxu0 0
    %2241 = vmatpush1.bf16.msra.mxu0 0
    %2242 = vmatprep.subr.bf16.mxu0 0
    %2243 = vmatpush1.bf16.msra.mxu0 0
    %2244 = vmatprep.subr.bf16.mxu0 0
    %2245 = vmatpush1.bf16.msra.mxu0 0
    %2246 = vmatprep.subr.bf16.mxu0 0
    %2247 = vmatpush1.bf16.msra.mxu0 0
    %2248 = vmatprep.subr.bf16.mxu0 0
    %2249 = vmatpush1.bf16.msra.mxu0 0
    %2250 = vmatprep.subr.bf16.mxu0 0
    %2251 = vmatpush1.bf16.msra.mxu0 0
    %2252 = vmatprep.subr.bf16.mxu0 0
    %2253 = vmatpush1.bf16.msra.mxu0 0
    %2254 = vmatprep.subr.bf16.mxu0 0
    %2255 = vmatpush1.bf16.msra.mxu0 0
    %2256 = vmatprep.mubr.bf16.mxu0 0
    %2257 = vmatmul.mubr.bf16.gmra.mrb[0].mxu0 %v2182
    %v2258 = vpop.f32.mrb[0].mxu0
    %v2259 = vadd.f32 %v2219, %v2258
    %v2260 = vpop.f32.mrb[0].mxu0
    %v2261 = vpop.f32.mrb[0].mxu0
    %v2262 = vpop.f32.mrb[0].mxu0
    %2263 = vdwg.mxu0
    %v2264 = vmul.f32 %v2259, 0.5
    %v2265 = vtanh.pop %v2264
    %v2266 = vadd.f32 %v2265, 1.0
    %v2267 = vmul.f32 %v2264, %v2266
    %vm2268 = vcmp.ge.f32.partialorder %v2259, -2.2
    %v2269 = vsel %vm2268, 1, 0
    %v2270 = vcvt.s32.f32 %v2269
    %vm2271 = vcmp.ge.f32.partialorder %v2259, -1.8
    %v2272 = vsel %vm2271, 1, 0
    %v2273 = vcvt.s32.f32 %v2272
    %vm2274 = vcmp.ge.f32.partialorder %v2259, -1.4
    %v2275 = vsel %vm2274, 1, 0
    %v2276 = vcvt.s32.f32 %v2275
    %vm2277 = vcmp.ge.f32.partialorder %v2259, -1.0
    %v2278 = vsel %vm2277, 1, 0
    %v2279 = vcvt.s32.f32 %v2278
    %vm2280 = vcmp.ge.f32.partialorder %v2259, -0.6
    %v2281 = vsel %vm2280, 1, 0
    %v2282 = vcvt.s32.f32 %v2281
    %vm2283 = vcmp.ge.f32.partialorder %v2259, -0.2
    %v2284 = vsel %vm2283, 1, 0
    %v2285 = vcvt.s32.f32 %v2284
    %vm2286 = vcmp.ge.f32.partialorder %v2259, 0.2
    %v2287 = vsel %vm2286, 1, 0
    %v2288 = vcvt.s32.f32 %v2287
    %vm2289 = vcmp.ge.f32.partialorder %v2259, 0.6
    %v2290 = vsel %vm2289, 1, 0
    %v2291 = vcvt.s32.f32 %v2290
    %vm2292 = vcmp.ge.f32.partialorder %v2259, 1.0
    %v2293 = vsel %vm2292, 1, 0
    %v2294 = vcvt.s32.f32 %v2293
    %vm2295 = vcmp.ge.f32.partialorder %v2259, 1.4
    %v2296 = vsel %vm2295, 1, 0
    %v2297 = vcvt.s32.f32 %v2296
    %vm2298 = vcmp.ge.f32.partialorder %v2259, 1.8
    %v2299 = vsel %vm2298, 1, 0
    %v2300 = vcvt.s32.f32 %v2299
    %vm2301 = vcmp.ge.f32.partialorder %v2259, 2.2
    %v2302 = vsel %vm2301, 1, 0
    %v2303 = vcvt.s32.f32 %v2302
    %v2304 = vsub.f32 %v2270, %v2273
    %v2305 = vsub.f32 %v2273, %v2276
    %v2306 = vsub.f32 %v2276, %v2279
    %v2307 = vsub.f32 %v2279, %v2282
    %v2308 = vsub.f32 %v2282, %v2285
    %v2309 = vsub.f32 %v2285, %v2288
    %v2310 = vsub.f32 %v2288, %v2291
    %v2311 = vsub.f32 %v2291, %v2294
    %v2312 = vsub.f32 %v2294, %v2297
    %v2313 = vsub.f32 %v2297, %v2300
    %v2314 = vsub.f32 %v2300, %v2303
    %v2315 = vsub.f32 %v2259, -2.2
    %v2316 = vmul.f32 %v2315, 2.5
    %v2317 = vmul.f32 %v2316, %v2304
    %v2318 = vsub.f32 -1.4, %v2259
    %v2319 = vmul.f32 %v2318, 2.5
    %v2320 = vmul.f32 %v2319, %v2305
    %v2321 = vadd.f32 %v2317, %v2320
    %v2322 = vsub.f32 %v2259, -1.8
    %v2323 = vmul.f32 %v2322, 2.5
    %v2324 = vmul.f32 %v2323, %v2305
    %v2325 = vsub.f32 -1.0, %v2259
    %v2326 = vmul.f32 %v2325, 2.5
    %v2327 = vmul.f32 %v2326, %v2306
    %v2328 = vadd.f32 %v2324, %v2327
    %v2329 = vsub.f32 %v2259, -1.4
    %v2330 = vmul.f32 %v2329, 2.5
    %v2331 = vmul.f32 %v2330, %v2306
    %v2332 = vsub.f32 -0.6, %v2259
    %v2333 = vmul.f32 %v2332, 2.5
    %v2334 = vmul.f32 %v2333, %v2307
    %v2335 = vadd.f32 %v2331, %v2334
    %v2336 = vsub.f32 %v2259, -1.0
    %v2337 = vmul.f32 %v2336, 2.5
    %v2338 = vmul.f32 %v2337, %v2307
    %v2339 = vsub.f32 -0.2, %v2259
    %v2340 = vmul.f32 %v2339, 2.5
    %v2341 = vmul.f32 %v2340, %v2308
    %v2342 = vadd.f32 %v2338, %v2341
    %v2343 = vsub.f32 %v2259, -0.6
    %v2344 = vmul.f32 %v2343, 2.5
    %v2345 = vmul.f32 %v2344, %v2308
    %v2346 = vsub.f32 0.2, %v2259
    %v2347 = vmul.f32 %v2346, 2.5
    %v2348 = vmul.f32 %v2347, %v2309
    %v2349 = vadd.f32 %v2345, %v2348
    %v2350 = vsub.f32 %v2259, -0.2
    %v2351 = vmul.f32 %v2350, 2.5
    %v2352 = vmul.f32 %v2351, %v2309
    %v2353 = vsub.f32 0.6, %v2259
    %v2354 = vmul.f32 %v2353, 2.5
    %v2355 = vmul.f32 %v2354, %v2310
    %v2356 = vadd.f32 %v2352, %v2355
    %v2357 = vsub.f32 %v2259, 0.2
    %v2358 = vmul.f32 %v2357, 2.5
    %v2359 = vmul.f32 %v2358, %v2310
    %v2360 = vsub.f32 1.0, %v2259
    %v2361 = vmul.f32 %v2360, 2.5
    %v2362 = vmul.f32 %v2361, %v2311
    %v2363 = vadd.f32 %v2359, %v2362
    %v2364 = vsub.f32 %v2259, 0.6
    %v2365 = vmul.f32 %v2364, 2.5
    %v2366 = vmul.f32 %v2365, %v2311
    %v2367 = vsub.f32 1.4, %v2259
    %v2368 = vmul.f32 %v2367, 2.5
    %v2369 = vmul.f32 %v2368, %v2312
    %v2370 = vadd.f32 %v2366, %v2369
    %v2371 = vsub.f32 %v2259, 1.0
    %v2372 = vmul.f32 %v2371, 2.5
    %v2373 = vmul.f32 %v2372, %v2312
    %v2374 = vsub.f32 1.8, %v2259
    %v2375 = vmul.f32 %v2374, 2.5
    %v2376 = vmul.f32 %v2375, %v2313
    %v2377 = vadd.f32 %v2373, %v2376
    %v2378 = vsub.f32 %v2259, 1.4
    %v2379 = vmul.f32 %v2378, 2.5
    %v2380 = vmul.f32 %v2379, %v2313
    %v2381 = vsub.f32 2.2, %v2259
    %v2382 = vmul.f32 %v2381, 2.5
    %v2383 = vmul.f32 %v2382, %v2314
    %v2384 = vadd.f32 %v2380, %v2383
    %v2385 = vmul.f32 %v2315, 1.25
    %v2386 = vmul.f32 %v2385, %v2321
    %v2387 = vmul.f32 %v2325, 1.25
    %v2388 = vmul.f32 %v2387, %v2328
    %v2389 = vadd.f32 %v2386, %v2388
    %v2390 = vmul.f32 %v2322, 1.25
    %v2391 = vmul.f32 %v2390, %v2328
    %v2392 = vmul.f32 %v2332, 1.25
    %v2393 = vmul.f32 %v2392, %v2335
    %v2394 = vadd.f32 %v2391, %v2393
    %v2395 = vmul.f32 %v2329, 1.25
    %v2396 = vmul.f32 %v2395, %v2335
    %v2397 = vmul.f32 %v2339, 1.25
    %v2398 = vmul.f32 %v2397, %v2342
    %v2399 = vadd.f32 %v2396, %v2398
    %v2400 = vmul.f32 %v2336, 1.25
    %v2401 = vmul.f32 %v2400, %v2342
    %v2402 = vmul.f32 %v2346, 1.25
    %v2403 = vmul.f32 %v2402, %v2349
    %v2404 = vadd.f32 %v2401, %v2403
    %v2405 = vmul.f32 %v2343, 1.25
    %v2406 = vmul.f32 %v2405, %v2349
    %v2407 = vmul.f32 %v2353, 1.25
    %v2408 = vmul.f32 %v2407, %v2356
    %v2409 = vadd.f32 %v2406, %v2408
    %v2410 = vmul.f32 %v2350, 1.25
    %v2411 = vmul.f32 %v2410, %v2356
    %v2412 = vmul.f32 %v2360, 1.25
    %v2413 = vmul.f32 %v2412, %v2363
    %v2414 = vadd.f32 %v2411, %v2413
    %v2415 = vmul.f32 %v2357, 1.25
    %v2416 = vmul.f32 %v2415, %v2363
    %v2417 = vmul.f32 %v2367, 1.25
    %v2418 = vmul.f32 %v2417, %v2370
    %v2419 = vadd.f32 %v2416, %v2418
    %v2420 = vmul.f32 %v2364, 1.25
    %v2421 = vmul.f32 %v2420, %v2370
    %v2422 = vmul.f32 %v2374, 1.25
    %v2423 = vmul.f32 %v2422, %v2377
    %v2424 = vadd.f32 %v2421, %v2423
    %v2425 = vmul.f32 %v2371, 1.25
    %v2426 = vmul.f32 %v2425, %v2377
    %v2427 = vmul.f32 %v2381, 1.25
    %v2428 = vmul.f32 %v2427, %v2384
    %v2429 = vadd.f32 %v2426, %v2428
    %v2430 = vmul.f32 %v2315, 0.8333333
    %v2431 = vmul.f32 %v2430, %v2389
    %v2432 = vmul.f32 %v2332, 0.8333333
    %v2433 = vmul.f32 %v2432, %v2394
    %v2434 = vadd.f32 %v2431, %v2433
    %v2435 = vmul.f32 %v2322, 0.8333333
    %v2436 = vmul.f32 %v2435, %v2394
    %v2437 = vmul.f32 %v2339, 0.8333333
    %v2438 = vmul.f32 %v2437, %v2399
    %v2439 = vadd.f32 %v2436, %v2438
    %v2440 = vmul.f32 %v2329, 0.8333333
    %v2441 = vmul.f32 %v2440, %v2399
    %v2442 = vmul.f32 %v2346, 0.8333333
    %v2443 = vmul.f32 %v2442, %v2404
    %v2444 = vadd.f32 %v2441, %v2443
    %v2445 = vmul.f32 %v2336, 0.8333333
    %v2446 = vmul.f32 %v2445, %v2404
    %v2447 = vmul.f32 %v2353, 0.8333333
    %v2448 = vmul.f32 %v2447, %v2409
    %v2449 = vadd.f32 %v2446, %v2448
    %v2450 = vmul.f32 %v2343, 0.8333333
    %v2451 = vmul.f32 %v2450, %v2409
    %v2452 = vmul.f32 %v2360, 0.8333333
    %v2453 = vmul.f32 %v2452, %v2414
    %v2454 = vadd.f32 %v2451, %v2453
    %v2455 = vmul.f32 %v2350, 0.8333333
    %v2456 = vmul.f32 %v2455, %v2414
    %v2457 = vmul.f32 %v2367, 0.8333333
    %v2458 = vmul.f32 %v2457, %v2419
    %v2459 = vadd.f32 %v2456, %v2458
    %v2460 = vmul.f32 %v2357, 0.8333333
    %v2461 = vmul.f32 %v2460, %v2419
    %v2462 = vmul.f32 %v2374, 0.8333333
    %v2463 = vmul.f32 %v2462, %v2424
    %v2464 = vadd.f32 %v2461, %v2463
    %v2465 = vmul.f32 %v2364, 0.8333333
    %v2466 = vmul.f32 %v2465, %v2424
    %v2467 = vmul.f32 %v2381, 0.8333333
    %v2468 = vmul.f32 %v2467, %v2429
    %v2469 = vadd.f32 %v2466, %v2468
    %2471 = vrot.lane.b32.xlu0 %v2434, 32
    %v2472 = vpop.permute.xlu0 %2471
    %2475 = vrot.lane.b32.xlu0 %v2439, 64
    %v2476 = vpop.permute.xlu0 %2475
    %2479 = vrot.lane.b32.xlu0 %v2444, 96
    %v2480 = vpop.permute.xlu0 %2479
    %2483 = vrot.lane.b32.xlu0 %v2454, 32
    %v2484 = vpop.permute.xlu0 %2483
    %2487 = vrot.lane.b32.xlu0 %v2459, 64
    %v2488 = vpop.permute.xlu0 %2487
    %2491 = vrot.lane.b32.xlu0 %v2464, 96
    %v2492 = vpop.permute.xlu0 %2491
    %v2494 = vsel %vm271, %v2267, %v2472
    %v2495 = vsel %vm275, %v2494, %v2476
    %v2496 = vsel %vm279, %v2495, %v2480
    %v2497 = vsel %vm271, %v2449, %v2484
    %v2498 = vsel %vm275, %v2497, %v2488
    %v2499 = vsel %vm279, %v2498, %v2492
    %v2500 = vpack.c.bf16 %v2496, %v2496
    %v2501 = vpack.c.bf16 %v2499, %v2499
    %v2502 = vpack.c.bf16 %v2469, %v2469
    %v2503 = vld [vmem:[%s7] sm:$0xf]
    %v2504 = vld [vmem:[%s7 + $0x4] sm:$0xf]
    %v2505 = vld [vmem:[%s7 + $0x8] sm:$0xf]
    %v2506 = vld [vmem:[%s7 + $0xc] sm:$0xf]
    %v2507 = vld [vmem:[%s7 + $0x10] sm:$0xf]
    %v2508 = vld [vmem:[%s7 + $0x14] sm:$0xf]
    %v2509 = vld [vmem:[%s7 + $0x18] sm:$0xf]
    %v2510 = vld [vmem:[%s7 + $0x1c] sm:$0xf]
    %v2511 = vld [vmem:[%s7 + $0x20] sm:$0xf]
    %v2512 = vld [vmem:[%s7 + $0x24] sm:$0xf]
    %v2513 = vld [vmem:[%s7 + $0x28] sm:$0xf]
    %v2514 = vld [vmem:[%s7 + $0x2c] sm:$0xf]
    %v2515 = vld [vmem:[%s7 + $0x30] sm:$0xf]
    %v2516 = vld [vmem:[%s7 + $0x34] sm:$0xf]
    %v2517 = vld [vmem:[%s7 + $0x38] sm:$0xf]
    %v2518 = vld [vmem:[%s7 + $0x3c] sm:$0xf]
    %v2519 = vld [vmem:[%s7 + $0x40] sm:$0xf]
    %v2520 = vld [vmem:[%s7 + $0x44] sm:$0xf]
    %v2521 = vld [vmem:[%s7 + $0x48] sm:$0xf]
    %v2522 = vld [vmem:[%s7 + $0x4c] sm:$0xf]
    %v2523 = vld [vmem:[%s7 + $0x50] sm:$0xf]
    %v2524 = vld [vmem:[%s7 + $0x54] sm:$0xf]
    %v2525 = vld [vmem:[%s7 + $0x58] sm:$0xf]
    %v2526 = vld [vmem:[%s7 + $0x5c] sm:$0xf]
    %v2527 = vld [vmem:[%s7 + $0x60] sm:$0xf]
    %v2528 = vld [vmem:[%s7 + $0x64] sm:$0xf]
    %v2529 = vld [vmem:[%s7 + $0x68] sm:$0xf]
    %v2530 = vld [vmem:[%s7 + $0x6c] sm:$0xf]
    %v2531 = vld [vmem:[%s7 + $0x70] sm:$0xf]
    %v2532 = vld [vmem:[%s7 + $0x74] sm:$0xf]
    %v2533 = vld [vmem:[%s7 + $0x78] sm:$0xf]
    %v2534 = vld [vmem:[%s7 + $0x7c] sm:$0xf]
    %v2535 = vld [vmem:[%s7 + $0x80] sm:$0xf]
    %v2536 = vld [vmem:[%s7 + $0x84] sm:$0xf]
    %v2537 = vld [vmem:[%s7 + $0x88] sm:$0xf]
    %v2538 = vld [vmem:[%s7 + $0x8c] sm:$0xf]
    %v2575 = vunpack.c.l.b16 %v2503
    %v2576 = vunpack.c.l.b16 %v2504
    %v2577 = vunpack.c.l.b16 %v2505
    %v2578 = vunpack.c.l.b16 %v2506
    %v2579 = vunpack.c.l.b16 %v2507
    %v2580 = vunpack.c.l.b16 %v2508
    %v2581 = vunpack.c.l.b16 %v2509
    %v2582 = vunpack.c.l.b16 %v2510
    %v2583 = vunpack.c.l.b16 %v2511
    %v2584 = vunpack.c.l.b16 %v2512
    %v2585 = vunpack.c.l.b16 %v2513
    %v2586 = vunpack.c.l.b16 %v2514
    %v2587 = vunpack.c.l.b16 %v2515
    %v2588 = vunpack.c.l.b16 %v2516
    %v2589 = vunpack.c.l.b16 %v2517
    %v2590 = vunpack.c.l.b16 %v2518
    %v2591 = vunpack.c.l.b16 %v2519
    %v2592 = vunpack.c.l.b16 %v2520
    %v2593 = vunpack.c.l.b16 %v2521
    %v2594 = vunpack.c.l.b16 %v2522
    %v2595 = vunpack.c.l.b16 %v2523
    %v2596 = vunpack.c.l.b16 %v2524
    %v2597 = vunpack.c.l.b16 %v2525
    %v2598 = vunpack.c.l.b16 %v2526
    %v2599 = vunpack.c.l.b16 %v2527
    %v2600 = vunpack.c.l.b16 %v2528
    %v2601 = vunpack.c.l.b16 %v2529
    %v2602 = vunpack.c.l.b16 %v2530
    %v2603 = vunpack.c.l.b16 %v2531
    %v2604 = vunpack.c.l.b16 %v2532
    %v2605 = vunpack.c.l.b16 %v2533
    %v2606 = vunpack.c.l.b16 %v2534
    %v2607 = vunpack.c.l.b16 %v2535
    %v2608 = vunpack.c.l.b16 %v2536
    %v2609 = vunpack.c.l.b16 %v2537
    %v2610 = vunpack.c.l.b16 %v2538
    %v2611 = vpack.c.b16 %v2576, %v2575
    %v2612 = vpack.c.b16 %v2578, %v2577
    %v2613 = vpack.c.b16 %v2580, %v2579
    %v2614 = vpack.c.b16 %v2582, %v2581
    %v2615 = vpack.c.b16 %v2584, %v2583
    %v2616 = vpack.c.b16 %v2586, %v2585
    %v2617 = vpack.c.b16 %v2588, %v2587
    %v2618 = vpack.c.b16 %v2590, %v2589
    %v2619 = vpack.c.b16 %v2592, %v2591
    %v2620 = vpack.c.b16 %v2594, %v2593
    %v2621 = vpack.c.b16 %v2596, %v2595
    %v2622 = vpack.c.b16 %v2598, %v2597
    %v2623 = vpack.c.b16 %v2600, %v2599
    %v2624 = vpack.c.b16 %v2602, %v2601
    %v2625 = vpack.c.b16 %v2604, %v2603
    %v2626 = vpack.c.b16 %v2606, %v2605
    %v2627 = vpack.c.b16 %v2608, %v2607
    %v2628 = vpack.c.b16 %v2610, %v2609
    %v2648 = vsel %vm271, %v2502, 0
    %2650 = vmatprep.subr.bf16.mxu0 0
    %2651 = vmatpush1.bf16.msra.mxu0 %v2611
    %2652 = vmatprep.subr.bf16.mxu0 0
    %2653 = vmatpush1.bf16.msra.mxu0 %v2612
    %2654 = vmatprep.subr.bf16.mxu0 0
    %2655 = vmatpush1.bf16.msra.mxu0 %v2613
    %2656 = vmatprep.subr.bf16.mxu0 0
    %2657 = vmatpush1.bf16.msra.mxu0 %v2614
    %2658 = vmatprep.subr.bf16.mxu0 0
    %2659 = vmatpush1.bf16.msra.mxu0 %v2615
    %2660 = vmatprep.subr.bf16.mxu0 0
    %2661 = vmatpush1.bf16.msra.mxu0 %v2616
    %2662 = vmatprep.subr.bf16.mxu0 0
    %2663 = vmatpush1.bf16.msra.mxu0 %v2617
    %2664 = vmatprep.subr.bf16.mxu0 0
    %2665 = vmatpush1.bf16.msra.mxu0 %v2618
    %2666 = vmatprep.subr.bf16.mxu0 0
    %2667 = vmatpush1.bf16.msra.mxu0 %v2619
    %2668 = vmatprep.subr.bf16.mxu0 0
    %2669 = vmatpush1.bf16.msra.mxu0 %v2620
    %2670 = vmatprep.subr.bf16.mxu0 0
    %2671 = vmatpush1.bf16.msra.mxu0 %v2621
    %2672 = vmatprep.subr.bf16.mxu0 0
    %2673 = vmatpush1.bf16.msra.mxu0 %v2622
    %2674 = vmatprep.subr.bf16.mxu0 0
    %2675 = vmatpush1.bf16.msra.mxu0 %v2623
    %2676 = vmatprep.subr.bf16.mxu0 0
    %2677 = vmatpush1.bf16.msra.mxu0 %v2624
    %2678 = vmatprep.subr.bf16.mxu0 0
    %2679 = vmatpush1.bf16.msra.mxu0 %v2625
    %2680 = vmatprep.subr.bf16.mxu0 0
    %2681 = vmatpush1.bf16.msra.mxu0 %v2626
    %2682 = vmatprep.mubr.bf16.mxu0 %v2501
    %2683 = vmatmul.mubr.bf16.gmra.mrb[0].mxu0 %v2500
    %v2684 = vpop.f32.mrb[0].mxu0
    %v2685 = vadd.f32 0.0, %v2684
    %v2686 = vpop.f32.mrb[0].mxu0
    %v2687 = vpop.f32.mrb[0].mxu0
    %v2688 = vpop.f32.mrb[0].mxu0
    %2689 = vdwg.mxu0
    %2690 = vmatprep.subr.bf16.mxu0 0
    %2691 = vmatpush1.bf16.msra.mxu0 %v2627
    %2692 = vmatprep.subr.bf16.mxu0 0
    %2693 = vmatpush1.bf16.msra.mxu0 %v2628
    %2694 = vmatprep.subr.bf16.mxu0 0
    %2695 = vmatpush1.bf16.msra.mxu0 0
    %2696 = vmatprep.subr.bf16.mxu0 0
    %2697 = vmatpush1.bf16.msra.mxu0 0
    %2698 = vmatprep.subr.bf16.mxu0 0
    %2699 = vmatpush1.bf16.msra.mxu0 0
    %2700 = vmatprep.subr.bf16.mxu0 0
    %2701 = vmatpush1.bf16.msra.mxu0 0
    %2702 = vmatprep.subr.bf16.mxu0 0
    %2703 = vmatpush1.bf16.msra.mxu0 0
    %2704 = vmatprep.subr.bf16.mxu0 0
    %2705 = vmatpush1.bf16.msra.mxu0 0
    %2706 = vmatprep.subr.bf16.mxu0 0
    %2707 = vmatpush1.bf16.msra.mxu0 0
    %2708 = vmatprep.subr.bf16.mxu0 0
    %2709 = vmatpush1.bf16.msra.mxu0 0
    %2710 = vmatprep.subr.bf16.mxu0 0
    %2711 = vmatpush1.bf16.msra.mxu0 0
    %2712 = vmatprep.subr.bf16.mxu0 0
    %2713 = vmatpush1.bf16.msra.mxu0 0
    %2714 = vmatprep.subr.bf16.mxu0 0
    %2715 = vmatpush1.bf16.msra.mxu0 0
    %2716 = vmatprep.subr.bf16.mxu0 0
    %2717 = vmatpush1.bf16.msra.mxu0 0
    %2718 = vmatprep.subr.bf16.mxu0 0
    %2719 = vmatpush1.bf16.msra.mxu0 0
    %2720 = vmatprep.subr.bf16.mxu0 0
    %2721 = vmatpush1.bf16.msra.mxu0 0
    %2722 = vmatprep.mubr.bf16.mxu0 0
    %2723 = vmatmul.mubr.bf16.gmra.mrb[0].mxu0 %v2648
    %v2724 = vpop.f32.mrb[0].mxu0
    %v2725 = vadd.f32 %v2685, %v2724
    %v2726 = vpop.f32.mrb[0].mxu0
    %v2727 = vpop.f32.mrb[0].mxu0
    %v2728 = vpop.f32.mrb[0].mxu0
    %2729 = vdwg.mxu0
    %vm2730 = vcmask 0
    %2731 = vst.msk [vmem:[#allocation4] sm:$0x1] %vm2730, %v2725
    %v2732 = vld [vmem:[%s1] sm:$0x1]
    %2734 = vset.pattern.permute.xlu0 0
    %2735 = vperm.xlu0 %2734, %v2725
    %v2736 = vpop.permute.xlu0 %2735
    %v2738 = vadd.f32 %v2736, %v2732
    %vm2739 = vcmask 40960
    %2740 = vst.msk [vmem:[#allocation2] sm:$0x1] %vm2739, %v2738
    // Predicated region
    $region34: #{kan_libd_forward.1} parent=1 // pred_check
      _
    $region35: #{kan_libd_forward.1} parent=1 // pred_check_branch
      %2742 = sbr.rel (0) target = $region37
    $region36: #{kan_libd_forward.1} parent=1 // pred_region
      %s2744 = ssub.s32 16, 16
      %2745 = vsyncadd [#allocation3], %s2744
      %s2747 = sshll.u32 [#allocation2], 4
      %s2748 = int_to_ptr.vmem [resolvable:$true] %s2747
      %2750 = dma.vmem_to_hbm [thread:$0]  %s2748, 16, %s8, [#allocation3]
    $region37: #{kan_libd_forward.1} parent=1 // pred_fallthru
      _
    // Predicated region
    $region38: #{kan_libd_forward.1} parent=1 // pred_check
      _
    $region39: #{kan_libd_forward.1} parent=1 // pred_check_branch
      %2752 = sbr.rel (0) target = $region41
    $region40: #{kan_libd_forward.1} parent=1 // pred_region
      %s2754 = ssub.s32 16, 16
      %2755 = vsyncadd [#allocation5], %s2754
      %s2757 = sshll.u32 [#allocation4], 4
      %s2758 = int_to_ptr.vmem [resolvable:$true] %s2757
      %2760 = dma.vmem_to_hbm [thread:$0]  %s2758, 16, %s9, [#allocation5]
    $region41: #{kan_libd_forward.1} parent=1 // pred_fallthru
      _
    // Predicated region
    $region42: #{kan_libd_forward.1} parent=1 // pred_check
      _
    $region43: #{kan_libd_forward.1} parent=1 // pred_check_branch
      %2762 = sbr.rel (0) target = $region45
    $region44: #{kan_libd_forward.1} parent=1 // pred_region
      %2763 = dma.done [#allocation3], 16
    $region45: #{kan_libd_forward.1} parent=1 // pred_fallthru
      _
    // Predicated region
    $region46: #{kan_libd_forward.1} parent=1 // pred_check
      _
    $region47: #{kan_libd_forward.1} parent=1 // pred_check_branch
      %2765 = sbr.rel (0) target = $region49
    $region48: #{kan_libd_forward.1} parent=1 // pred_region
      %2766 = dma.done [#allocation5], 16
    $region49: #{kan_libd_forward.1} parent=1 // pred_fallthru
      _
    %2767 = vsyncpa [#allocation3], 1
    %2768 = vsyncpa [#allocation5], 1

</llo_original>
